<compile_context>
chip_gen: v6e
topology: v6e:2x2x1
jax: 0.10.0
libtpu: 0.0.40
codegen_flags: <defaults>
</compile_context>

<pallas_src>
import functools

import numpy as np
import jax
import jax.numpy as jnp
from jax.experimental import pallas as pl
from jax.experimental.pallas import tpu as pltpu


def _vmem_limit_bytes(*buffer_bytes):
    """Working-set-sized VMEM limit: 2x (double buffering) + 2 MiB slack, >= 4 MiB."""
    return int(max(2 * sum(buffer_bytes) + (2 << 20), 4 << 20))


# ---------------------------------------------------------------------------
# Fused forward kernel. One grid step handles `gt` (graph, text) pairs.
# ---------------------------------------------------------------------------
def fused_gcn_kernel(temp_ref, a_ref, x_ref, text_ref,
                     w1_ref, b1_ref, w2_ref, b2_ref, w3_ref, b3_ref,
                     wm1_ref, bm1_ref, wm2_ref, bm2_ref, wm3_ref, bm3_ref,
                     wt_ref, bt_ref,
                     g1_ref, be1_ref, g2_ref, be2_ref,
                     text_out_ref, mol_out_ref,
                     *, gt, npg):
    bf16 = jnp.bfloat16
    scale = jnp.exp(temp_ref[0, 0])                     # scalar read from SMEM

    def layer_norm(x, gamma, beta):                     # f32 elementwise (v5e-safe)
        mu = jnp.mean(x, axis=-1, keepdims=True)
        var = jnp.mean((x - mu) ** 2, axis=-1, keepdims=True)
        return (x - mu) * jax.lax.rsqrt(var + 1e-5) * gamma + beta

    a = a_ref[...]                                      # [gt, npg, npg] bf16 blocks

    def gcn_conv(h2d_bf16, w_ref, b_ref, relu):
        # A @ (H @ W): the W matmul runs once on the flattened node axis (lane-dense
        # MXU op); the adjacency multiply is a batched matmul over the block-diagonal
        # per-graph blocks only.
        hw = jnp.dot(h2d_bf16, w_ref[...], preferred_element_type=jnp.float32)
        hw3 = hw.astype(bf16).reshape(gt, npg, -1)
        ah = jnp.einsum('gnm,gmh->gnh', a, hw3, preferred_element_type=jnp.float32)
        out = ah.reshape(gt * npg, -1) + b_ref[...]
        if relu:
            out = jnp.maximum(out, 0.0)
        return out

    h = gcn_conv(x_ref[...].reshape(gt * npg, -1), w1_ref, b1_ref, True)
    h = gcn_conv(h.astype(bf16), w2_ref, b2_ref, True)
    h = gcn_conv(h.astype(bf16), w3_ref, b3_ref, False)          # [gt*npg, H] f32

    # global_mean_pool == per-graph mean (nodes are contiguous per graph, equal size).
    pooled = jnp.mean(h.reshape(gt, npg, -1), axis=1)            # [gt, H] f32

    def linear(x_f32, w_ref, b_ref):
        return jnp.dot(x_f32.astype(bf16), w_ref[...],
                       preferred_element_type=jnp.float32) + b_ref[...]

    # ---- mol branch: MLP (relu, relu, linear) -> LayerNorm -> * exp(temp) ----
    m = jnp.maximum(linear(pooled, wm1_ref, bm1_ref), 0.0)
    m = jnp.maximum(linear(m, wm2_ref, bm2_ref), 0.0)
    m = linear(m, wm3_ref, bm3_ref)
    m = layer_norm(m, g1_ref[...], be1_ref[...]) * scale
    mol_out_ref[...] = m.astype(mol_out_ref.dtype)

    # ---- text branch (paired rows of this block): Linear -> LayerNorm -> * exp(temp)
    t = linear(text_ref[...], wt_ref, bt_ref)
    t = layer_norm(t, g2_ref[...], be2_ref[...]) * scale
    text_out_ref[...] = t.astype(text_out_ref.dtype)


def gcn_forward(text_pooled, a_blocks, x_blocks, params, *, graphs_per_block=8):
    bf16 = jnp.bfloat16
    g, npg, _ = a_blocks.shape
    f = x_blocks.shape[2]
    b, ninp = text_pooled.shape
    hgc = params["w1"].shape[1]
    nhid = params["wm1"].shape[1]
    nout = params["wm3"].shape[1]
    assert b == g, "text batch must equal the number of graphs (paired batch)"

    gt = graphs_per_block if (g % graphs_per_block == 0) else g
    assert g % gt == 0
    assert (gt % 8 == 0) or (gt == g), "graph tile must be sublane-aligned"

    inputs = (params["temp"],
              a_blocks.astype(bf16), x_blocks.astype(bf16), text_pooled,
              params["w1"].astype(bf16), params["b1"],
              params["w2"].astype(bf16), params["b2"],
              params["w3"].astype(bf16), params["b3"],
              params["wm1"].astype(bf16), params["bm1"],
              params["wm2"].astype(bf16), params["bm2"],
              params["wm3"].astype(bf16), params["bm3"],
              params["wt"].astype(bf16), params["bt"],
              params["g1"], params["be1"], params["g2"], params["be2"])

    def const(shape):
        return pl.BlockSpec(shape, lambda i: (0, 0))    # resident across grid steps

    in_specs = [
        pl.BlockSpec(memory_space=pltpu.MemorySpace.SMEM),      # temp: scalar in SMEM
        pl.BlockSpec((gt, npg, npg), lambda i: (i, 0, 0)),      # A blocks (streamed)
        pl.BlockSpec((gt, npg, f), lambda i: (i, 0, 0)),        # X blocks (streamed)
        pl.BlockSpec((gt, ninp), lambda i: (i, 0)),             # text rows (streamed)
        const((f, hgc)), const((1, hgc)),
        const((hgc, hgc)), const((1, hgc)),
        const((hgc, hgc)), const((1, hgc)),
        const((hgc, nhid)), const((1, nhid)),
        const((nhid, nhid)), const((1, nhid)),
        const((nhid, nout)), const((1, nout)),
        const((ninp, nout)), const((1, nout)),
        const((1, nout)), const((1, nout)), const((1, nout)), const((1, nout)),
    ]
    out_specs = (pl.BlockSpec((gt, nout), lambda i: (i, 0)),
                 pl.BlockSpec((gt, nout), lambda i: (i, 0)))

    n_nodes = g * npg
    w_bytes = 2 * (f * hgc + 2 * hgc * hgc + hgc * nhid + nhid * nhid
                   + nhid * nout + ninp * nout)
    flops = (2 * n_nodes * (f + 2 * hgc) * hgc           # H @ W, three layers
             + 3 * 2 * n_nodes * npg * hgc                # block-diagonal A @ (HW)
             + 2 * g * (hgc * nhid + nhid * nhid + nhid * nout)
             + 2 * b * ninp * nout)
    bytes_accessed = (2 * g * npg * npg + 2 * n_nodes * f + 4 * b * ninp
                      + w_bytes + 4 * 12 * max(hgc, nhid, nout)
                      + 4 * (b + g) * nout)

    kern = functools.partial(fused_gcn_kernel, gt=gt, npg=npg)
    return pl.pallas_call(
        kern,
        out_shape=(jax.ShapeDtypeStruct((b, nout), jnp.float32),
                   jax.ShapeDtypeStruct((g, nout), jnp.float32)),
        grid_spec=pltpu.PrefetchScalarGridSpec(
            num_scalar_prefetch=0,
            grid=(g // gt,),
            in_specs=in_specs,
            out_specs=out_specs,
        ),
        compiler_params=pltpu.CompilerParams(
            dimension_semantics=("parallel",),           # graph blocks -> v7x 2 TCs
            vmem_limit_bytes=_vmem_limit_bytes(
                2 * 2 * gt * npg * npg,                   # A blocks (double-buffered)
                2 * 2 * gt * npg * f,                     # X blocks
                2 * 4 * gt * ninp,                        # text rows
                w_bytes,                                  # resident weights
                2 * 2 * 4 * gt * nout,                    # outputs
                6 * 4 * gt * npg * hgc),                  # f32 intermediates headroom
        ),
        cost_estimate=pl.CostEstimate(
            flops=flops,
            transcendentals=2 * (b + g) + g // gt,
            bytes_accessed=bytes_accessed,
        ),
    )(*inputs)


# ---------------------------------------------------------------------------
# Reference + deterministic graph construction.
# ---------------------------------------------------------------------------
def build_graph_blocks(num_graphs, nodes_per_graph):
    """Ring graph per sub-graph; returns A_hat = D^-1/2 (A+I) D^-1/2 as [G,npg,npg]."""
    npg = nodes_per_graph
    adj = np.zeros((npg, npg), np.float32)
    for i in range(npg):
        j = (i + 1) % npg
        adj[i, j] = 1.0
        adj[j, i] = 1.0
    adj += np.eye(npg, dtype=np.float32)                 # self loops (GCNConv default)
    deg = adj.sum(axis=1)
    dinv = 1.0 / np.sqrt(deg)
    a_blk = dinv[:, None] * adj * dinv[None, :]
    return jnp.asarray(np.broadcast_to(a_blk, (num_graphs, npg, npg)).copy())


def blocks_to_dense(a_blocks):
    """Dense [N,N] A_hat and [G,N] mean-pool matrix for the pure-JAX reference."""
    ab = np.asarray(a_blocks)
    g, npg, _ = ab.shape
    n = g * npg
    dense = np.zeros((n, n), np.float32)
    pool = np.zeros((g, n), np.float32)
    for i in range(g):
        dense[i * npg:(i + 1) * npg, i * npg:(i + 1) * npg] = ab[i]
        pool[i, i * npg:(i + 1) * npg] = 1.0 / npg
    return jnp.asarray(dense), jnp.asarray(pool)


def reference_forward(text_pooled, a_dense, x_nodes, pool_mat, params):
    """Pure-JAX f32 reference with the original module's semantics."""
    def ln(x, gm, bt):
        mu = jnp.mean(x, axis=-1, keepdims=True)
        var = jnp.mean((x - mu) ** 2, axis=-1, keepdims=True)
        return (x - mu) * jax.lax.rsqrt(var + 1e-5) * gm + bt

    scale = jnp.exp(params["temp"][0, 0])
    t = text_pooled @ params["wt"] + params["bt"]
    t = ln(t, params["g2"], params["be2"]) * scale

    h = jnp.maximum(a_dense @ (x_nodes @ params["w1"]) + params["b1"], 0.0)
    h = jnp.maximum(a_dense @ (h @ params["w2"]) + params["b2"], 0.0)
    h = a_dense @ (h @ params["w3"]) + params["b3"]
    pooled = pool_mat @ h
    m = jnp.maximum(pooled @ params["wm1"] + params["bm1"], 0.0)
    m = jnp.maximum(m @ params["wm2"] + params["bm2"], 0.0)
    m = m @ params["wm3"] + params["bm3"]
    m = ln(m, params["g1"], params["be1"]) * scale
    return t, m


if __name__ == "__main__":
    # Lane-dense, MXU-friendly feature widths; 16 graphs -> grid=(2,) parallel steps.
    G = 16                         # number of graphs == text batch
    B = G
    nodes_per_graph = 32
    N = G * nodes_per_graph        # 512 nodes total
    num_node_features = 128
    graph_hidden = 128
    ninp, nhid, nout = 128, 128, 128

    key = jax.random.PRNGKey(0)
    ks = jax.random.split(key, 20)

    def init_w(k, shape, scale=0.1):
        return (scale * jax.random.normal(k, shape)).astype(jnp.float32)

    params = {
        # text_hidden1: Linear(ninp, nout)
        "wt":  init_w(ks[0], (ninp, nout)),
        "bt":  init_w(ks[1], (1, nout)),
        # conv1/2/3 (GCNConv weights + bias)
        "w1":  init_w(ks[2], (num_node_features, graph_hidden)),
        "b1":  init_w(ks[3], (1, graph_hidden)),
        "w2":  init_w(ks[4], (graph_hidden, graph_hidden)),
        "b2":  init_w(ks[5], (1, graph_hidden)),
        "w3":  init_w(ks[6], (graph_hidden, graph_hidden)),
        "b3":  init_w(ks[7], (1, graph_hidden)),
        # mol_hidden1/2/3
        "wm1": init_w(ks[8], (graph_hidden, nhid)),
        "bm1": init_w(ks[9], (1, nhid)),
        "wm2": init_w(ks[10], (nhid, nhid)),
        "bm2": init_w(ks[11], (1, nhid)),
        "wm3": init_w(ks[12], (nhid, nout)),
        "bm3": init_w(ks[13], (1, nout)),
        # LayerNorms (default init: gamma=1, beta=0)
        "g1":  jnp.ones((1, nout), jnp.float32),
        "be1": jnp.zeros((1, nout), jnp.float32),
        "g2":  jnp.ones((1, nout), jnp.float32),
        "be2": jnp.zeros((1, nout), jnp.float32),
        # temp parameter (0.07), kept in SMEM inside the kernel
        "temp": jnp.full((1, 1), 0.07, jnp.float32),
    }

    text_pooled = init_w(ks[14], (B, ninp), scale=1.0)   # stands in for BERT pooler_output
    x_blocks = init_w(ks[15], (G, nodes_per_graph, num_node_features), scale=1.0)
    a_blocks = build_graph_blocks(G, nodes_per_graph)

    fwd = jax.jit(functools.partial(gcn_forward, graphs_per_block=8))
    text_out, mol_out = fwd(text_pooled, a_blocks, x_blocks, params)
    jax.block_until_ready((text_out, mol_out))

    assert text_out.shape == (B, nout) and mol_out.shape == (G, nout)
    assert bool(jnp.all(jnp.isfinite(text_out))) and bool(jnp.all(jnp.isfinite(mol_out)))

    # Sanity check vs. an f32 pure-JAX reference on the dense adjacency
    # (bf16 matmul operands => small drift).
    a_dense, pool_mat = blocks_to_dense(a_blocks)
    x_nodes = x_blocks.reshape(N, num_node_features)
    ref_t, ref_m = reference_forward(text_pooled, a_dense, x_nodes, pool_mat, params)
    err = max(float(jnp.max(jnp.abs(text_out - ref_t))),
              float(jnp.max(jnp.abs(mol_out - ref_m))))
    assert err < 0.35, f"kernel deviates from f32 reference by {err}"

    print("KERNEL_OK")
</pallas_src>

<mosaic_0001>
module attributes {stable_mosaic.version = 11 : i64} {
  func.func @fused_gcn_kernel(%arg0: i32, %arg1: memref<1x1xf32, #tpu.memory_space<smem>>, %arg2: memref<8x32x32xbf16, #tpu.memory_space<vmem>>, %arg3: memref<8x32x128xbf16, #tpu.memory_space<vmem>>, %arg4: memref<8x128xf32, #tpu.memory_space<vmem>>, %arg5: memref<128x128xbf16, #tpu.memory_space<vmem>>, %arg6: memref<1x128xf32, #tpu.memory_space<vmem>>, %arg7: memref<128x128xbf16, #tpu.memory_space<vmem>>, %arg8: memref<1x128xf32, #tpu.memory_space<vmem>>, %arg9: memref<128x128xbf16, #tpu.memory_space<vmem>>, %arg10: memref<1x128xf32, #tpu.memory_space<vmem>>, %arg11: memref<128x128xbf16, #tpu.memory_space<vmem>>, %arg12: memref<1x128xf32, #tpu.memory_space<vmem>>, %arg13: memref<128x128xbf16, #tpu.memory_space<vmem>>, %arg14: memref<1x128xf32, #tpu.memory_space<vmem>>, %arg15: memref<128x128xbf16, #tpu.memory_space<vmem>>, %arg16: memref<1x128xf32, #tpu.memory_space<vmem>>, %arg17: memref<128x128xbf16, #tpu.memory_space<vmem>>, %arg18: memref<1x128xf32, #tpu.memory_space<vmem>>, %arg19: memref<1x128xf32, #tpu.memory_space<vmem>>, %arg20: memref<1x128xf32, #tpu.memory_space<vmem>>, %arg21: memref<1x128xf32, #tpu.memory_space<vmem>>, %arg22: memref<1x128xf32, #tpu.memory_space<vmem>>, %arg23: memref<8x128xf32, #tpu.memory_space<vmem>>, %arg24: memref<8x128xf32, #tpu.memory_space<vmem>>) attributes {dimension_semantics = [#tpu.dimension_semantics<parallel>], iteration_bounds = array<i64: 2>, scalar_prefetch = 0 : i64, scratch_operands = 0 : i64, tpu.core_type = #tpu.core_type<tc>, window_params = [{transform_indices = @transform_0, window_bounds = array<i64: 1, 1>}, {transform_indices = @transform_1, window_bounds = array<i64: 8, 32, 32>}, {transform_indices = @transform_2, window_bounds = array<i64: 8, 32, 128>}, {transform_indices = @transform_3, window_bounds = array<i64: 8, 128>}, {pipeline_mode = #tpu.pipeline_mode<synchronous>, transform_indices = @transform_4, window_bounds = array<i64: 128, 128>}, {pipeline_mode = #tpu.pipeline_mode<synchronous>, transform_indices = @transform_5, window_bounds = array<i64: 1, 128>}, {pipeline_mode = #tpu.pipeline_mode<synchronous>, transform_indices = @transform_6, window_bounds = array<i64: 128, 128>}, {pipeline_mode = #tpu.pipeline_mode<synchronous>, transform_indices = @transform_7, window_bounds = array<i64: 1, 128>}, {pipeline_mode = #tpu.pipeline_mode<synchronous>, transform_indices = @transform_8, window_bounds = array<i64: 128, 128>}, {pipeline_mode = #tpu.pipeline_mode<synchronous>, transform_indices = @transform_9, window_bounds = array<i64: 1, 128>}, {pipeline_mode = #tpu.pipeline_mode<synchronous>, transform_indices = @transform_10, window_bounds = array<i64: 128, 128>}, {pipeline_mode = #tpu.pipeline_mode<synchronous>, transform_indices = @transform_11, window_bounds = array<i64: 1, 128>}, {pipeline_mode = #tpu.pipeline_mode<synchronous>, transform_indices = @transform_12, window_bounds = array<i64: 128, 128>}, {pipeline_mode = #tpu.pipeline_mode<synchronous>, transform_indices = @transform_13, window_bounds = array<i64: 1, 128>}, {pipeline_mode = #tpu.pipeline_mode<synchronous>, transform_indices = @transform_14, window_bounds = array<i64: 128, 128>}, {pipeline_mode = #tpu.pipeline_mode<synchronous>, transform_indices = @transform_15, window_bounds = array<i64: 1, 128>}, {pipeline_mode = #tpu.pipeline_mode<synchronous>, transform_indices = @transform_16, window_bounds = array<i64: 128, 128>}, {pipeline_mode = #tpu.pipeline_mode<synchronous>, transform_indices = @transform_17, window_bounds = array<i64: 1, 128>}, {pipeline_mode = #tpu.pipeline_mode<synchronous>, transform_indices = @transform_18, window_bounds = array<i64: 1, 128>}, {pipeline_mode = #tpu.pipeline_mode<synchronous>, transform_indices = @transform_19, window_bounds = array<i64: 1, 128>}, {pipeline_mode = #tpu.pipeline_mode<synchronous>, transform_indices = @transform_20, window_bounds = array<i64: 1, 128>}, {pipeline_mode = #tpu.pipeline_mode<synchronous>, transform_indices = @transform_21, window_bounds = array<i64: 1, 128>}, {transform_indices = @transform_22, window_bounds = array<i64: 8, 128>}, {transform_indices = @transform_23, window_bounds = array<i64: 8, 128>}]} {
    %c0 = arith.constant 0 : index
    %c0_0 = arith.constant 0 : index
    %0 = memref.load %arg1[%c0, %c0_0] : memref<1x1xf32, #tpu.memory_space<smem>>
    %1 = math.exp %0 : f32
    %c0_1 = arith.constant 0 : index
    %c0_2 = arith.constant 0 : index
    %c0_3 = arith.constant 0 : index
    %2 = vector.load %arg2[%c0_1, %c0_2, %c0_3] : memref<8x32x32xbf16, #tpu.memory_space<vmem>>, vector<8x32x32xbf16>
    %c0_4 = arith.constant 0 : index
    %c0_5 = arith.constant 0 : index
    %c0_6 = arith.constant 0 : index
    %3 = vector.load %arg3[%c0_4, %c0_5, %c0_6] : memref<8x32x128xbf16, #tpu.memory_space<vmem>>, vector<8x32x128xbf16>
    %4 = vector.shape_cast %3 : vector<8x32x128xbf16> to vector<256x128xbf16>
    %c0_7 = arith.constant 0 : index
    %c0_8 = arith.constant 0 : index
    %5 = vector.load %arg5[%c0_7, %c0_8] : memref<128x128xbf16, #tpu.memory_space<vmem>>, vector<128x128xbf16>
    %cst = arith.constant dense<0.000000e+00> : vector<256x128xf32>
    %6 = tpu.matmul %4, %5, %cst {dimension_numbers = #tpu.dot_dimension_numbers<[1], [0], [0], [1], [0, 0, 1, 1], [], []>} : vector<256x128xbf16>, vector<128x128xbf16>, vector<256x128xf32> -> vector<256x128xf32>
    %7 = arith.truncf %6 : vector<256x128xf32> to vector<256x128xbf16>
    %8 = vector.shape_cast %7 : vector<256x128xbf16> to vector<8x32x128xbf16>
    "tpu.trace_start"() <{level = 10 : i32, message = "gnm,gmh->gnh"}> : () -> ()
    %cst_9 = arith.constant dense<0.000000e+00> : vector<8x32x128xf32>
    %9 = tpu.matmul %2, %8, %cst_9 {dimension_numbers = #tpu.dot_dimension_numbers<[2], [1], [1], [2], [0, 0, 0, 1, 1, 2], [0], [0]>} : vector<8x32x32xbf16>, vector<8x32x128xbf16>, vector<8x32x128xf32> -> vector<8x32x128xf32>
    "tpu.trace_stop"() : () -> ()
    %10 = vector.shape_cast %9 : vector<8x32x128xf32> to vector<256x128xf32>
    %c0_10 = arith.constant 0 : index
    %c0_11 = arith.constant 0 : index
    %11 = vector.load %arg6[%c0_10, %c0_11] : memref<1x128xf32, #tpu.memory_space<vmem>>, vector<1x128xf32>
    %12 = vector.broadcast %11 : vector<1x128xf32> to vector<256x128xf32>
    %13 = arith.addf %10, %12 : vector<256x128xf32>
    %cst_12 = arith.constant 0.000000e+00 : f32
    %14 = vector.broadcast %cst_12 : f32 to vector<256x128xf32>
    %15 = arith.maximumf %13, %14 : vector<256x128xf32>
    %16 = arith.truncf %15 : vector<256x128xf32> to vector<256x128xbf16>
    %c0_13 = arith.constant 0 : index
    %c0_14 = arith.constant 0 : index
    %17 = vector.load %arg7[%c0_13, %c0_14] : memref<128x128xbf16, #tpu.memory_space<vmem>>, vector<128x128xbf16>
    %cst_15 = arith.constant dense<0.000000e+00> : vector<256x128xf32>
    %18 = tpu.matmul %16, %17, %cst_15 {dimension_numbers = #tpu.dot_dimension_numbers<[1], [0], [0], [1], [0, 0, 1, 1], [], []>} : vector<256x128xbf16>, vector<128x128xbf16>, vector<256x128xf32> -> vector<256x128xf32>
    %19 = arith.truncf %18 : vector<256x128xf32> to vector<256x128xbf16>
    %20 = vector.shape_cast %19 : vector<256x128xbf16> to vector<8x32x128xbf16>
    "tpu.trace_start"() <{level = 10 : i32, message = "gnm,gmh->gnh"}> : () -> ()
    %cst_16 = arith.constant dense<0.000000e+00> : vector<8x32x128xf32>
    %21 = tpu.matmul %2, %20, %cst_16 {dimension_numbers = #tpu.dot_dimension_numbers<[2], [1], [1], [2], [0, 0, 0, 1, 1, 2], [0], [0]>} : vector<8x32x32xbf16>, vector<8x32x128xbf16>, vector<8x32x128xf32> -> vector<8x32x128xf32>
    "tpu.trace_stop"() : () -> ()
    %22 = vector.shape_cast %21 : vector<8x32x128xf32> to vector<256x128xf32>
    %c0_17 = arith.constant 0 : index
    %c0_18 = arith.constant 0 : index
    %23 = vector.load %arg8[%c0_17, %c0_18] : memref<1x128xf32, #tpu.memory_space<vmem>>, vector<1x128xf32>
    %24 = vector.broadcast %23 : vector<1x128xf32> to vector<256x128xf32>
    %25 = arith.addf %22, %24 : vector<256x128xf32>
    %cst_19 = arith.constant 0.000000e+00 : f32
    %26 = vector.broadcast %cst_19 : f32 to vector<256x128xf32>
    %27 = arith.maximumf %25, %26 : vector<256x128xf32>
    %28 = arith.truncf %27 : vector<256x128xf32> to vector<256x128xbf16>
    %c0_20 = arith.constant 0 : index
    %c0_21 = arith.constant 0 : index
    %29 = vector.load %arg9[%c0_20, %c0_21] : memref<128x128xbf16, #tpu.memory_space<vmem>>, vector<128x128xbf16>
    %cst_22 = arith.constant dense<0.000000e+00> : vector<256x128xf32>
    %30 = tpu.matmul %28, %29, %cst_22 {dimension_numbers = #tpu.dot_dimension_numbers<[1], [0], [0], [1], [0, 0, 1, 1], [], []>} : vector<256x128xbf16>, vector<128x128xbf16>, vector<256x128xf32> -> vector<256x128xf32>
    %31 = arith.truncf %30 : vector<256x128xf32> to vector<256x128xbf16>
    %32 = vector.shape_cast %31 : vector<256x128xbf16> to vector<8x32x128xbf16>
    "tpu.trace_start"() <{level = 10 : i32, message = "gnm,gmh->gnh"}> : () -> ()
    %cst_23 = arith.constant dense<0.000000e+00> : vector<8x32x128xf32>
    %33 = tpu.matmul %2, %32, %cst_23 {dimension_numbers = #tpu.dot_dimension_numbers<[2], [1], [1], [2], [0, 0, 0, 1, 1, 2], [0], [0]>} : vector<8x32x32xbf16>, vector<8x32x128xbf16>, vector<8x32x128xf32> -> vector<8x32x128xf32>
    "tpu.trace_stop"() : () -> ()
    %34 = vector.shape_cast %33 : vector<8x32x128xf32> to vector<256x128xf32>
    %c0_24 = arith.constant 0 : index
    %c0_25 = arith.constant 0 : index
    %35 = vector.load %arg10[%c0_24, %c0_25] : memref<1x128xf32, #tpu.memory_space<vmem>>, vector<1x128xf32>
    %36 = vector.broadcast %35 : vector<1x128xf32> to vector<256x128xf32>
    %37 = arith.addf %34, %36 : vector<256x128xf32>
    %38 = vector.shape_cast %37 : vector<256x128xf32> to vector<8x32x128xf32>
    %cst_26 = arith.constant dense<0.000000e+00> : vector<8x128xf32>
    %39 = vector.multi_reduction <add>, %38, %cst_26 [1] : vector<8x32x128xf32> to vector<8x128xf32>
    %cst_27 = arith.constant 3.200000e+01 : f32
    %40 = vector.broadcast %cst_27 : f32 to vector<8x128xf32>
    %41 = arith.divf %39, %40 : vector<8x128xf32>
    %42 = arith.truncf %41 : vector<8x128xf32> to vector<8x128xbf16>
    %c0_28 = arith.constant 0 : index
    %c0_29 = arith.constant 0 : index
    %43 = vector.load %arg11[%c0_28, %c0_29] : memref<128x128xbf16, #tpu.memory_space<vmem>>, vector<128x128xbf16>
    %cst_30 = arith.constant dense<0.000000e+00> : vector<8x128xf32>
    %44 = tpu.matmul %42, %43, %cst_30 {dimension_numbers = #tpu.dot_dimension_numbers<[1], [0], [0], [1], [0, 0, 1, 1], [], []>} : vector<8x128xbf16>, vector<128x128xbf16>, vector<8x128xf32> -> vector<8x128xf32>
    %c0_31 = arith.constant 0 : index
    %c0_32 = arith.constant 0 : index
    %45 = vector.load %arg12[%c0_31, %c0_32] : memref<1x128xf32, #tpu.memory_space<vmem>>, vector<1x128xf32>
    %46 = vector.broadcast %45 : vector<1x128xf32> to vector<8x128xf32>
    %47 = arith.addf %44, %46 : vector<8x128xf32>
    %cst_33 = arith.constant 0.000000e+00 : f32
    %48 = vector.broadcast %cst_33 : f32 to vector<8x128xf32>
    %49 = arith.maximumf %47, %48 : vector<8x128xf32>
    %50 = arith.truncf %49 : vector<8x128xf32> to vector<8x128xbf16>
    %c0_34 = arith.constant 0 : index
    %c0_35 = arith.constant 0 : index
    %51 = vector.load %arg13[%c0_34, %c0_35] : memref<128x128xbf16, #tpu.memory_space<vmem>>, vector<128x128xbf16>
    %cst_36 = arith.constant dense<0.000000e+00> : vector<8x128xf32>
    %52 = tpu.matmul %50, %51, %cst_36 {dimension_numbers = #tpu.dot_dimension_numbers<[1], [0], [0], [1], [0, 0, 1, 1], [], []>} : vector<8x128xbf16>, vector<128x128xbf16>, vector<8x128xf32> -> vector<8x128xf32>
    %c0_37 = arith.constant 0 : index
    %c0_38 = arith.constant 0 : index
    %53 = vector.load %arg14[%c0_37, %c0_38] : memref<1x128xf32, #tpu.memory_space<vmem>>, vector<1x128xf32>
    %54 = vector.broadcast %53 : vector<1x128xf32> to vector<8x128xf32>
    %55 = arith.addf %52, %54 : vector<8x128xf32>
    %cst_39 = arith.constant 0.000000e+00 : f32
    %56 = vector.broadcast %cst_39 : f32 to vector<8x128xf32>
    %57 = arith.maximumf %55, %56 : vector<8x128xf32>
    %58 = arith.truncf %57 : vector<8x128xf32> to vector<8x128xbf16>
    %c0_40 = arith.constant 0 : index
    %c0_41 = arith.constant 0 : index
    %59 = vector.load %arg15[%c0_40, %c0_41] : memref<128x128xbf16, #tpu.memory_space<vmem>>, vector<128x128xbf16>
    %cst_42 = arith.constant dense<0.000000e+00> : vector<8x128xf32>
    %60 = tpu.matmul %58, %59, %cst_42 {dimension_numbers = #tpu.dot_dimension_numbers<[1], [0], [0], [1], [0, 0, 1, 1], [], []>} : vector<8x128xbf16>, vector<128x128xbf16>, vector<8x128xf32> -> vector<8x128xf32>
    %c0_43 = arith.constant 0 : index
    %c0_44 = arith.constant 0 : index
    %61 = vector.load %arg16[%c0_43, %c0_44] : memref<1x128xf32, #tpu.memory_space<vmem>>, vector<1x128xf32>
    %62 = vector.broadcast %61 : vector<1x128xf32> to vector<8x128xf32>
    %63 = arith.addf %60, %62 : vector<8x128xf32>
    %c0_45 = arith.constant 0 : index
    %c0_46 = arith.constant 0 : index
    %64 = vector.load %arg19[%c0_45, %c0_46] : memref<1x128xf32, #tpu.memory_space<vmem>>, vector<1x128xf32>
    %c0_47 = arith.constant 0 : index
    %c0_48 = arith.constant 0 : index
    %65 = vector.load %arg20[%c0_47, %c0_48] : memref<1x128xf32, #tpu.memory_space<vmem>>, vector<1x128xf32>
    %cst_49 = arith.constant dense<0.000000e+00> : vector<8xf32>
    %66 = vector.multi_reduction <add>, %63, %cst_49 [1] : vector<8x128xf32> to vector<8xf32>
    %67 = vector.shape_cast %66 : vector<8xf32> to vector<8x1xf32>
    %cst_50 = arith.constant 1.280000e+02 : f32
    %68 = vector.broadcast %cst_50 : f32 to vector<8x1xf32>
    %69 = arith.divf %67, %68 : vector<8x1xf32>
    %70 = vector.broadcast %69 : vector<8x1xf32> to vector<8x128xf32>
    %71 = arith.subf %63, %70 : vector<8x128xf32>
    %72 = arith.mulf %71, %71 : vector<8x128xf32>
    %cst_51 = arith.constant dense<0.000000e+00> : vector<8xf32>
    %73 = vector.multi_reduction <add>, %72, %cst_51 [1] : vector<8x128xf32> to vector<8xf32>
    %74 = vector.shape_cast %73 : vector<8xf32> to vector<8x1xf32>
    %cst_52 = arith.constant 1.280000e+02 : f32
    %75 = vector.broadcast %cst_52 : f32 to vector<8x1xf32>
    %76 = arith.divf %74, %75 : vector<8x1xf32>
    %77 = vector.broadcast %69 : vector<8x1xf32> to vector<8x128xf32>
    %78 = arith.subf %63, %77 : vector<8x128xf32>
    %cst_53 = arith.constant 9.99999974E-6 : f32
    %79 = vector.broadcast %cst_53 : f32 to vector<8x1xf32>
    %80 = arith.addf %76, %79 : vector<8x1xf32>
    %81 = math.rsqrt %80 : vector<8x1xf32>
    %82 = vector.broadcast %81 : vector<8x1xf32> to vector<8x128xf32>
    %83 = arith.mulf %78, %82 : vector<8x128xf32>
    %84 = vector.broadcast %64 : vector<1x128xf32> to vector<8x128xf32>
    %85 = arith.mulf %83, %84 : vector<8x128xf32>
    %86 = vector.broadcast %65 : vector<1x128xf32> to vector<8x128xf32>
    %87 = arith.addf %85, %86 : vector<8x128xf32>
    %88 = vector.broadcast %1 : f32 to vector<8x128xf32>
    %89 = arith.mulf %87, %88 : vector<8x128xf32>
    %c0_54 = arith.constant 0 : index
    %c0_55 = arith.constant 0 : index
    %90 = vector.load %arg24[%c0_54, %c0_55] : memref<8x128xf32, #tpu.memory_space<vmem>>, vector<8x128xf32>
    tpu.vector_store %arg24[%c0_54, %c0_55], %89 {strides = array<i32>} : memref<8x128xf32, #tpu.memory_space<vmem>>, vector<8x128xf32>,
    %c0_56 = arith.constant 0 : index
    %c0_57 = arith.constant 0 : index
    %91 = vector.load %arg4[%c0_56, %c0_57] : memref<8x128xf32, #tpu.memory_space<vmem>>, vector<8x128xf32>
    %92 = arith.truncf %91 : vector<8x128xf32> to vector<8x128xbf16>
    %c0_58 = arith.constant 0 : index
    %c0_59 = arith.constant 0 : index
    %93 = vector.load %arg17[%c0_58, %c0_59] : memref<128x128xbf16, #tpu.memory_space<vmem>>, vector<128x128xbf16>
    %cst_60 = arith.constant dense<0.000000e+00> : vector<8x128xf32>
    %94 = tpu.matmul %92, %93, %cst_60 {dimension_numbers = #tpu.dot_dimension_numbers<[1], [0], [0], [1], [0, 0, 1, 1], [], []>} : vector<8x128xbf16>, vector<128x128xbf16>, vector<8x128xf32> -> vector<8x128xf32>
    %c0_61 = arith.constant 0 : index
    %c0_62 = arith.constant 0 : index
    %95 = vector.load %arg18[%c0_61, %c0_62] : memref<1x128xf32, #tpu.memory_space<vmem>>, vector<1x128xf32>
    %96 = vector.broadcast %95 : vector<1x128xf32> to vector<8x128xf32>
    %97 = arith.addf %94, %96 : vector<8x128xf32>
    %c0_63 = arith.constant 0 : index
    %c0_64 = arith.constant 0 : index
    %98 = vector.load %arg21[%c0_63, %c0_64] : memref<1x128xf32, #tpu.memory_space<vmem>>, vector<1x128xf32>
    %c0_65 = arith.constant 0 : index
    %c0_66 = arith.constant 0 : index
    %99 = vector.load %arg22[%c0_65, %c0_66] : memref<1x128xf32, #tpu.memory_space<vmem>>, vector<1x128xf32>
    %cst_67 = arith.constant dense<0.000000e+00> : vector<8xf32>
    %100 = vector.multi_reduction <add>, %97, %cst_67 [1] : vector<8x128xf32> to vector<8xf32>
    %101 = vector.shape_cast %100 : vector<8xf32> to vector<8x1xf32>
    %cst_68 = arith.constant 1.280000e+02 : f32
    %102 = vector.broadcast %cst_68 : f32 to vector<8x1xf32>
    %103 = arith.divf %101, %102 : vector<8x1xf32>
    %104 = vector.broadcast %103 : vector<8x1xf32> to vector<8x128xf32>
    %105 = arith.subf %97, %104 : vector<8x128xf32>
    %106 = arith.mulf %105, %105 : vector<8x128xf32>
    %cst_69 = arith.constant dense<0.000000e+00> : vector<8xf32>
    %107 = vector.multi_reduction <add>, %106, %cst_69 [1] : vector<8x128xf32> to vector<8xf32>
    %108 = vector.shape_cast %107 : vector<8xf32> to vector<8x1xf32>
    %cst_70 = arith.constant 1.280000e+02 : f32
    %109 = vector.broadcast %cst_70 : f32 to vector<8x1xf32>
    %110 = arith.divf %108, %109 : vector<8x1xf32>
    %111 = vector.broadcast %103 : vector<8x1xf32> to vector<8x128xf32>
    %112 = arith.subf %97, %111 : vector<8x128xf32>
    %cst_71 = arith.constant 9.99999974E-6 : f32
    %113 = vector.broadcast %cst_71 : f32 to vector<8x1xf32>
    %114 = arith.addf %110, %113 : vector<8x1xf32>
    %115 = math.rsqrt %114 : vector<8x1xf32>
    %116 = vector.broadcast %115 : vector<8x1xf32> to vector<8x128xf32>
    %117 = arith.mulf %112, %116 : vector<8x128xf32>
    %118 = vector.broadcast %98 : vector<1x128xf32> to vector<8x128xf32>
    %119 = arith.mulf %117, %118 : vector<8x128xf32>
    %120 = vector.broadcast %99 : vector<1x128xf32> to vector<8x128xf32>
    %121 = arith.addf %119, %120 : vector<8x128xf32>
    %122 = vector.broadcast %1 : f32 to vector<8x128xf32>
    %123 = arith.mulf %121, %122 : vector<8x128xf32>
    %c0_72 = arith.constant 0 : index
    %c0_73 = arith.constant 0 : index
    %124 = vector.load %arg23[%c0_72, %c0_73] : memref<8x128xf32, #tpu.memory_space<vmem>>, vector<8x128xf32>
    tpu.vector_store %arg23[%c0_72, %c0_73], %123 {strides = array<i32>} : memref<8x128xf32, #tpu.memory_space<vmem>>, vector<8x128xf32>,
    return
  }
  func.func @transform_0(%arg0: i32) -> (i32, i32) {
    %c0_i32 = arith.constant 0 : i32
    %c0_i32_0 = arith.constant 0 : i32
    %c0_i32_1 = arith.constant 0 : i32
    return %c0_i32, %c0_i32_0 : i32, i32
  }
  func.func @transform_1(%arg0: i32) -> (i32, i32, i32) {
    %c0_i32 = arith.constant 0 : i32
    %c0_i32_0 = arith.constant 0 : i32
    %c0_i32_1 = arith.constant 0 : i32
    return %arg0, %c0_i32, %c0_i32_0 : i32, i32, i32
  }
  func.func @transform_2(%arg0: i32) -> (i32, i32, i32) {
    %c0_i32 = arith.constant 0 : i32
    %c0_i32_0 = arith.constant 0 : i32
    %c0_i32_1 = arith.constant 0 : i32
    return %arg0, %c0_i32, %c0_i32_0 : i32, i32, i32
  }
  func.func @transform_3(%arg0: i32) -> (i32, i32) {
    %c0_i32 = arith.constant 0 : i32
    %c0_i32_0 = arith.constant 0 : i32
    return %arg0, %c0_i32 : i32, i32
  }
  func.func @transform_4(%arg0: i32) -> (i32, i32) {
    %c0_i32 = arith.constant 0 : i32
    %c0_i32_0 = arith.constant 0 : i32
    %c0_i32_1 = arith.constant 0 : i32
    return %c0_i32, %c0_i32_0 : i32, i32
  }
  func.func @transform_5(%arg0: i32) -> (i32, i32) {
    %c0_i32 = arith.constant 0 : i32
    %c0_i32_0 = arith.constant 0 : i32
    %c0_i32_1 = arith.constant 0 : i32
    return %c0_i32, %c0_i32_0 : i32, i32
  }
  func.func @transform_6(%arg0: i32) -> (i32, i32) {
    %c0_i32 = arith.constant 0 : i32
    %c0_i32_0 = arith.constant 0 : i32
    %c0_i32_1 = arith.constant 0 : i32
    return %c0_i32, %c0_i32_0 : i32, i32
  }
  func.func @transform_7(%arg0: i32) -> (i32, i32) {
    %c0_i32 = arith.constant 0 : i32
    %c0_i32_0 = arith.constant 0 : i32
    %c0_i32_1 = arith.constant 0 : i32
    return %c0_i32, %c0_i32_0 : i32, i32
  }
  func.func @transform_8(%arg0: i32) -> (i32, i32) {
    %c0_i32 = arith.constant 0 : i32
    %c0_i32_0 = arith.constant 0 : i32
    %c0_i32_1 = arith.constant 0 : i32
    return %c0_i32, %c0_i32_0 : i32, i32
  }
  func.func @transform_9(%arg0: i32) -> (i32, i32) {
    %c0_i32 = arith.constant 0 : i32
    %c0_i32_0 = arith.constant 0 : i32
    %c0_i32_1 = arith.constant 0 : i32
    return %c0_i32, %c0_i32_0 : i32, i32
  }
  func.func @transform_10(%arg0: i32) -> (i32, i32) {
    %c0_i32 = arith.constant 0 : i32
    %c0_i32_0 = arith.constant 0 : i32
    %c0_i32_1 = arith.constant 0 : i32
    return %c0_i32, %c0_i32_0 : i32, i32
  }
  func.func @transform_11(%arg0: i32) -> (i32, i32) {
    %c0_i32 = arith.constant 0 : i32
    %c0_i32_0 = arith.constant 0 : i32
    %c0_i32_1 = arith.constant 0 : i32
    return %c0_i32, %c0_i32_0 : i32, i32
  }
  func.func @transform_12(%arg0: i32) -> (i32, i32) {
    %c0_i32 = arith.constant 0 : i32
    %c0_i32_0 = arith.constant 0 : i32
    %c0_i32_1 = arith.constant 0 : i32
    return %c0_i32, %c0_i32_0 : i32, i32
  }
  func.func @transform_13(%arg0: i32) -> (i32, i32) {
    %c0_i32 = arith.constant 0 : i32
    %c0_i32_0 = arith.constant 0 : i32
    %c0_i32_1 = arith.constant 0 : i32
    return %c0_i32, %c0_i32_0 : i32, i32
  }
  func.func @transform_14(%arg0: i32) -> (i32, i32) {
    %c0_i32 = arith.constant 0 : i32
    %c0_i32_0 = arith.constant 0 : i32
    %c0_i32_1 = arith.constant 0 : i32
    return %c0_i32, %c0_i32_0 : i32, i32
  }
  func.func @transform_15(%arg0: i32) -> (i32, i32) {
    %c0_i32 = arith.constant 0 : i32
    %c0_i32_0 = arith.constant 0 : i32
    %c0_i32_1 = arith.constant 0 : i32
    return %c0_i32, %c0_i32_0 : i32, i32
  }
  func.func @transform_16(%arg0: i32) -> (i32, i32) {
    %c0_i32 = arith.constant 0 : i32
    %c0_i32_0 = arith.constant 0 : i32
    %c0_i32_1 = arith.constant 0 : i32
    return %c0_i32, %c0_i32_0 : i32, i32
  }
  func.func @transform_17(%arg0: i32) -> (i32, i32) {
    %c0_i32 = arith.constant 0 : i32
    %c0_i32_0 = arith.constant 0 : i32
    %c0_i32_1 = arith.constant 0 : i32
    return %c0_i32, %c0_i32_0 : i32, i32
  }
  func.func @transform_18(%arg0: i32) -> (i32, i32) {
    %c0_i32 = arith.constant 0 : i32
    %c0_i32_0 = arith.constant 0 : i32
    %c0_i32_1 = arith.constant 0 : i32
    return %c0_i32, %c0_i32_0 : i32, i32
  }
  func.func @transform_19(%arg0: i32) -> (i32, i32) {
    %c0_i32 = arith.constant 0 : i32
    %c0_i32_0 = arith.constant 0 : i32
    %c0_i32_1 = arith.constant 0 : i32
    return %c0_i32, %c0_i32_0 : i32, i32
  }
  func.func @transform_20(%arg0: i32) -> (i32, i32) {
    %c0_i32 = arith.constant 0 : i32
    %c0_i32_0 = arith.constant 0 : i32
    %c0_i32_1 = arith.constant 0 : i32
    return %c0_i32, %c0_i32_0 : i32, i32
  }
  func.func @transform_21(%arg0: i32) -> (i32, i32) {
    %c0_i32 = arith.constant 0 : i32
    %c0_i32_0 = arith.constant 0 : i32
    %c0_i32_1 = arith.constant 0 : i32
    return %c0_i32, %c0_i32_0 : i32, i32
  }
  func.func @transform_22(%arg0: i32) -> (i32, i32) {
    %c0_i32 = arith.constant 0 : i32
    %c0_i32_0 = arith.constant 0 : i32
    return %arg0, %c0_i32 : i32, i32
  }
  func.func @transform_23(%arg0: i32) -> (i32, i32) {
    %c0_i32 = arith.constant 0 : i32
    %c0_i32_0 = arith.constant 0 : i32
    return %arg0, %c0_i32 : i32, i32
  }
}

</mosaic_0001>

<llo_original>
// kernel: gcn_forward.1
$region0: #{gcn_forward.1}
  #allocation0 [shape = 'u32[]', space=smem, size = 0x4, offset = 0x4, fixed_abs, tag = 'smem constant byte address 0x4 - core index']
  #allocation1 [shape = 'u32[144,128]{1,0:T(1,128)}', space=vmem, size = 0x12000, scoped, tag = 'internal scratch']
  #allocation2 [shape = 'f32[1,1]{1,0:T(1,128)S(6)}', space=smem, size = 0x200, scoped, tag = 'scoped memory for gcn_forward.1']
  %s0 = inlined_call_operand.<no memory space> [shape: f32[1,1], index: 0, kind: input, shape index: {}]
  %s1 = inlined_call_operand.vmem [shape: bf16[16,32,32], index: 1, kind: input, shape index: {}]
  %s2 = inlined_call_operand.vmem [shape: bf16[16,32,128], index: 2, kind: input, shape index: {}]
  %s3 = inlined_call_operand.vmem [shape: f32[16,128], index: 3, kind: input, shape index: {}]
  %s4 = inlined_call_operand.vmem [shape: bf16[128,128], index: 4, kind: input, shape index: {}]
  %s5 = inlined_call_operand.vmem [shape: f32[1,128], index: 5, kind: input, shape index: {}]
  %s6 = inlined_call_operand.vmem [shape: bf16[128,128], index: 6, kind: input, shape index: {}]
  %s7 = inlined_call_operand.vmem [shape: f32[1,128], index: 7, kind: input, shape index: {}]
  %s8 = inlined_call_operand.vmem [shape: bf16[128,128], index: 8, kind: input, shape index: {}]
  %s9 = inlined_call_operand.vmem [shape: f32[1,128], index: 9, kind: input, shape index: {}]
  %s10 = inlined_call_operand.vmem [shape: bf16[128,128], index: 10, kind: input, shape index: {}]
  %s11 = inlined_call_operand.vmem [shape: f32[1,128], index: 11, kind: input, shape index: {}]
  %s12 = inlined_call_operand.vmem [shape: bf16[128,128], index: 12, kind: input, shape index: {}]
  %s13 = inlined_call_operand.vmem [shape: f32[1,128], index: 13, kind: input, shape index: {}]
  %s14 = inlined_call_operand.vmem [shape: bf16[128,128], index: 14, kind: input, shape index: {}]
  %s15 = inlined_call_operand.vmem [shape: f32[1,128], index: 15, kind: input, shape index: {}]
  %s16 = inlined_call_operand.vmem [shape: bf16[128,128], index: 16, kind: input, shape index: {}]
  %s17 = inlined_call_operand.vmem [shape: f32[1,128], index: 17, kind: input, shape index: {}]
  %s18 = inlined_call_operand.vmem [shape: f32[1,128], index: 18, kind: input, shape index: {}]
  %s19 = inlined_call_operand.vmem [shape: f32[1,128], index: 19, kind: input, shape index: {}]
  %s20 = inlined_call_operand.vmem [shape: f32[1,128], index: 20, kind: input, shape index: {}]
  %s21 = inlined_call_operand.vmem [shape: f32[1,128], index: 21, kind: input, shape index: {}]
  %s22 = inlined_call_operand.hbm [shape: f32[16,128], index: 22, kind: output, shape index: {0}]
  %s23 = inlined_call_operand.hbm [shape: f32[16,128], index: 23, kind: output, shape index: {1}]
  %24 = xla_tuple %s22, %s23
  %s25 = sld [smem:[#allocation0]]
  $region129: #{gcn_forward.1} parent=0
    _
  %s27 = ssub.s32 1, %s25
  %s28 = scalar_select 0, %s27, %s25
  %29 = sst [smem:[#allocation2]] %s0
  $region1: #{gcn_forward.1} parent=0
    #allocation3 [shape = 'u8[8192]{0}', space=vmem, size = 0x2000, scoped, tag = 'output window, operand 0']
    #allocation4 [shape = 's32[2]{0}', space=sflag, size = 0x8, scoped, tag = 'scoped memory for gcn_forward.1']
    #allocation5 [shape = 'u8[8192]{0}', space=vmem, size = 0x2000, scoped, tag = 'output window, operand 1']
    #allocation6 [shape = 's32[2]{0}', space=sflag, size = 0x8, scoped, tag = 'scoped memory for gcn_forward.1']
    %30 = vsyncpa [#allocation4], 0
    %s31 = scalar_lea.sflag [#allocation4], 1
    %32 = vsyncpa %s31, 0
    %33 = vsyncpa [#allocation6], 0
    %s34 = scalar_lea.sflag [#allocation6], 1
    %35 = vsyncpa %s34, 0
    loop: start=0, step=1, limit=4
    $region2: #{gcn_forward.1} parent=1 // loop_pre_header
      _
    $region3: #{gcn_forward.1} parent=1 // loop_header
      %s37 = sphi 0, %s41
      %p38 = scmp.ge.s32.totalorder %s37, 4
      %s45 = sphi 0, %s45
      %s47 = sphi 0, %s45
      %s48 = sphi 0, %s47
      %s62 = sphi 0, %s48
      %s68 = sphi 0, %s70
      %s71 = sphi 0, %s68
      %s72 = sphi 0, %s71
      %s88 = sphi 0, %s72
      %s94 = sphi 0, %s96
      %s97 = sphi 0, %s94
      %s98 = sphi 0, %s97
      %s114 = sphi 0, %s98
      %s120 = sphi 0, %s122
      %s123 = sphi 0, %s120
      %s124 = sphi 0, %s123
      %s140 = sphi 0, %s124
      %s144 = sphi 0, %s144
      %s146 = sphi 0, %s144
      %s147 = sphi 0, %s146
      %s161 = sphi 0, %s147
      %s165 = sphi 0, %s165
      %s167 = sphi 0, %s165
      %s168 = sphi 0, %s167
      %s182 = sphi 0, %s168
      %s186 = sphi 0, %s186
      %s188 = sphi 0, %s186
      %s189 = sphi 0, %s188
      %s203 = sphi 0, %s189
      %s207 = sphi 0, %s207
      %s209 = sphi 0, %s207
      %s210 = sphi 0, %s209
      %s224 = sphi 0, %s210
      %s228 = sphi 0, %s228
      %s230 = sphi 0, %s228
      %s231 = sphi 0, %s230
      %s245 = sphi 0, %s231
      %s249 = sphi 0, %s249
      %s251 = sphi 0, %s249
      %s252 = sphi 0, %s251
      %s266 = sphi 0, %s252
      %s270 = sphi 0, %s270
      %s272 = sphi 0, %s270
      %s273 = sphi 0, %s272
      %s287 = sphi 0, %s273
      %s291 = sphi 0, %s291
      %s293 = sphi 0, %s291
      %s294 = sphi 0, %s293
      %s308 = sphi 0, %s294
      %s312 = sphi 0, %s312
      %s314 = sphi 0, %s312
      %s315 = sphi 0, %s314
      %s329 = sphi 0, %s315
      %s333 = sphi 0, %s333
      %s335 = sphi 0, %s333
      %s336 = sphi 0, %s335
      %s350 = sphi 0, %s336
      %s354 = sphi 0, %s354
      %s356 = sphi 0, %s354
      %s357 = sphi 0, %s356
      %s371 = sphi 0, %s357
      %s375 = sphi 0, %s375
      %s377 = sphi 0, %s375
      %s378 = sphi 0, %s377
      %s392 = sphi 0, %s378
      %s396 = sphi 0, %s396
      %s398 = sphi 0, %s396
      %s399 = sphi 0, %s398
      %s413 = sphi 0, %s399
      %s417 = sphi 0, %s417
      %s419 = sphi 0, %s417
      %s420 = sphi 0, %s419
      %s434 = sphi 0, %s420
      %s438 = sphi 0, %s438
      %s440 = sphi 0, %s438
      %s441 = sphi 0, %s440
      %s455 = sphi 0, %s441
      %s459 = sphi 0, %s459
      %s461 = sphi 0, %s459
      %s462 = sphi 0, %s461
      %s476 = sphi 0, %s462
      %s480 = sphi 0, %s480
      %s482 = sphi 0, %s480
      %s483 = sphi 0, %s482
      %s497 = sphi 0, %s483
      %s501 = sphi 0, %s501
      %s503 = sphi 0, %s501
      %s504 = sphi 0, %s503
      %s518 = sphi 0, %s504
      %s524 = sphi 0, %s526
      %s527 = sphi 0, %s524
      %s528 = sphi 0, %s527
      %s544 = sphi 0, %s528
      %s550 = sphi 0, %s552
      %s553 = sphi 0, %s550
      %s554 = sphi 0, %s553
      %s570 = sphi 0, %s554
    $region4: #{gcn_forward.1} parent=1 // loop_header_branch
      %40 = sbr.rel (%p38) target = $region8
    $region5: #{gcn_forward.1} parent=1 // loop_body
      %s42 = ssub.s32 %s37, 1
      %s43 = ssub.s32 %s37, 2
      %s44 = sadd.s32 %s37, 1
      %s46 = sadd.s32 %s45, 1
      %p49 = scmp.eq.s32.totalorder %s37, 1
      %p50 = scmp.ne.s32.totalorder %s45, %s47
      %p51 = scmp.eq.s32.totalorder %s37, 0
      %p52 = por %p50, %p51
      %p53 = scmp.ne.s32.totalorder %s45, %s47
      %p54 = scmp.eq.s32.totalorder %s42, 1
      %p55 = por %p53, %p54
      %p56 = scmp.ne.s32.totalorder %s47, %s48
      %p57 = scmp.eq.s32.totalorder %s42, 0
      %p58 = por %p56, %p57
      %p59 = scmp.ne.s32.totalorder %s47, %s48
      %p60 = scmp.eq.s32.totalorder %s43, 1
      %p61 = por %p59, %p60
      %p63 = scmp.ne.s32.totalorder %s48, %s62
      %p64 = scmp.eq.s32.totalorder %s43, 0
      %p65 = por %p63, %p64
      %s66 = ssub.s32 %s37, %s44
      %p67 = scmp.eq.s32.totalorder %s66, 0
      %s69 = sadd.s32 %s68, 1
      %s70 = scalar_select %p67, %s68, %s69
      %p73 = pneg %p67
      %p74 = scmp.eq.s32.totalorder %s37, 1
      %p75 = por %p73, %p74
      %p76 = scmp.ne.s32.totalorder %s68, %s71
      %p77 = scmp.eq.s32.totalorder %s37, 0
      %p78 = por %p76, %p77
      %p79 = scmp.ne.s32.totalorder %s68, %s71
      %p80 = scmp.eq.s32.totalorder %s42, 1
      %p81 = por %p79, %p80
      %p82 = scmp.ne.s32.totalorder %s71, %s72
      %p83 = scmp.eq.s32.totalorder %s42, 0
      %p84 = por %p82, %p83
      %p85 = scmp.ne.s32.totalorder %s71, %s72
      %p86 = scmp.eq.s32.totalorder %s43, 1
      %p87 = por %p85, %p86
      %p89 = scmp.ne.s32.totalorder %s72, %s88
      %p90 = scmp.eq.s32.totalorder %s43, 0
      %p91 = por %p89, %p90
      %s92 = ssub.s32 %s37, %s44
      %p93 = scmp.eq.s32.totalorder %s92, 0
      %s95 = sadd.s32 %s94, 1
      %s96 = scalar_select %p93, %s94, %s95
      %p99 = pneg %p93
      %p100 = scmp.eq.s32.totalorder %s37, 1
      %p101 = por %p99, %p100
      %p102 = scmp.ne.s32.totalorder %s94, %s97
      %p103 = scmp.eq.s32.totalorder %s37, 0
      %p104 = por %p102, %p103
      %p105 = scmp.ne.s32.totalorder %s94, %s97
      %p106 = scmp.eq.s32.totalorder %s42, 1
      %p107 = por %p105, %p106
      %p108 = scmp.ne.s32.totalorder %s97, %s98
      %p109 = scmp.eq.s32.totalorder %s42, 0
      %p110 = por %p108, %p109
      %p111 = scmp.ne.s32.totalorder %s97, %s98
      %p112 = scmp.eq.s32.totalorder %s43, 1
      %p113 = por %p111, %p112
      %p115 = scmp.ne.s32.totalorder %s98, %s114
      %p116 = scmp.eq.s32.totalorder %s43, 0
      %p117 = por %p115, %p116
      %s118 = ssub.s32 %s37, %s44
      %p119 = scmp.eq.s32.totalorder %s118, 0
      %s121 = sadd.s32 %s120, 1
      %s122 = scalar_select %p119, %s120, %s121
      %p125 = pneg %p119
      %p126 = scmp.eq.s32.totalorder %s37, 1
      %p127 = por %p125, %p126
      %p128 = scmp.ne.s32.totalorder %s120, %s123
      %p129 = scmp.eq.s32.totalorder %s37, 0
      %p130 = por %p128, %p129
      %p131 = scmp.ne.s32.totalorder %s120, %s123
      %p132 = scmp.eq.s32.totalorder %s42, 1
      %p133 = por %p131, %p132
      %p134 = scmp.ne.s32.totalorder %s123, %s124
      %p135 = scmp.eq.s32.totalorder %s42, 0
      %p136 = por %p134, %p135
      %p137 = scmp.ne.s32.totalorder %s123, %s124
      %p138 = scmp.eq.s32.totalorder %s43, 1
      %p139 = por %p137, %p138
      %p141 = scmp.ne.s32.totalorder %s124, %s140
      %p142 = scmp.eq.s32.totalorder %s43, 0
      %p143 = por %p141, %p142
      %s145 = sadd.s32 %s144, 1
      %p148 = scmp.eq.s32.totalorder %s37, 1
      %p149 = scmp.ne.s32.totalorder %s144, %s146
      %p150 = scmp.eq.s32.totalorder %s37, 0
      %p151 = por %p149, %p150
      %p152 = scmp.ne.s32.totalorder %s144, %s146
      %p153 = scmp.eq.s32.totalorder %s42, 1
      %p154 = por %p152, %p153
      %p155 = scmp.ne.s32.totalorder %s146, %s147
      %p156 = scmp.eq.s32.totalorder %s42, 0
      %p157 = por %p155, %p156
      %p158 = scmp.ne.s32.totalorder %s146, %s147
      %p159 = scmp.eq.s32.totalorder %s43, 1
      %p160 = por %p158, %p159
      %p162 = scmp.ne.s32.totalorder %s147, %s161
      %p163 = scmp.eq.s32.totalorder %s43, 0
      %p164 = por %p162, %p163
      %s166 = sadd.s32 %s165, 1
      %p169 = scmp.eq.s32.totalorder %s37, 1
      %p170 = scmp.ne.s32.totalorder %s165, %s167
      %p171 = scmp.eq.s32.totalorder %s37, 0
      %p172 = por %p170, %p171
      %p173 = scmp.ne.s32.totalorder %s165, %s167
      %p174 = scmp.eq.s32.totalorder %s42, 1
      %p175 = por %p173, %p174
      %p176 = scmp.ne.s32.totalorder %s167, %s168
      %p177 = scmp.eq.s32.totalorder %s42, 0
      %p178 = por %p176, %p177
      %p179 = scmp.ne.s32.totalorder %s167, %s168
      %p180 = scmp.eq.s32.totalorder %s43, 1
      %p181 = por %p179, %p180
      %p183 = scmp.ne.s32.totalorder %s168, %s182
      %p184 = scmp.eq.s32.totalorder %s43, 0
      %p185 = por %p183, %p184
      %s187 = sadd.s32 %s186, 1
      %p190 = scmp.eq.s32.totalorder %s37, 1
      %p191 = scmp.ne.s32.totalorder %s186, %s188
      %p192 = scmp.eq.s32.totalorder %s37, 0
      %p193 = por %p191, %p192
      %p194 = scmp.ne.s32.totalorder %s186, %s188
      %p195 = scmp.eq.s32.totalorder %s42, 1
      %p196 = por %p194, %p195
      %p197 = scmp.ne.s32.totalorder %s188, %s189
      %p198 = scmp.eq.s32.totalorder %s42, 0
      %p199 = por %p197, %p198
      %p200 = scmp.ne.s32.totalorder %s188, %s189
      %p201 = scmp.eq.s32.totalorder %s43, 1
      %p202 = por %p200, %p201
      %p204 = scmp.ne.s32.totalorder %s189, %s203
      %p205 = scmp.eq.s32.totalorder %s43, 0
      %p206 = por %p204, %p205
      %s208 = sadd.s32 %s207, 1
      %p211 = scmp.eq.s32.totalorder %s37, 1
      %p212 = scmp.ne.s32.totalorder %s207, %s209
      %p213 = scmp.eq.s32.totalorder %s37, 0
      %p214 = por %p212, %p213
      %p215 = scmp.ne.s32.totalorder %s207, %s209
      %p216 = scmp.eq.s32.totalorder %s42, 1
      %p217 = por %p215, %p216
      %p218 = scmp.ne.s32.totalorder %s209, %s210
      %p219 = scmp.eq.s32.totalorder %s42, 0
      %p220 = por %p218, %p219
      %p221 = scmp.ne.s32.totalorder %s209, %s210
      %p222 = scmp.eq.s32.totalorder %s43, 1
      %p223 = por %p221, %p222
      %p225 = scmp.ne.s32.totalorder %s210, %s224
      %p226 = scmp.eq.s32.totalorder %s43, 0
      %p227 = por %p225, %p226
      %s229 = sadd.s32 %s228, 1
      %p232 = scmp.eq.s32.totalorder %s37, 1
      %p233 = scmp.ne.s32.totalorder %s228, %s230
      %p234 = scmp.eq.s32.totalorder %s37, 0
      %p235 = por %p233, %p234
      %p236 = scmp.ne.s32.totalorder %s228, %s230
      %p237 = scmp.eq.s32.totalorder %s42, 1
      %p238 = por %p236, %p237
      %p239 = scmp.ne.s32.totalorder %s230, %s231
      %p240 = scmp.eq.s32.totalorder %s42, 0
      %p241 = por %p239, %p240
      %p242 = scmp.ne.s32.totalorder %s230, %s231
      %p243 = scmp.eq.s32.totalorder %s43, 1
      %p244 = por %p242, %p243
      %p246 = scmp.ne.s32.totalorder %s231, %s245
      %p247 = scmp.eq.s32.totalorder %s43, 0
      %p248 = por %p246, %p247
      %s250 = sadd.s32 %s249, 1
      %p253 = scmp.eq.s32.totalorder %s37, 1
      %p254 = scmp.ne.s32.totalorder %s249, %s251
      %p255 = scmp.eq.s32.totalorder %s37, 0
      %p256 = por %p254, %p255
      %p257 = scmp.ne.s32.totalorder %s249, %s251
      %p258 = scmp.eq.s32.totalorder %s42, 1
      %p259 = por %p257, %p258
      %p260 = scmp.ne.s32.totalorder %s251, %s252
      %p261 = scmp.eq.s32.totalorder %s42, 0
      %p262 = por %p260, %p261
      %p263 = scmp.ne.s32.totalorder %s251, %s252
      %p264 = scmp.eq.s32.totalorder %s43, 1
      %p265 = por %p263, %p264
      %p267 = scmp.ne.s32.totalorder %s252, %s266
      %p268 = scmp.eq.s32.totalorder %s43, 0
      %p269 = por %p267, %p268
      %s271 = sadd.s32 %s270, 1
      %p274 = scmp.eq.s32.totalorder %s37, 1
      %p275 = scmp.ne.s32.totalorder %s270, %s272
      %p276 = scmp.eq.s32.totalorder %s37, 0
      %p277 = por %p275, %p276
      %p278 = scmp.ne.s32.totalorder %s270, %s272
      %p279 = scmp.eq.s32.totalorder %s42, 1
      %p280 = por %p278, %p279
      %p281 = scmp.ne.s32.totalorder %s272, %s273
      %p282 = scmp.eq.s32.totalorder %s42, 0
      %p283 = por %p281, %p282
      %p284 = scmp.ne.s32.totalorder %s272, %s273
      %p285 = scmp.eq.s32.totalorder %s43, 1
      %p286 = por %p284, %p285
      %p288 = scmp.ne.s32.totalorder %s273, %s287
      %p289 = scmp.eq.s32.totalorder %s43, 0
      %p290 = por %p288, %p289
      %s292 = sadd.s32 %s291, 1
      %p295 = scmp.eq.s32.totalorder %s37, 1
      %p296 = scmp.ne.s32.totalorder %s291, %s293
      %p297 = scmp.eq.s32.totalorder %s37, 0
      %p298 = por %p296, %p297
      %p299 = scmp.ne.s32.totalorder %s291, %s293
      %p300 = scmp.eq.s32.totalorder %s42, 1
      %p301 = por %p299, %p300
      %p302 = scmp.ne.s32.totalorder %s293, %s294
      %p303 = scmp.eq.s32.totalorder %s42, 0
      %p304 = por %p302, %p303
      %p305 = scmp.ne.s32.totalorder %s293, %s294
      %p306 = scmp.eq.s32.totalorder %s43, 1
      %p307 = por %p305, %p306
      %p309 = scmp.ne.s32.totalorder %s294, %s308
      %p310 = scmp.eq.s32.totalorder %s43, 0
      %p311 = por %p309, %p310
      %s313 = sadd.s32 %s312, 1
      %p316 = scmp.eq.s32.totalorder %s37, 1
      %p317 = scmp.ne.s32.totalorder %s312, %s314
      %p318 = scmp.eq.s32.totalorder %s37, 0
      %p319 = por %p317, %p318
      %p320 = scmp.ne.s32.totalorder %s312, %s314
      %p321 = scmp.eq.s32.totalorder %s42, 1
      %p322 = por %p320, %p321
      %p323 = scmp.ne.s32.totalorder %s314, %s315
      %p324 = scmp.eq.s32.totalorder %s42, 0
      %p325 = por %p323, %p324
      %p326 = scmp.ne.s32.totalorder %s314, %s315
      %p327 = scmp.eq.s32.totalorder %s43, 1
      %p328 = por %p326, %p327
      %p330 = scmp.ne.s32.totalorder %s315, %s329
      %p331 = scmp.eq.s32.totalorder %s43, 0
      %p332 = por %p330, %p331
      %s334 = sadd.s32 %s333, 1
      %p337 = scmp.eq.s32.totalorder %s37, 1
      %p338 = scmp.ne.s32.totalorder %s333, %s335
      %p339 = scmp.eq.s32.totalorder %s37, 0
      %p340 = por %p338, %p339
      %p341 = scmp.ne.s32.totalorder %s333, %s335
      %p342 = scmp.eq.s32.totalorder %s42, 1
      %p343 = por %p341, %p342
      %p344 = scmp.ne.s32.totalorder %s335, %s336
      %p345 = scmp.eq.s32.totalorder %s42, 0
      %p346 = por %p344, %p345
      %p347 = scmp.ne.s32.totalorder %s335, %s336
      %p348 = scmp.eq.s32.totalorder %s43, 1
      %p349 = por %p347, %p348
      %p351 = scmp.ne.s32.totalorder %s336, %s350
      %p352 = scmp.eq.s32.totalorder %s43, 0
      %p353 = por %p351, %p352
      %s355 = sadd.s32 %s354, 1
      %p358 = scmp.eq.s32.totalorder %s37, 1
      %p359 = scmp.ne.s32.totalorder %s354, %s356
      %p360 = scmp.eq.s32.totalorder %s37, 0
      %p361 = por %p359, %p360
      %p362 = scmp.ne.s32.totalorder %s354, %s356
      %p363 = scmp.eq.s32.totalorder %s42, 1
      %p364 = por %p362, %p363
      %p365 = scmp.ne.s32.totalorder %s356, %s357
      %p366 = scmp.eq.s32.totalorder %s42, 0
      %p367 = por %p365, %p366
      %p368 = scmp.ne.s32.totalorder %s356, %s357
      %p369 = scmp.eq.s32.totalorder %s43, 1
      %p370 = por %p368, %p369
      %p372 = scmp.ne.s32.totalorder %s357, %s371
      %p373 = scmp.eq.s32.totalorder %s43, 0
      %p374 = por %p372, %p373
      %s376 = sadd.s32 %s375, 1
      %p379 = scmp.eq.s32.totalorder %s37, 1
      %p380 = scmp.ne.s32.totalorder %s375, %s377
      %p381 = scmp.eq.s32.totalorder %s37, 0
      %p382 = por %p380, %p381
      %p383 = scmp.ne.s32.totalorder %s375, %s377
      %p384 = scmp.eq.s32.totalorder %s42, 1
      %p385 = por %p383, %p384
      %p386 = scmp.ne.s32.totalorder %s377, %s378
      %p387 = scmp.eq.s32.totalorder %s42, 0
      %p388 = por %p386, %p387
      %p389 = scmp.ne.s32.totalorder %s377, %s378
      %p390 = scmp.eq.s32.totalorder %s43, 1
      %p391 = por %p389, %p390
      %p393 = scmp.ne.s32.totalorder %s378, %s392
      %p394 = scmp.eq.s32.totalorder %s43, 0
      %p395 = por %p393, %p394
      %s397 = sadd.s32 %s396, 1
      %p400 = scmp.eq.s32.totalorder %s37, 1
      %p401 = scmp.ne.s32.totalorder %s396, %s398
      %p402 = scmp.eq.s32.totalorder %s37, 0
      %p403 = por %p401, %p402
      %p404 = scmp.ne.s32.totalorder %s396, %s398
      %p405 = scmp.eq.s32.totalorder %s42, 1
      %p406 = por %p404, %p405
      %p407 = scmp.ne.s32.totalorder %s398, %s399
      %p408 = scmp.eq.s32.totalorder %s42, 0
      %p409 = por %p407, %p408
      %p410 = scmp.ne.s32.totalorder %s398, %s399
      %p411 = scmp.eq.s32.totalorder %s43, 1
      %p412 = por %p410, %p411
      %p414 = scmp.ne.s32.totalorder %s399, %s413
      %p415 = scmp.eq.s32.totalorder %s43, 0
      %p416 = por %p414, %p415
      %s418 = sadd.s32 %s417, 1
      %p421 = scmp.eq.s32.totalorder %s37, 1
      %p422 = scmp.ne.s32.totalorder %s417, %s419
      %p423 = scmp.eq.s32.totalorder %s37, 0
      %p424 = por %p422, %p423
      %p425 = scmp.ne.s32.totalorder %s417, %s419
      %p426 = scmp.eq.s32.totalorder %s42, 1
      %p427 = por %p425, %p426
      %p428 = scmp.ne.s32.totalorder %s419, %s420
      %p429 = scmp.eq.s32.totalorder %s42, 0
      %p430 = por %p428, %p429
      %p431 = scmp.ne.s32.totalorder %s419, %s420
      %p432 = scmp.eq.s32.totalorder %s43, 1
      %p433 = por %p431, %p432
      %p435 = scmp.ne.s32.totalorder %s420, %s434
      %p436 = scmp.eq.s32.totalorder %s43, 0
      %p437 = por %p435, %p436
      %s439 = sadd.s32 %s438, 1
      %p442 = scmp.eq.s32.totalorder %s37, 1
      %p443 = scmp.ne.s32.totalorder %s438, %s440
      %p444 = scmp.eq.s32.totalorder %s37, 0
      %p445 = por %p443, %p444
      %p446 = scmp.ne.s32.totalorder %s438, %s440
      %p447 = scmp.eq.s32.totalorder %s42, 1
      %p448 = por %p446, %p447
      %p449 = scmp.ne.s32.totalorder %s440, %s441
      %p450 = scmp.eq.s32.totalorder %s42, 0
      %p451 = por %p449, %p450
      %p452 = scmp.ne.s32.totalorder %s440, %s441
      %p453 = scmp.eq.s32.totalorder %s43, 1
      %p454 = por %p452, %p453
      %p456 = scmp.ne.s32.totalorder %s441, %s455
      %p457 = scmp.eq.s32.totalorder %s43, 0
      %p458 = por %p456, %p457
      %s460 = sadd.s32 %s459, 1
      %p463 = scmp.eq.s32.totalorder %s37, 1
      %p464 = scmp.ne.s32.totalorder %s459, %s461
      %p465 = scmp.eq.s32.totalorder %s37, 0
      %p466 = por %p464, %p465
      %p467 = scmp.ne.s32.totalorder %s459, %s461
      %p468 = scmp.eq.s32.totalorder %s42, 1
      %p469 = por %p467, %p468
      %p470 = scmp.ne.s32.totalorder %s461, %s462
      %p471 = scmp.eq.s32.totalorder %s42, 0
      %p472 = por %p470, %p471
      %p473 = scmp.ne.s32.totalorder %s461, %s462
      %p474 = scmp.eq.s32.totalorder %s43, 1
      %p475 = por %p473, %p474
      %p477 = scmp.ne.s32.totalorder %s462, %s476
      %p478 = scmp.eq.s32.totalorder %s43, 0
      %p479 = por %p477, %p478
      %s481 = sadd.s32 %s480, 1
      %p484 = scmp.eq.s32.totalorder %s37, 1
      %p485 = scmp.ne.s32.totalorder %s480, %s482
      %p486 = scmp.eq.s32.totalorder %s37, 0
      %p487 = por %p485, %p486
      %p488 = scmp.ne.s32.totalorder %s480, %s482
      %p489 = scmp.eq.s32.totalorder %s42, 1
      %p490 = por %p488, %p489
      %p491 = scmp.ne.s32.totalorder %s482, %s483
      %p492 = scmp.eq.s32.totalorder %s42, 0
      %p493 = por %p491, %p492
      %p494 = scmp.ne.s32.totalorder %s482, %s483
      %p495 = scmp.eq.s32.totalorder %s43, 1
      %p496 = por %p494, %p495
      %p498 = scmp.ne.s32.totalorder %s483, %s497
      %p499 = scmp.eq.s32.totalorder %s43, 0
      %p500 = por %p498, %p499
      %s502 = sadd.s32 %s501, 1
      %p505 = scmp.eq.s32.totalorder %s37, 1
      %p506 = scmp.ne.s32.totalorder %s501, %s503
      %p507 = scmp.eq.s32.totalorder %s37, 0
      %p508 = por %p506, %p507
      %p509 = scmp.ne.s32.totalorder %s501, %s503
      %p510 = scmp.eq.s32.totalorder %s42, 1
      %p511 = por %p509, %p510
      %p512 = scmp.ne.s32.totalorder %s503, %s504
      %p513 = scmp.eq.s32.totalorder %s42, 0
      %p514 = por %p512, %p513
      %p515 = scmp.ne.s32.totalorder %s503, %s504
      %p516 = scmp.eq.s32.totalorder %s43, 1
      %p517 = por %p515, %p516
      %p519 = scmp.ne.s32.totalorder %s504, %s518
      %p520 = scmp.eq.s32.totalorder %s43, 0
      %p521 = por %p519, %p520
      %s522 = ssub.s32 %s37, %s44
      %p523 = scmp.eq.s32.totalorder %s522, 0
      %s525 = sadd.s32 %s524, 1
      %s526 = scalar_select %p523, %s524, %s525
      %p529 = pneg %p523
      %p530 = scmp.eq.s32.totalorder %s37, 1
      %p531 = por %p529, %p530
      %p532 = scmp.ne.s32.totalorder %s524, %s527
      %p533 = scmp.eq.s32.totalorder %s37, 0
      %p534 = por %p532, %p533
      %p535 = scmp.ne.s32.totalorder %s524, %s527
      %p536 = scmp.eq.s32.totalorder %s42, 1
      %p537 = por %p535, %p536
      %p538 = scmp.ne.s32.totalorder %s527, %s528
      %p539 = scmp.eq.s32.totalorder %s42, 0
      %p540 = por %p538, %p539
      %p541 = scmp.ne.s32.totalorder %s527, %s528
      %p542 = scmp.eq.s32.totalorder %s43, 1
      %p543 = por %p541, %p542
      %p545 = scmp.ne.s32.totalorder %s528, %s544
      %p546 = scmp.eq.s32.totalorder %s43, 0
      %p547 = por %p545, %p546
      %s548 = ssub.s32 %s37, %s44
      %p549 = scmp.eq.s32.totalorder %s548, 0
      %s551 = sadd.s32 %s550, 1
      %s552 = scalar_select %p549, %s550, %s551
      %p555 = pneg %p549
      %p556 = scmp.eq.s32.totalorder %s37, 1
      %p557 = por %p555, %p556
      %p558 = scmp.ne.s32.totalorder %s550, %s553
      %p559 = scmp.eq.s32.totalorder %s37, 0
      %p560 = por %p558, %p559
      %p561 = scmp.ne.s32.totalorder %s550, %s553
      %p562 = scmp.eq.s32.totalorder %s42, 1
      %p563 = por %p561, %p562
      %p564 = scmp.ne.s32.totalorder %s553, %s554
      %p565 = scmp.eq.s32.totalorder %s42, 0
      %p566 = por %p564, %p565
      %p567 = scmp.ne.s32.totalorder %s553, %s554
      %p568 = scmp.eq.s32.totalorder %s43, 1
      %p569 = por %p567, %p568
      %p571 = scmp.ne.s32.totalorder %s554, %s570
      %p572 = scmp.eq.s32.totalorder %s43, 0
      %p573 = por %p571, %p572
      %p574 = scmp.le.s32.totalorder 1, %s37
      %p575 = scmp.lt.s32.totalorder %s37, 3
      %p576 = pnand %p574, %p575
      %p577 = pneg %p576
      // Predicated region
      $region9: #{gcn_forward.1} parent=5 // pred_check
        _
      $region10: #{gcn_forward.1} parent=5 // pred_check_branch
        %579 = sbr.rel (%p576) target = $region12
      $region11: #{gcn_forward.1} parent=5 // pred_region
        %s580 = ssub.s32 %s37, 1
        // Predicated region
        $region13: #{gcn_forward.1} parent=11 // pred_check
          %p581 = pneg %p58
        $region14: #{gcn_forward.1} parent=11 // pred_check_branch
          %583 = sbr.rel (%p581) target = $region16
        $region15: #{gcn_forward.1} parent=11 // pred_region
          _
        $region16: #{gcn_forward.1} parent=11 // pred_fallthru
          _
        // Predicated region
        $region17: #{gcn_forward.1} parent=11 // pred_check
          %p584 = pneg %p157
        $region18: #{gcn_forward.1} parent=11 // pred_check_branch
          %586 = sbr.rel (%p584) target = $region20
        $region19: #{gcn_forward.1} parent=11 // pred_region
          _
        $region20: #{gcn_forward.1} parent=11 // pred_fallthru
          _
        // Predicated region
        $region21: #{gcn_forward.1} parent=11 // pred_check
          %p587 = pneg %p178
        $region22: #{gcn_forward.1} parent=11 // pred_check_branch
          %589 = sbr.rel (%p587) target = $region24
        $region23: #{gcn_forward.1} parent=11 // pred_region
          _
        $region24: #{gcn_forward.1} parent=11 // pred_fallthru
          _
        // Predicated region
        $region25: #{gcn_forward.1} parent=11 // pred_check
          %p590 = pneg %p199
        $region26: #{gcn_forward.1} parent=11 // pred_check_branch
          %592 = sbr.rel (%p590) target = $region28
        $region27: #{gcn_forward.1} parent=11 // pred_region
          _
        $region28: #{gcn_forward.1} parent=11 // pred_fallthru
          _
        // Predicated region
        $region29: #{gcn_forward.1} parent=11 // pred_check
          %p593 = pneg %p220
        $region30: #{gcn_forward.1} parent=11 // pred_check_branch
          %595 = sbr.rel (%p593) target = $region32
        $region31: #{gcn_forward.1} parent=11 // pred_region
          _
        $region32: #{gcn_forward.1} parent=11 // pred_fallthru
          _
        // Predicated region
        $region33: #{gcn_forward.1} parent=11 // pred_check
          %p596 = pneg %p241
        $region34: #{gcn_forward.1} parent=11 // pred_check_branch
          %598 = sbr.rel (%p596) target = $region36
        $region35: #{gcn_forward.1} parent=11 // pred_region
          _
        $region36: #{gcn_forward.1} parent=11 // pred_fallthru
          _
        // Predicated region
        $region37: #{gcn_forward.1} parent=11 // pred_check
          %p599 = pneg %p262
        $region38: #{gcn_forward.1} parent=11 // pred_check_branch
          %601 = sbr.rel (%p599) target = $region40
        $region39: #{gcn_forward.1} parent=11 // pred_region
          _
        $region40: #{gcn_forward.1} parent=11 // pred_fallthru
          _
        // Predicated region
        $region41: #{gcn_forward.1} parent=11 // pred_check
          %p602 = pneg %p283
        $region42: #{gcn_forward.1} parent=11 // pred_check_branch
          %604 = sbr.rel (%p602) target = $region44
        $region43: #{gcn_forward.1} parent=11 // pred_region
          _
        $region44: #{gcn_forward.1} parent=11 // pred_fallthru
          _
        // Predicated region
        $region45: #{gcn_forward.1} parent=11 // pred_check
          %p605 = pneg %p304
        $region46: #{gcn_forward.1} parent=11 // pred_check_branch
          %607 = sbr.rel (%p605) target = $region48
        $region47: #{gcn_forward.1} parent=11 // pred_region
          _
        $region48: #{gcn_forward.1} parent=11 // pred_fallthru
          _
        // Predicated region
        $region49: #{gcn_forward.1} parent=11 // pred_check
          %p608 = pneg %p325
        $region50: #{gcn_forward.1} parent=11 // pred_check_branch
          %610 = sbr.rel (%p608) target = $region52
        $region51: #{gcn_forward.1} parent=11 // pred_region
          _
        $region52: #{gcn_forward.1} parent=11 // pred_fallthru
          _
        // Predicated region
        $region53: #{gcn_forward.1} parent=11 // pred_check
          %p611 = pneg %p346
        $region54: #{gcn_forward.1} parent=11 // pred_check_branch
          %613 = sbr.rel (%p611) target = $region56
        $region55: #{gcn_forward.1} parent=11 // pred_region
          _
        $region56: #{gcn_forward.1} parent=11 // pred_fallthru
          _
        // Predicated region
        $region57: #{gcn_forward.1} parent=11 // pred_check
          %p614 = pneg %p367
        $region58: #{gcn_forward.1} parent=11 // pred_check_branch
          %616 = sbr.rel (%p614) target = $region60
        $region59: #{gcn_forward.1} parent=11 // pred_region
          _
        $region60: #{gcn_forward.1} parent=11 // pred_fallthru
          _
        // Predicated region
        $region61: #{gcn_forward.1} parent=11 // pred_check
          %p617 = pneg %p388
        $region62: #{gcn_forward.1} parent=11 // pred_check_branch
          %619 = sbr.rel (%p617) target = $region64
        $region63: #{gcn_forward.1} parent=11 // pred_region
          _
        $region64: #{gcn_forward.1} parent=11 // pred_fallthru
          _
        // Predicated region
        $region65: #{gcn_forward.1} parent=11 // pred_check
          %p620 = pneg %p409
        $region66: #{gcn_forward.1} parent=11 // pred_check_branch
          %622 = sbr.rel (%p620) target = $region68
        $region67: #{gcn_forward.1} parent=11 // pred_region
          _
        $region68: #{gcn_forward.1} parent=11 // pred_fallthru
          _
        // Predicated region
        $region69: #{gcn_forward.1} parent=11 // pred_check
          %p623 = pneg %p430
        $region70: #{gcn_forward.1} parent=11 // pred_check_branch
          %625 = sbr.rel (%p623) target = $region72
        $region71: #{gcn_forward.1} parent=11 // pred_region
          _
        $region72: #{gcn_forward.1} parent=11 // pred_fallthru
          _
        // Predicated region
        $region73: #{gcn_forward.1} parent=11 // pred_check
          %p626 = pneg %p451
        $region74: #{gcn_forward.1} parent=11 // pred_check_branch
          %628 = sbr.rel (%p626) target = $region76
        $region75: #{gcn_forward.1} parent=11 // pred_region
          _
        $region76: #{gcn_forward.1} parent=11 // pred_fallthru
          _
        // Predicated region
        $region77: #{gcn_forward.1} parent=11 // pred_check
          %p629 = pneg %p472
        $region78: #{gcn_forward.1} parent=11 // pred_check_branch
          %631 = sbr.rel (%p629) target = $region80
        $region79: #{gcn_forward.1} parent=11 // pred_region
          _
        $region80: #{gcn_forward.1} parent=11 // pred_fallthru
          _
        // Predicated region
        $region81: #{gcn_forward.1} parent=11 // pred_check
          %p632 = pneg %p493
        $region82: #{gcn_forward.1} parent=11 // pred_check_branch
          %634 = sbr.rel (%p632) target = $region84
        $region83: #{gcn_forward.1} parent=11 // pred_region
          _
        $region84: #{gcn_forward.1} parent=11 // pred_fallthru
          _
        // Predicated region
        $region85: #{gcn_forward.1} parent=11 // pred_check
          %p635 = pneg %p514
        $region86: #{gcn_forward.1} parent=11 // pred_check_branch
          %637 = sbr.rel (%p635) target = $region88
        $region87: #{gcn_forward.1} parent=11 // pred_region
          _
        $region88: #{gcn_forward.1} parent=11 // pred_fallthru
          _
      $region12: #{gcn_forward.1} parent=5 // pred_fallthru
        _
      %p638 = scmp.lt.s32.totalorder %s37, 2
      // Predicated region
      $region89: #{gcn_forward.1} parent=5 // pred_check
        %p639 = pneg %p638
      $region90: #{gcn_forward.1} parent=5 // pred_check_branch
        %641 = sbr.rel (%p639) target = $region92
      $region91: #{gcn_forward.1} parent=5 // pred_region
        // Predicated region
        $region93: #{gcn_forward.1} parent=91 // pred_check
          %p642 = pneg %p78
        $region94: #{gcn_forward.1} parent=91 // pred_check_branch
          %644 = sbr.rel (%p642) target = $region96
        $region95: #{gcn_forward.1} parent=91 // pred_region
          %s645 = smul.u32 8, %s37
          %p646 = scmp.lt.s32.totalorder %s645, 15
          %s647 = scalar_select %p646, %s645, 15
          %s648 = smul.addr %s647, 4
          %s649 = smul.addr %s648, 4
          %s650 = scalar_lea.vmem %s1, %s649
          %s651 = smul.u32 8, %s37
        $region96: #{gcn_forward.1} parent=91 // pred_fallthru
          _
        // Predicated region
        $region97: #{gcn_forward.1} parent=91 // pred_check
          %p652 = pneg %p104
        $region98: #{gcn_forward.1} parent=91 // pred_check_branch
          %654 = sbr.rel (%p652) target = $region100
        $region99: #{gcn_forward.1} parent=91 // pred_region
          %s655 = smul.u32 8, %s37
          %p656 = scmp.lt.s32.totalorder %s655, 15
          %s657 = scalar_select %p656, %s655, 15
          %s658 = smul.addr %s657, 4
          %s659 = smul.addr %s658, 4
          %s660 = scalar_lea.vmem %s2, %s659
          %s661 = smul.u32 8, %s37
        $region100: #{gcn_forward.1} parent=91 // pred_fallthru
          _
        // Predicated region
        $region101: #{gcn_forward.1} parent=91 // pred_check
          %p662 = pneg %p130
        $region102: #{gcn_forward.1} parent=91 // pred_check_branch
          %664 = sbr.rel (%p662) target = $region104
        $region103: #{gcn_forward.1} parent=91 // pred_region
          %p665 = scmp.lt.s32.totalorder %s37, 1
          %s666 = scalar_select %p665, %s37, 1
          %s667 = smul.addr %s666, 8
          %s668 = scalar_lea.vmem %s3, %s667
        $region104: #{gcn_forward.1} parent=91 // pred_fallthru
          _
      $region92: #{gcn_forward.1} parent=5 // pred_fallthru
        _
      %p669 = scmp.le.s32.totalorder 1, %s37
      %p670 = scmp.lt.s32.totalorder %s37, 3
      %p671 = pnand %p669, %p670
      %p672 = pneg %p671
      // Predicated region
      $region105: #{gcn_forward.1} parent=5 // pred_check
        _
      $region106: #{gcn_forward.1} parent=5 // pred_check_branch
        %674 = sbr.rel (%p671) target = $region108
      $region107: #{gcn_forward.1} parent=5 // pred_region
        %s675 = ssub.s32 %s37, 1
        %p676 = pneg %p58
        %p677 = pneg %p55
        %s678 = smul.u32 8, %s42
        %p679 = scmp.lt.s32.totalorder %s678, 15
        %s680 = scalar_select %p679, %s678, 15
        %s681 = smul.addr %s680, 4
        %s682 = smul.addr %s681, 4
        %s683 = scalar_lea.vmem %s1, %s682
        %p684 = pneg %p84
        %p685 = pneg %p81
        %s686 = smul.u32 8, %s42
        %p687 = scmp.lt.s32.totalorder %s686, 15
        %s688 = scalar_select %p687, %s686, 15
        %s689 = smul.addr %s688, 4
        %s690 = smul.addr %s689, 4
        %s691 = scalar_lea.vmem %s2, %s690
        %p692 = pneg %p110
        %p693 = pneg %p107
        %p694 = scmp.lt.s32.totalorder %s42, 1
        %s695 = scalar_select %p694, %s42, 1
        %s696 = smul.addr %s695, 8
        %s697 = scalar_lea.vmem %s3, %s696
        %p698 = pneg %p136
        %p699 = pneg %p133
        %p700 = pneg %p157
        %p701 = pneg %p154
        %p702 = pneg %p178
        %p703 = pneg %p175
        %p704 = pneg %p199
        %p705 = pneg %p196
        %p706 = pneg %p220
        %p707 = pneg %p217
        %p708 = pneg %p241
        %p709 = pneg %p238
        %p710 = pneg %p262
        %p711 = pneg %p259
        %p712 = pneg %p283
        %p713 = pneg %p280
        %p714 = pneg %p304
        %p715 = pneg %p301
        %p716 = pneg %p325
        %p717 = pneg %p322
        %p718 = pneg %p346
        %p719 = pneg %p343
        %p720 = pneg %p367
        %p721 = pneg %p364
        %p722 = pneg %p388
        %p723 = pneg %p385
        %p724 = pneg %p409
        %p725 = pneg %p406
        %p726 = pneg %p430
        %p727 = pneg %p427
        %p728 = pneg %p451
        %p729 = pneg %p448
        %p730 = pneg %p472
        %p731 = pneg %p469
        %p732 = pneg %p493
        %p733 = pneg %p490
        %p734 = pneg %p514
        %p735 = pneg %p511
        %p736 = pneg %p540
        %p737 = pneg %p537
        %s738 = sand.u32 %s527, 1
        %s739 = scalar_lea.sflag [#allocation4], %s738
        %s740 = sand.u32 %s527, 1
        %s741 = smul.addr %s740, 8
        %s742 = scalar_lea.vmem [#allocation3], %s741
        %p743 = pneg %p566
        %p744 = pneg %p563
        %s745 = sand.u32 %s553, 1
        %s746 = scalar_lea.sflag [#allocation6], %s745
        %s747 = sand.u32 %s553, 1
        %s748 = smul.addr %s747, 8
        %s749 = scalar_lea.vmem [#allocation5], %s748
        %s750 = smul.u32 8, %s42
        %p751 = scmp.lt.s32.totalorder %s750, 15
        %s752 = scalar_select %p751, %s750, 15
        %s753 = smul.addr %s752, 4
        %s754 = smul.addr %s753, 4
        %s755 = scalar_lea.vmem %s1, %s754
        %s756 = smul.u32 8, %s42
        %s757 = smul.u32 8, %s42
        %p758 = scmp.lt.s32.totalorder %s757, 15
        %s759 = scalar_select %p758, %s757, 15
        %s760 = smul.addr %s759, 4
        %s761 = smul.addr %s760, 4
        %s762 = scalar_lea.vmem %s2, %s761
        %s763 = smul.u32 8, %s42
        %p764 = scmp.lt.s32.totalorder %s42, 1
        %s765 = scalar_select %p764, %s42, 1
        %s766 = smul.addr %s765, 8
        %s767 = scalar_lea.vmem %s3, %s766
        %s769 = sld [smem:[#allocation2]]
        %v770 = vstv %s769
        %v771 = vmul.f32 %v770, 1.442695
        %v772 = vpow.pop %v771
        %s773 = vtos %v772
        %v774 = vld [vmem:[%s755] sm:$0xf]
        %v775 = vld [vmem:[%s755 + $0x4] sm:$0xf]
        %v776 = vld [vmem:[%s755 + $0x8] sm:$0xf]
        %v777 = vld [vmem:[%s755 + $0xc] sm:$0xf]
        %v778 = vld [vmem:[%s755 + $0x10] sm:$0xf]
        %v779 = vld [vmem:[%s755 + $0x14] sm:$0xf]
        %v780 = vld [vmem:[%s755 + $0x18] sm:$0xf]
        %v781 = vld [vmem:[%s755 + $0x1c] sm:$0xf]
        %v782 = vld [vmem:[%s755 + $0x20] sm:$0xf]
        %v783 = vld [vmem:[%s755 + $0x24] sm:$0xf]
        %v784 = vld [vmem:[%s755 + $0x28] sm:$0xf]
        %v785 = vld [vmem:[%s755 + $0x2c] sm:$0xf]
        %v786 = vld [vmem:[%s755 + $0x30] sm:$0xf]
        %v787 = vld [vmem:[%s755 + $0x34] sm:$0xf]
        %v788 = vld [vmem:[%s755 + $0x38] sm:$0xf]
        %v789 = vld [vmem:[%s755 + $0x3c] sm:$0xf]
        %v790 = vld [vmem:[%s755 + $0x40] sm:$0xf]
        %v791 = vld [vmem:[%s755 + $0x44] sm:$0xf]
        %v792 = vld [vmem:[%s755 + $0x48] sm:$0xf]
        %v793 = vld [vmem:[%s755 + $0x4c] sm:$0xf]
        %v794 = vld [vmem:[%s755 + $0x50] sm:$0xf]
        %v795 = vld [vmem:[%s755 + $0x54] sm:$0xf]
        %v796 = vld [vmem:[%s755 + $0x58] sm:$0xf]
        %v797 = vld [vmem:[%s755 + $0x5c] sm:$0xf]
        %v798 = vld [vmem:[%s755 + $0x60] sm:$0xf]
        %v799 = vld [vmem:[%s755 + $0x64] sm:$0xf]
        %v800 = vld [vmem:[%s755 + $0x68] sm:$0xf]
        %v801 = vld [vmem:[%s755 + $0x6c] sm:$0xf]
        %v802 = vld [vmem:[%s755 + $0x70] sm:$0xf]
        %v803 = vld [vmem:[%s755 + $0x74] sm:$0xf]
        %v804 = vld [vmem:[%s755 + $0x78] sm:$0xf]
        %v805 = vld [vmem:[%s755 + $0x7c] sm:$0xf]
        %v806 = vld [vmem:[%s762] sm:$0xf]
        %v807 = vld [vmem:[%s762 + $0x4] sm:$0xf]
        %v808 = vld [vmem:[%s762 + $0x8] sm:$0xf]
        %v809 = vld [vmem:[%s762 + $0xc] sm:$0xf]
        %v810 = vld [vmem:[%s762 + $0x10] sm:$0xf]
        %v811 = vld [vmem:[%s762 + $0x14] sm:$0xf]
        %v812 = vld [vmem:[%s762 + $0x18] sm:$0xf]
        %v813 = vld [vmem:[%s762 + $0x1c] sm:$0xf]
        %v814 = vld [vmem:[%s762 + $0x20] sm:$0xf]
        %v815 = vld [vmem:[%s762 + $0x24] sm:$0xf]
        %v816 = vld [vmem:[%s762 + $0x28] sm:$0xf]
        %v817 = vld [vmem:[%s762 + $0x2c] sm:$0xf]
        %v818 = vld [vmem:[%s762 + $0x30] sm:$0xf]
        %v819 = vld [vmem:[%s762 + $0x34] sm:$0xf]
        %v820 = vld [vmem:[%s762 + $0x38] sm:$0xf]
        %v821 = vld [vmem:[%s762 + $0x3c] sm:$0xf]
        %v822 = vld [vmem:[%s762 + $0x40] sm:$0xf]
        %v823 = vld [vmem:[%s762 + $0x44] sm:$0xf]
        %v824 = vld [vmem:[%s762 + $0x48] sm:$0xf]
        %v825 = vld [vmem:[%s762 + $0x4c] sm:$0xf]
        %v826 = vld [vmem:[%s762 + $0x50] sm:$0xf]
        %v827 = vld [vmem:[%s762 + $0x54] sm:$0xf]
        %v828 = vld [vmem:[%s762 + $0x58] sm:$0xf]
        %v829 = vld [vmem:[%s762 + $0x5c] sm:$0xf]
        %v830 = vld [vmem:[%s762 + $0x60] sm:$0xf]
        %v831 = vld [vmem:[%s762 + $0x64] sm:$0xf]
        %v832 = vld [vmem:[%s762 + $0x68] sm:$0xf]
        %v833 = vld [vmem:[%s762 + $0x6c] sm:$0xf]
        %v834 = vld [vmem:[%s762 + $0x70] sm:$0xf]
        %v835 = vld [vmem:[%s762 + $0x74] sm:$0xf]
        %v836 = vld [vmem:[%s762 + $0x78] sm:$0xf]
        %v837 = vld [vmem:[%s762 + $0x7c] sm:$0xf]
        %v838 = vld [vmem:[%s4] sm:$0xf]
        %v839 = vld [vmem:[%s4 + $0x4] sm:$0xf]
        %v840 = vld [vmem:[%s4 + $0x8] sm:$0xf]
        %v841 = vld [vmem:[%s4 + $0xc] sm:$0xf]
        %v842 = vld [vmem:[%s4 + $0x10] sm:$0xf]
        %v843 = vld [vmem:[%s4 + $0x14] sm:$0xf]
        %v844 = vld [vmem:[%s4 + $0x18] sm:$0xf]
        %v845 = vld [vmem:[%s4 + $0x1c] sm:$0xf]
        %v846 = vld [vmem:[%s4 + $0x20] sm:$0xf]
        %v847 = vld [vmem:[%s4 + $0x24] sm:$0xf]
        %v848 = vld [vmem:[%s4 + $0x28] sm:$0xf]
        %v849 = vld [vmem:[%s4 + $0x2c] sm:$0xf]
        %v850 = vld [vmem:[%s4 + $0x30] sm:$0xf]
        %v851 = vld [vmem:[%s4 + $0x34] sm:$0xf]
        %v852 = vld [vmem:[%s4 + $0x38] sm:$0xf]
        %v853 = vld [vmem:[%s4 + $0x3c] sm:$0xf]
        %v886 = vunpack.c.l.b16 %v806
        %v887 = vunpack.c.l.b16 %v807
        %v888 = vunpack.c.l.b16 %v808
        %v889 = vunpack.c.l.b16 %v809
        %v890 = vunpack.c.l.b16 %v810
        %v891 = vunpack.c.l.b16 %v811
        %v892 = vunpack.c.l.b16 %v812
        %v893 = vunpack.c.l.b16 %v813
        %v894 = vunpack.c.l.b16 %v814
        %v895 = vunpack.c.l.b16 %v815
        %v896 = vunpack.c.l.b16 %v816
        %v897 = vunpack.c.l.b16 %v817
        %v898 = vunpack.c.l.b16 %v818
        %v899 = vunpack.c.l.b16 %v819
        %v900 = vunpack.c.l.b16 %v820
        %v901 = vunpack.c.l.b16 %v821
        %v902 = vunpack.c.l.b16 %v822
        %v903 = vunpack.c.l.b16 %v823
        %v904 = vunpack.c.l.b16 %v824
        %v905 = vunpack.c.l.b16 %v825
        %v906 = vunpack.c.l.b16 %v826
        %v907 = vunpack.c.l.b16 %v827
        %v908 = vunpack.c.l.b16 %v828
        %v909 = vunpack.c.l.b16 %v829
        %v910 = vunpack.c.l.b16 %v830
        %v911 = vunpack.c.l.b16 %v831
        %v912 = vunpack.c.l.b16 %v832
        %v913 = vunpack.c.l.b16 %v833
        %v914 = vunpack.c.l.b16 %v834
        %v915 = vunpack.c.l.b16 %v835
        %v916 = vunpack.c.l.b16 %v836
        %v917 = vunpack.c.l.b16 %v837
        %v918 = vpack.c.b16 %v887, %v886
        %v919 = vpack.c.b16 %v889, %v888
        %v920 = vpack.c.b16 %v891, %v890
        %v921 = vpack.c.b16 %v893, %v892
        %v922 = vpack.c.b16 %v895, %v894
        %v923 = vpack.c.b16 %v897, %v896
        %v924 = vpack.c.b16 %v899, %v898
        %v925 = vpack.c.b16 %v901, %v900
        %v926 = vpack.c.b16 %v903, %v902
        %v927 = vpack.c.b16 %v905, %v904
        %v928 = vpack.c.b16 %v907, %v906
        %v929 = vpack.c.b16 %v909, %v908
        %v930 = vpack.c.b16 %v911, %v910
        %v931 = vpack.c.b16 %v913, %v912
        %v932 = vpack.c.b16 %v915, %v914
        %v933 = vpack.c.b16 %v917, %v916
        %v966 = vunpack.c.l.b16 %v838
        %v967 = vunpack.c.l.b16 %v839
        %v968 = vunpack.c.l.b16 %v840
        %v969 = vunpack.c.l.b16 %v841
        %v970 = vunpack.c.l.b16 %v842
        %v971 = vunpack.c.l.b16 %v843
        %v972 = vunpack.c.l.b16 %v844
        %v973 = vunpack.c.l.b16 %v845
        %v974 = vunpack.c.l.b16 %v846
        %v975 = vunpack.c.l.b16 %v847
        %v976 = vunpack.c.l.b16 %v848
        %v977 = vunpack.c.l.b16 %v849
        %v978 = vunpack.c.l.b16 %v850
        %v979 = vunpack.c.l.b16 %v851
        %v980 = vunpack.c.l.b16 %v852
        %v981 = vunpack.c.l.b16 %v853
        %v982 = vpack.c.b16 %v967, %v966
        %v983 = vpack.c.b16 %v969, %v968
        %v984 = vpack.c.b16 %v971, %v970
        %v985 = vpack.c.b16 %v973, %v972
        %v986 = vpack.c.b16 %v975, %v974
        %v987 = vpack.c.b16 %v977, %v976
        %v988 = vpack.c.b16 %v979, %v978
        %v989 = vpack.c.b16 %v981, %v980
        %998 = vmatprep.subr.bf16.mxu0 0
        %999 = vmatpush1.bf16.msra.mxu0 %v989
        %1000 = vmatprep.subr.bf16.mxu0 0
        %1001 = vmatpush1.bf16.msra.mxu0 %v988
        %1002 = vmatprep.subr.bf16.mxu0 0
        %1003 = vmatpush1.bf16.msra.mxu0 %v987
        %1004 = vmatprep.subr.bf16.mxu0 0
        %1005 = vmatpush1.bf16.msra.mxu0 %v986
        %1006 = vmatprep.subr.bf16.mxu0 0
        %1007 = vmatpush1.bf16.msra.mxu0 %v985
        %1008 = vmatprep.subr.bf16.mxu0 0
        %1009 = vmatpush1.bf16.msra.mxu0 %v984
        %1010 = vmatprep.subr.bf16.mxu0 0
        %1011 = vmatpush1.bf16.msra.mxu0 %v983
        %1012 = vmatprep.subr.bf16.mxu0 0
        %1013 = vmatpush1.bf16.msra.mxu0 %v982
        %1014 = vmatprep.subr.bf16.mxu0 0
        %1015 = vmatpush2.bf16.msra.mxu0 0
        %1016 = vmatprep.subr.bf16.mxu0 0
        %1017 = vmatpush2.bf16.msra.mxu0 0
        %1018 = vmatprep.subr.bf16.mxu0 0
        %1019 = vmatpush2.bf16.msra.mxu0 0
        %1020 = vmatprep.subr.bf16.mxu0 0
        %1021 = vmatpush2.bf16.msra.mxu0 0
        %1022 = vmatprep.subr.bf16.mxu0 0
        %1023 = vmatpush2.bf16.msra.mxu0 0
        %1024 = vmatprep.subr.bf16.mxu0 0
        %1025 = vmatpush2.bf16.msra.mxu0 0
        %1026 = vmatprep.subr.bf16.mxu0 0
        %1027 = vmatpush2.bf16.msra.mxu0 0
        %1028 = vmatprep.subr.bf16.mxu0 0
        %1029 = vmatpush2.bf16.msra.mxu0 0
        %1030 = vmatprep.mubr.bf16.mxu0 0
        %1031 = vmatmul.mubr.bf16.gmra.mxu0 %v918
        %v1032 = vpop.f32.mrf.mxu0
        %v1033 = vadd.f32 0.0, %v1032
        %v1034 = vpop.f32.mrf.mxu0
        %v1035 = vpop.f32.mrf.mxu0
        %v1036 = vadd.f32 0.0, %v1035
        %v1037 = vpop.f32.mrf.mxu0
        %1038 = vmatprep.mubr.bf16.mxu0 0
        %1039 = vmatmul.mubr.bf16.gmra.mxu0 %v919
        %v1040 = vpop.f32.mrf.mxu0
        %v1041 = vadd.f32 0.0, %v1040
        %v1042 = vpop.f32.mrf.mxu0
        %v1043 = vpop.f32.mrf.mxu0
        %v1044 = vadd.f32 0.0, %v1043
        %v1045 = vpop.f32.mrf.mxu0
        %1046 = vmatprep.mubr.bf16.mxu0 0
        %1047 = vmatmul.mubr.bf16.gmra.mxu0 %v920
        %v1048 = vpop.f32.mrf.mxu0
        %v1049 = vadd.f32 0.0, %v1048
        %v1050 = vpop.f32.mrf.mxu0
        %v1051 = vpop.f32.mrf.mxu0
        %v1052 = vadd.f32 0.0, %v1051
        %v1053 = vpop.f32.mrf.mxu0
        %1054 = vmatprep.mubr.bf16.mxu0 0
        %1055 = vmatmul.mubr.bf16.gmra.mxu0 %v921
        %v1056 = vpop.f32.mrf.mxu0
        %v1057 = vadd.f32 0.0, %v1056
        %v1058 = vpop.f32.mrf.mxu0
        %v1059 = vpop.f32.mrf.mxu0
        %v1060 = vadd.f32 0.0, %v1059
        %v1061 = vpop.f32.mrf.mxu0
        %1062 = vmatprep.mubr.bf16.mxu0 0
        %1063 = vmatmul.mubr.bf16.gmra.mxu0 %v922
        %v1064 = vpop.f32.mrf.mxu0
        %v1065 = vadd.f32 0.0, %v1064
        %v1066 = vpop.f32.mrf.mxu0
        %v1067 = vpop.f32.mrf.mxu0
        %v1068 = vadd.f32 0.0, %v1067
        %v1069 = vpop.f32.mrf.mxu0
        %1070 = vmatprep.mubr.bf16.mxu0 0
        %1071 = vmatmul.mubr.bf16.gmra.mxu0 %v923
        %v1072 = vpop.f32.mrf.mxu0
        %v1073 = vadd.f32 0.0, %v1072
        %v1074 = vpop.f32.mrf.mxu0
        %v1075 = vpop.f32.mrf.mxu0
        %v1076 = vadd.f32 0.0, %v1075
        %v1077 = vpop.f32.mrf.mxu0
        %1078 = vmatprep.mubr.bf16.mxu0 0
        %1079 = vmatmul.mubr.bf16.gmra.mxu0 %v924
        %v1080 = vpop.f32.mrf.mxu0
        %v1081 = vadd.f32 0.0, %v1080
        %v1082 = vpop.f32.mrf.mxu0
        %v1083 = vpop.f32.mrf.mxu0
        %v1084 = vadd.f32 0.0, %v1083
        %v1085 = vpop.f32.mrf.mxu0
        %1086 = vmatprep.mubr.bf16.mxu0 0
        %1087 = vmatmul.mubr.bf16.gmra.mxu0 %v925
        %v1088 = vpop.f32.mrf.mxu0
        %v1089 = vadd.f32 0.0, %v1088
        %v1090 = vpop.f32.mrf.mxu0
        %v1091 = vpop.f32.mrf.mxu0
        %v1092 = vadd.f32 0.0, %v1091
        %v1093 = vpop.f32.mrf.mxu0
        %1094 = vmatprep.mubr.bf16.mxu0 0
        %1095 = vmatmul.mubr.bf16.gmra.mxu0 %v926
        %v1096 = vpop.f32.mrf.mxu0
        %v1097 = vadd.f32 0.0, %v1096
        %v1098 = vpop.f32.mrf.mxu0
        %v1099 = vpop.f32.mrf.mxu0
        %v1100 = vadd.f32 0.0, %v1099
        %v1101 = vpop.f32.mrf.mxu0
        %1102 = vmatprep.mubr.bf16.mxu0 0
        %1103 = vmatmul.mubr.bf16.gmra.mxu0 %v927
        %v1104 = vpop.f32.mrf.mxu0
        %v1105 = vadd.f32 0.0, %v1104
        %v1106 = vpop.f32.mrf.mxu0
        %v1107 = vpop.f32.mrf.mxu0
        %v1108 = vadd.f32 0.0, %v1107
        %v1109 = vpop.f32.mrf.mxu0
        %1110 = vmatprep.mubr.bf16.mxu0 0
        %1111 = vmatmul.mubr.bf16.gmra.mxu0 %v928
        %v1112 = vpop.f32.mrf.mxu0
        %v1113 = vadd.f32 0.0, %v1112
        %v1114 = vpop.f32.mrf.mxu0
        %v1115 = vpop.f32.mrf.mxu0
        %v1116 = vadd.f32 0.0, %v1115
        %v1117 = vpop.f32.mrf.mxu0
        %1118 = vmatprep.mubr.bf16.mxu0 0
        %1119 = vmatmul.mubr.bf16.gmra.mxu0 %v929
        %v1120 = vpop.f32.mrf.mxu0
        %v1121 = vadd.f32 0.0, %v1120
        %v1122 = vpop.f32.mrf.mxu0
        %v1123 = vpop.f32.mrf.mxu0
        %v1124 = vadd.f32 0.0, %v1123
        %v1125 = vpop.f32.mrf.mxu0
        %1126 = vmatprep.mubr.bf16.mxu0 0
        %1127 = vmatmul.mubr.bf16.gmra.mxu0 %v930
        %v1128 = vpop.f32.mrf.mxu0
        %v1129 = vadd.f32 0.0, %v1128
        %v1130 = vpop.f32.mrf.mxu0
        %v1131 = vpop.f32.mrf.mxu0
        %v1132 = vadd.f32 0.0, %v1131
        %v1133 = vpop.f32.mrf.mxu0
        %1134 = vmatprep.mubr.bf16.mxu0 0
        %1135 = vmatmul.mubr.bf16.gmra.mxu0 %v931
        %v1136 = vpop.f32.mrf.mxu0
        %v1137 = vadd.f32 0.0, %v1136
        %v1138 = vpop.f32.mrf.mxu0
        %v1139 = vpop.f32.mrf.mxu0
        %v1140 = vadd.f32 0.0, %v1139
        %v1141 = vpop.f32.mrf.mxu0
        %1142 = vmatprep.mubr.bf16.mxu0 0
        %1143 = vmatmul.mubr.bf16.gmra.mxu0 %v932
        %v1144 = vpop.f32.mrf.mxu0
        %v1145 = vadd.f32 0.0, %v1144
        %v1146 = vpop.f32.mrf.mxu0
        %v1147 = vpop.f32.mrf.mxu0
        %v1148 = vadd.f32 0.0, %v1147
        %v1149 = vpop.f32.mrf.mxu0
        %1150 = vmatprep.mubr.bf16.mxu0 0
        %1151 = vmatmul.mubr.bf16.gmra.mxu0 %v933
        %v1152 = vpop.f32.mrf.mxu0
        %v1153 = vadd.f32 0.0, %v1152
        %v1154 = vpop.f32.mrf.mxu0
        %v1155 = vpop.f32.mrf.mxu0
        %v1156 = vadd.f32 0.0, %v1155
        %v1157 = vpop.f32.mrf.mxu0
        %1158 = vdwg.mxu0
        %v1159 = vpack.c.bf16 %v1036, %v1033
        %v1160 = vpack.c.bf16 %v1044, %v1041
        %v1161 = vpack.c.bf16 %v1052, %v1049
        %v1162 = vpack.c.bf16 %v1060, %v1057
        %v1163 = vpack.c.bf16 %v1068, %v1065
        %v1164 = vpack.c.bf16 %v1076, %v1073
        %v1165 = vpack.c.bf16 %v1084, %v1081
        %v1166 = vpack.c.bf16 %v1092, %v1089
        %v1167 = vpack.c.bf16 %v1100, %v1097
        %v1168 = vpack.c.bf16 %v1108, %v1105
        %v1169 = vpack.c.bf16 %v1116, %v1113
        %v1170 = vpack.c.bf16 %v1124, %v1121
        %v1171 = vpack.c.bf16 %v1132, %v1129
        %v1172 = vpack.c.bf16 %v1140, %v1137
        %v1173 = vpack.c.bf16 %v1148, %v1145
        %v1174 = vpack.c.bf16 %v1156, %v1153
        %v1179 = vunpack.c.l.b16 %v774
        %v1180 = vunpack.c.l.b16 %v775
        %v1181 = vunpack.c.l.b16 %v776
        %v1182 = vunpack.c.l.b16 %v777
        %v1183 = vpack.c.b16 %v1180, %v1179
        %v1184 = vpack.c.b16 %v1182, %v1181
        %vm1185 = vcmask 261120
        %v1187 = vsel %vm1185, %v1183, 0
        %v1190 = vsel %vm1185, %v1184, 0
        %1192 = vmatprep.subr.bf16.mxu0 0
        %1193 = vmatpush1.bf16.msra.mxu0 0
        %1194 = vmatprep.subr.bf16.mxu0 0
        %1195 = vmatpush1.bf16.msra.mxu0 0
        %1196 = vmatprep.subr.bf16.mxu0 0
        %1197 = vmatpush1.bf16.msra.mxu0 0
        %1198 = vmatprep.subr.bf16.mxu0 0
        %1199 = vmatpush1.bf16.msra.mxu0 0
        %1200 = vmatprep.subr.bf16.mxu0 0
        %1201 = vmatpush1.bf16.msra.mxu0 0
        %1202 = vmatprep.subr.bf16.mxu0 0
        %1203 = vmatpush1.bf16.msra.mxu0 0
        %1204 = vmatprep.subr.bf16.mxu0 0
        %1205 = vmatpush1.bf16.msra.mxu0 %v1160
        %1206 = vmatprep.subr.bf16.mxu0 0
        %1207 = vmatpush1.bf16.msra.mxu0 %v1159
        %1208 = vmatprep.subr.bf16.mxu0 0
        %1209 = vmatpush2.bf16.msra.mxu0 0
        %1210 = vmatprep.subr.bf16.mxu0 0
        %1211 = vmatpush2.bf16.msra.mxu0 0
        %1212 = vmatprep.subr.bf16.mxu0 0
        %1213 = vmatpush2.bf16.msra.mxu0 0
        %1214 = vmatprep.subr.bf16.mxu0 0
        %1215 = vmatpush2.bf16.msra.mxu0 0
        %1216 = vmatprep.subr.bf16.mxu0 0
        %1217 = vmatpush2.bf16.msra.mxu0 0
        %1218 = vmatprep.subr.bf16.mxu0 0
        %1219 = vmatpush2.bf16.msra.mxu0 0
        %1220 = vmatprep.subr.bf16.mxu0 0
        %1221 = vmatpush2.bf16.msra.mxu0 0
        %1222 = vmatprep.subr.bf16.mxu0 0
        %1223 = vmatpush2.bf16.msra.mxu0 0
        %1224 = vmatprep.mubr.bf16.mxu0 0
        %1225 = vmatmul.mubr.bf16.gmra.mxu0 %v1187
        %v1226 = vpop.f32.mrf.mxu0
        %v1227 = vadd.f32 0.0, %v1226
        %v1228 = vpop.f32.mrf.mxu0
        %v1229 = vpop.f32.mrf.mxu0
        %v1230 = vadd.f32 0.0, %v1229
        %v1231 = vpop.f32.mrf.mxu0
        %1232 = vmatprep.mubr.bf16.mxu0 0
        %1233 = vmatmul.mubr.bf16.gmra.mxu0 %v1190
        %v1234 = vpop.f32.mrf.mxu0
        %v1235 = vadd.f32 0.0, %v1234
        %v1236 = vpop.f32.mrf.mxu0
        %v1237 = vpop.f32.mrf.mxu0
        %v1238 = vadd.f32 0.0, %v1237
        %v1239 = vpop.f32.mrf.mxu0
        %1240 = vdwg.mxu0
        %v1245 = vunpack.c.l.b16 %v778
        %v1246 = vunpack.c.l.b16 %v779
        %v1247 = vunpack.c.l.b16 %v780
        %v1248 = vunpack.c.l.b16 %v781
        %v1249 = vpack.c.b16 %v1246, %v1245
        %v1250 = vpack.c.b16 %v1248, %v1247
        %v1252 = vsel %vm1185, %v1249, 0
        %v1255 = vsel %vm1185, %v1250, 0
        %1257 = vmatprep.subr.bf16.mxu0 0
        %1258 = vmatpush1.bf16.msra.mxu0 0
        %1259 = vmatprep.subr.bf16.mxu0 0
        %1260 = vmatpush1.bf16.msra.mxu0 0
        %1261 = vmatprep.subr.bf16.mxu0 0
        %1262 = vmatpush1.bf16.msra.mxu0 0
        %1263 = vmatprep.subr.bf16.mxu0 0
        %1264 = vmatpush1.bf16.msra.mxu0 0
        %1265 = vmatprep.subr.bf16.mxu0 0
        %1266 = vmatpush1.bf16.msra.mxu0 0
        %1267 = vmatprep.subr.bf16.mxu0 0
        %1268 = vmatpush1.bf16.msra.mxu0 0
        %1269 = vmatprep.subr.bf16.mxu0 0
        %1270 = vmatpush1.bf16.msra.mxu0 %v1162
        %1271 = vmatprep.subr.bf16.mxu0 0
        %1272 = vmatpush1.bf16.msra.mxu0 %v1161
        %1273 = vmatprep.subr.bf16.mxu0 0
        %1274 = vmatpush2.bf16.msra.mxu0 0
        %1275 = vmatprep.subr.bf16.mxu0 0
        %1276 = vmatpush2.bf16.msra.mxu0 0
        %1277 = vmatprep.subr.bf16.mxu0 0
        %1278 = vmatpush2.bf16.msra.mxu0 0
        %1279 = vmatprep.subr.bf16.mxu0 0
        %1280 = vmatpush2.bf16.msra.mxu0 0
        %1281 = vmatprep.subr.bf16.mxu0 0
        %1282 = vmatpush2.bf16.msra.mxu0 0
        %1283 = vmatprep.subr.bf16.mxu0 0
        %1284 = vmatpush2.bf16.msra.mxu0 0
        %1285 = vmatprep.subr.bf16.mxu0 0
        %1286 = vmatpush2.bf16.msra.mxu0 0
        %1287 = vmatprep.subr.bf16.mxu0 0
        %1288 = vmatpush2.bf16.msra.mxu0 0
        %1289 = vmatprep.mubr.bf16.mxu0 0
        %1290 = vmatmul.mubr.bf16.gmra.mxu0 %v1252
        %v1291 = vpop.f32.mrf.mxu0
        %v1292 = vadd.f32 0.0, %v1291
        %v1293 = vpop.f32.mrf.mxu0
        %v1294 = vpop.f32.mrf.mxu0
        %v1295 = vadd.f32 0.0, %v1294
        %v1296 = vpop.f32.mrf.mxu0
        %1297 = vmatprep.mubr.bf16.mxu0 0
        %1298 = vmatmul.mubr.bf16.gmra.mxu0 %v1255
        %v1299 = vpop.f32.mrf.mxu0
        %v1300 = vadd.f32 0.0, %v1299
        %v1301 = vpop.f32.mrf.mxu0
        %v1302 = vpop.f32.mrf.mxu0
        %v1303 = vadd.f32 0.0, %v1302
        %v1304 = vpop.f32.mrf.mxu0
        %1305 = vdwg.mxu0
        %v1310 = vunpack.c.l.b16 %v782
        %v1311 = vunpack.c.l.b16 %v783
        %v1312 = vunpack.c.l.b16 %v784
        %v1313 = vunpack.c.l.b16 %v785
        %v1314 = vpack.c.b16 %v1311, %v1310
        %v1315 = vpack.c.b16 %v1313, %v1312
        %v1317 = vsel %vm1185, %v1314, 0
        %v1320 = vsel %vm1185, %v1315, 0
        %1322 = vmatprep.subr.bf16.mxu0 0
        %1323 = vmatpush1.bf16.msra.mxu0 0
        %1324 = vmatprep.subr.bf16.mxu0 0
        %1325 = vmatpush1.bf16.msra.mxu0 0
        %1326 = vmatprep.subr.bf16.mxu0 0
        %1327 = vmatpush1.bf16.msra.mxu0 0
        %1328 = vmatprep.subr.bf16.mxu0 0
        %1329 = vmatpush1.bf16.msra.mxu0 0
        %1330 = vmatprep.subr.bf16.mxu0 0
        %1331 = vmatpush1.bf16.msra.mxu0 0
        %1332 = vmatprep.subr.bf16.mxu0 0
        %1333 = vmatpush1.bf16.msra.mxu0 0
        %1334 = vmatprep.subr.bf16.mxu0 0
        %1335 = vmatpush1.bf16.msra.mxu0 %v1164
        %1336 = vmatprep.subr.bf16.mxu0 0
        %1337 = vmatpush1.bf16.msra.mxu0 %v1163
        %1338 = vmatprep.subr.bf16.mxu0 0
        %1339 = vmatpush2.bf16.msra.mxu0 0
        %1340 = vmatprep.subr.bf16.mxu0 0
        %1341 = vmatpush2.bf16.msra.mxu0 0
        %1342 = vmatprep.subr.bf16.mxu0 0
        %1343 = vmatpush2.bf16.msra.mxu0 0
        %1344 = vmatprep.subr.bf16.mxu0 0
        %1345 = vmatpush2.bf16.msra.mxu0 0
        %1346 = vmatprep.subr.bf16.mxu0 0
        %1347 = vmatpush2.bf16.msra.mxu0 0
        %1348 = vmatprep.subr.bf16.mxu0 0
        %1349 = vmatpush2.bf16.msra.mxu0 0
        %1350 = vmatprep.subr.bf16.mxu0 0
        %1351 = vmatpush2.bf16.msra.mxu0 0
        %1352 = vmatprep.subr.bf16.mxu0 0
        %1353 = vmatpush2.bf16.msra.mxu0 0
        %1354 = vmatprep.mubr.bf16.mxu0 0
        %1355 = vmatmul.mubr.bf16.gmra.mxu0 %v1317
        %v1356 = vpop.f32.mrf.mxu0
        %v1357 = vadd.f32 0.0, %v1356
        %v1358 = vpop.f32.mrf.mxu0
        %v1359 = vpop.f32.mrf.mxu0
        %v1360 = vadd.f32 0.0, %v1359
        %v1361 = vpop.f32.mrf.mxu0
        %1362 = vmatprep.mubr.bf16.mxu0 0
        %1363 = vmatmul.mubr.bf16.gmra.mxu0 %v1320
        %v1364 = vpop.f32.mrf.mxu0
        %v1365 = vadd.f32 0.0, %v1364
        %v1366 = vpop.f32.mrf.mxu0
        %v1367 = vpop.f32.mrf.mxu0
        %v1368 = vadd.f32 0.0, %v1367
        %v1369 = vpop.f32.mrf.mxu0
        %1370 = vdwg.mxu0
        %v1375 = vunpack.c.l.b16 %v786
        %v1376 = vunpack.c.l.b16 %v787
        %v1377 = vunpack.c.l.b16 %v788
        %v1378 = vunpack.c.l.b16 %v789
        %v1379 = vpack.c.b16 %v1376, %v1375
        %v1380 = vpack.c.b16 %v1378, %v1377
        %v1382 = vsel %vm1185, %v1379, 0
        %v1385 = vsel %vm1185, %v1380, 0
        %1387 = vmatprep.subr.bf16.mxu0 0
        %1388 = vmatpush1.bf16.msra.mxu0 0
        %1389 = vmatprep.subr.bf16.mxu0 0
        %1390 = vmatpush1.bf16.msra.mxu0 0
        %1391 = vmatprep.subr.bf16.mxu0 0
        %1392 = vmatpush1.bf16.msra.mxu0 0
        %1393 = vmatprep.subr.bf16.mxu0 0
        %1394 = vmatpush1.bf16.msra.mxu0 0
        %1395 = vmatprep.subr.bf16.mxu0 0
        %1396 = vmatpush1.bf16.msra.mxu0 0
        %1397 = vmatprep.subr.bf16.mxu0 0
        %1398 = vmatpush1.bf16.msra.mxu0 0
        %1399 = vmatprep.subr.bf16.mxu0 0
        %1400 = vmatpush1.bf16.msra.mxu0 %v1166
        %1401 = vmatprep.subr.bf16.mxu0 0
        %1402 = vmatpush1.bf16.msra.mxu0 %v1165
        %1403 = vmatprep.subr.bf16.mxu0 0
        %1404 = vmatpush2.bf16.msra.mxu0 0
        %1405 = vmatprep.subr.bf16.mxu0 0
        %1406 = vmatpush2.bf16.msra.mxu0 0
        %1407 = vmatprep.subr.bf16.mxu0 0
        %1408 = vmatpush2.bf16.msra.mxu0 0
        %1409 = vmatprep.subr.bf16.mxu0 0
        %1410 = vmatpush2.bf16.msra.mxu0 0
        %1411 = vmatprep.subr.bf16.mxu0 0
        %1412 = vmatpush2.bf16.msra.mxu0 0
        %1413 = vmatprep.subr.bf16.mxu0 0
        %1414 = vmatpush2.bf16.msra.mxu0 0
        %1415 = vmatprep.subr.bf16.mxu0 0
        %1416 = vmatpush2.bf16.msra.mxu0 0
        %1417 = vmatprep.subr.bf16.mxu0 0
        %1418 = vmatpush2.bf16.msra.mxu0 0
        %1419 = vmatprep.mubr.bf16.mxu0 0
        %1420 = vmatmul.mubr.bf16.gmra.mxu0 %v1382
        %v1421 = vpop.f32.mrf.mxu0
        %v1422 = vadd.f32 0.0, %v1421
        %v1423 = vpop.f32.mrf.mxu0
        %v1424 = vpop.f32.mrf.mxu0
        %v1425 = vadd.f32 0.0, %v1424
        %v1426 = vpop.f32.mrf.mxu0
        %1427 = vmatprep.mubr.bf16.mxu0 0
        %1428 = vmatmul.mubr.bf16.gmra.mxu0 %v1385
        %v1429 = vpop.f32.mrf.mxu0
        %v1430 = vadd.f32 0.0, %v1429
        %v1431 = vpop.f32.mrf.mxu0
        %v1432 = vpop.f32.mrf.mxu0
        %v1433 = vadd.f32 0.0, %v1432
        %v1434 = vpop.f32.mrf.mxu0
        %1435 = vdwg.mxu0
        %v1440 = vunpack.c.l.b16 %v790
        %v1441 = vunpack.c.l.b16 %v791
        %v1442 = vunpack.c.l.b16 %v792
        %v1443 = vunpack.c.l.b16 %v793
        %v1444 = vpack.c.b16 %v1441, %v1440
        %v1445 = vpack.c.b16 %v1443, %v1442
        %v1447 = vsel %vm1185, %v1444, 0
        %v1450 = vsel %vm1185, %v1445, 0
        %1452 = vmatprep.subr.bf16.mxu0 0
        %1453 = vmatpush1.bf16.msra.mxu0 0
        %1454 = vmatprep.subr.bf16.mxu0 0
        %1455 = vmatpush1.bf16.msra.mxu0 0
        %1456 = vmatprep.subr.bf16.mxu0 0
        %1457 = vmatpush1.bf16.msra.mxu0 0
        %1458 = vmatprep.subr.bf16.mxu0 0
        %1459 = vmatpush1.bf16.msra.mxu0 0
        %1460 = vmatprep.subr.bf16.mxu0 0
        %1461 = vmatpush1.bf16.msra.mxu0 0
        %1462 = vmatprep.subr.bf16.mxu0 0
        %1463 = vmatpush1.bf16.msra.mxu0 0
        %1464 = vmatprep.subr.bf16.mxu0 0
        %1465 = vmatpush1.bf16.msra.mxu0 %v1168
        %1466 = vmatprep.subr.bf16.mxu0 0
        %1467 = vmatpush1.bf16.msra.mxu0 %v1167
        %1468 = vmatprep.subr.bf16.mxu0 0
        %1469 = vmatpush2.bf16.msra.mxu0 0
        %1470 = vmatprep.subr.bf16.mxu0 0
        %1471 = vmatpush2.bf16.msra.mxu0 0
        %1472 = vmatprep.subr.bf16.mxu0 0
        %1473 = vmatpush2.bf16.msra.mxu0 0
        %1474 = vmatprep.subr.bf16.mxu0 0
        %1475 = vmatpush2.bf16.msra.mxu0 0
        %1476 = vmatprep.subr.bf16.mxu0 0
        %1477 = vmatpush2.bf16.msra.mxu0 0
        %1478 = vmatprep.subr.bf16.mxu0 0
        %1479 = vmatpush2.bf16.msra.mxu0 0
        %1480 = vmatprep.subr.bf16.mxu0 0
        %1481 = vmatpush2.bf16.msra.mxu0 0
        %1482 = vmatprep.subr.bf16.mxu0 0
        %1483 = vmatpush2.bf16.msra.mxu0 0
        %1484 = vmatprep.mubr.bf16.mxu0 0
        %1485 = vmatmul.mubr.bf16.gmra.mxu0 %v1447
        %v1486 = vpop.f32.mrf.mxu0
        %v1487 = vadd.f32 0.0, %v1486
        %v1488 = vpop.f32.mrf.mxu0
        %v1489 = vpop.f32.mrf.mxu0
        %v1490 = vadd.f32 0.0, %v1489
        %v1491 = vpop.f32.mrf.mxu0
        %1492 = vmatprep.mubr.bf16.mxu0 0
        %1493 = vmatmul.mubr.bf16.gmra.mxu0 %v1450
        %v1494 = vpop.f32.mrf.mxu0
        %v1495 = vadd.f32 0.0, %v1494
        %v1496 = vpop.f32.mrf.mxu0
        %v1497 = vpop.f32.mrf.mxu0
        %v1498 = vadd.f32 0.0, %v1497
        %v1499 = vpop.f32.mrf.mxu0
        %1500 = vdwg.mxu0
        %v1505 = vunpack.c.l.b16 %v794
        %v1506 = vunpack.c.l.b16 %v795
        %v1507 = vunpack.c.l.b16 %v796
        %v1508 = vunpack.c.l.b16 %v797
        %v1509 = vpack.c.b16 %v1506, %v1505
        %v1510 = vpack.c.b16 %v1508, %v1507
        %v1512 = vsel %vm1185, %v1509, 0
        %v1515 = vsel %vm1185, %v1510, 0
        %1517 = vmatprep.subr.bf16.mxu0 0
        %1518 = vmatpush1.bf16.msra.mxu0 0
        %1519 = vmatprep.subr.bf16.mxu0 0
        %1520 = vmatpush1.bf16.msra.mxu0 0
        %1521 = vmatprep.subr.bf16.mxu0 0
        %1522 = vmatpush1.bf16.msra.mxu0 0
        %1523 = vmatprep.subr.bf16.mxu0 0
        %1524 = vmatpush1.bf16.msra.mxu0 0
        %1525 = vmatprep.subr.bf16.mxu0 0
        %1526 = vmatpush1.bf16.msra.mxu0 0
        %1527 = vmatprep.subr.bf16.mxu0 0
        %1528 = vmatpush1.bf16.msra.mxu0 0
        %1529 = vmatprep.subr.bf16.mxu0 0
        %1530 = vmatpush1.bf16.msra.mxu0 %v1170
        %1531 = vmatprep.subr.bf16.mxu0 0
        %1532 = vmatpush1.bf16.msra.mxu0 %v1169
        %1533 = vmatprep.subr.bf16.mxu0 0
        %1534 = vmatpush2.bf16.msra.mxu0 0
        %1535 = vmatprep.subr.bf16.mxu0 0
        %1536 = vmatpush2.bf16.msra.mxu0 0
        %1537 = vmatprep.subr.bf16.mxu0 0
        %1538 = vmatpush2.bf16.msra.mxu0 0
        %1539 = vmatprep.subr.bf16.mxu0 0
        %1540 = vmatpush2.bf16.msra.mxu0 0
        %1541 = vmatprep.subr.bf16.mxu0 0
        %1542 = vmatpush2.bf16.msra.mxu0 0
        %1543 = vmatprep.subr.bf16.mxu0 0
        %1544 = vmatpush2.bf16.msra.mxu0 0
        %1545 = vmatprep.subr.bf16.mxu0 0
        %1546 = vmatpush2.bf16.msra.mxu0 0
        %1547 = vmatprep.subr.bf16.mxu0 0
        %1548 = vmatpush2.bf16.msra.mxu0 0
        %1549 = vmatprep.mubr.bf16.mxu0 0
        %1550 = vmatmul.mubr.bf16.gmra.mxu0 %v1512
        %v1551 = vpop.f32.mrf.mxu0
        %v1552 = vadd.f32 0.0, %v1551
        %v1553 = vpop.f32.mrf.mxu0
        %v1554 = vpop.f32.mrf.mxu0
        %v1555 = vadd.f32 0.0, %v1554
        %v1556 = vpop.f32.mrf.mxu0
        %1557 = vmatprep.mubr.bf16.mxu0 0
        %1558 = vmatmul.mubr.bf16.gmra.mxu0 %v1515
        %v1559 = vpop.f32.mrf.mxu0
        %v1560 = vadd.f32 0.0, %v1559
        %v1561 = vpop.f32.mrf.mxu0
        %v1562 = vpop.f32.mrf.mxu0
        %v1563 = vadd.f32 0.0, %v1562
        %v1564 = vpop.f32.mrf.mxu0
        %1565 = vdwg.mxu0
        %v1570 = vunpack.c.l.b16 %v798
        %v1571 = vunpack.c.l.b16 %v799
        %v1572 = vunpack.c.l.b16 %v800
        %v1573 = vunpack.c.l.b16 %v801
        %v1574 = vpack.c.b16 %v1571, %v1570
        %v1575 = vpack.c.b16 %v1573, %v1572
        %v1577 = vsel %vm1185, %v1574, 0
        %v1580 = vsel %vm1185, %v1575, 0
        %1582 = vmatprep.subr.bf16.mxu0 0
        %1583 = vmatpush1.bf16.msra.mxu0 0
        %1584 = vmatprep.subr.bf16.mxu0 0
        %1585 = vmatpush1.bf16.msra.mxu0 0
        %1586 = vmatprep.subr.bf16.mxu0 0
        %1587 = vmatpush1.bf16.msra.mxu0 0
        %1588 = vmatprep.subr.bf16.mxu0 0
        %1589 = vmatpush1.bf16.msra.mxu0 0
        %1590 = vmatprep.subr.bf16.mxu0 0
        %1591 = vmatpush1.bf16.msra.mxu0 0
        %1592 = vmatprep.subr.bf16.mxu0 0
        %1593 = vmatpush1.bf16.msra.mxu0 0
        %1594 = vmatprep.subr.bf16.mxu0 0
        %1595 = vmatpush1.bf16.msra.mxu0 %v1172
        %1596 = vmatprep.subr.bf16.mxu0 0
        %1597 = vmatpush1.bf16.msra.mxu0 %v1171
        %1598 = vmatprep.subr.bf16.mxu0 0
        %1599 = vmatpush2.bf16.msra.mxu0 0
        %1600 = vmatprep.subr.bf16.mxu0 0
        %1601 = vmatpush2.bf16.msra.mxu0 0
        %1602 = vmatprep.subr.bf16.mxu0 0
        %1603 = vmatpush2.bf16.msra.mxu0 0
        %1604 = vmatprep.subr.bf16.mxu0 0
        %1605 = vmatpush2.bf16.msra.mxu0 0
        %1606 = vmatprep.subr.bf16.mxu0 0
        %1607 = vmatpush2.bf16.msra.mxu0 0
        %1608 = vmatprep.subr.bf16.mxu0 0
        %1609 = vmatpush2.bf16.msra.mxu0 0
        %1610 = vmatprep.subr.bf16.mxu0 0
        %1611 = vmatpush2.bf16.msra.mxu0 0
        %1612 = vmatprep.subr.bf16.mxu0 0
        %1613 = vmatpush2.bf16.msra.mxu0 0
        %1614 = vmatprep.mubr.bf16.mxu0 0
        %1615 = vmatmul.mubr.bf16.gmra.mxu0 %v1577
        %v1616 = vpop.f32.mrf.mxu0
        %v1617 = vadd.f32 0.0, %v1616
        %v1618 = vpop.f32.mrf.mxu0
        %v1619 = vpop.f32.mrf.mxu0
        %v1620 = vadd.f32 0.0, %v1619
        %v1621 = vpop.f32.mrf.mxu0
        %1622 = vmatprep.mubr.bf16.mxu0 0
        %1623 = vmatmul.mubr.bf16.gmra.mxu0 %v1580
        %v1624 = vpop.f32.mrf.mxu0
        %v1625 = vadd.f32 0.0, %v1624
        %v1626 = vpop.f32.mrf.mxu0
        %v1627 = vpop.f32.mrf.mxu0
        %v1628 = vadd.f32 0.0, %v1627
        %v1629 = vpop.f32.mrf.mxu0
        %1630 = vdwg.mxu0
        %v1635 = vunpack.c.l.b16 %v802
        %v1636 = vunpack.c.l.b16 %v803
        %v1637 = vunpack.c.l.b16 %v804
        %v1638 = vunpack.c.l.b16 %v805
        %v1639 = vpack.c.b16 %v1636, %v1635
        %v1640 = vpack.c.b16 %v1638, %v1637
        %v1642 = vsel %vm1185, %v1639, 0
        %v1645 = vsel %vm1185, %v1640, 0
        %1647 = vmatprep.subr.bf16.mxu0 0
        %1648 = vmatpush1.bf16.msra.mxu0 0
        %1649 = vmatprep.subr.bf16.mxu0 0
        %1650 = vmatpush1.bf16.msra.mxu0 0
        %1651 = vmatprep.subr.bf16.mxu0 0
        %1652 = vmatpush1.bf16.msra.mxu0 0
        %1653 = vmatprep.subr.bf16.mxu0 0
        %1654 = vmatpush1.bf16.msra.mxu0 0
        %1655 = vmatprep.subr.bf16.mxu0 0
        %1656 = vmatpush1.bf16.msra.mxu0 0
        %1657 = vmatprep.subr.bf16.mxu0 0
        %1658 = vmatpush1.bf16.msra.mxu0 0
        %1659 = vmatprep.subr.bf16.mxu0 0
        %1660 = vmatpush1.bf16.msra.mxu0 %v1174
        %1661 = vmatprep.subr.bf16.mxu0 0
        %1662 = vmatpush1.bf16.msra.mxu0 %v1173
        %1663 = vmatprep.subr.bf16.mxu0 0
        %1664 = vmatpush2.bf16.msra.mxu0 0
        %1665 = vmatprep.subr.bf16.mxu0 0
        %1666 = vmatpush2.bf16.msra.mxu0 0
        %1667 = vmatprep.subr.bf16.mxu0 0
        %1668 = vmatpush2.bf16.msra.mxu0 0
        %1669 = vmatprep.subr.bf16.mxu0 0
        %1670 = vmatpush2.bf16.msra.mxu0 0
        %1671 = vmatprep.subr.bf16.mxu0 0
        %1672 = vmatpush2.bf16.msra.mxu0 0
        %1673 = vmatprep.subr.bf16.mxu0 0
        %1674 = vmatpush2.bf16.msra.mxu0 0
        %1675 = vmatprep.subr.bf16.mxu0 0
        %1676 = vmatpush2.bf16.msra.mxu0 0
        %1677 = vmatprep.subr.bf16.mxu0 0
        %1678 = vmatpush2.bf16.msra.mxu0 0
        %1679 = vmatprep.mubr.bf16.mxu0 0
        %1680 = vmatmul.mubr.bf16.gmra.mxu0 %v1642
        %v1681 = vpop.f32.mrf.mxu0
        %v1682 = vadd.f32 0.0, %v1681
        %v1683 = vpop.f32.mrf.mxu0
        %v1684 = vpop.f32.mrf.mxu0
        %v1685 = vadd.f32 0.0, %v1684
        %v1686 = vpop.f32.mrf.mxu0
        %1687 = vmatprep.mubr.bf16.mxu0 0
        %1688 = vmatmul.mubr.bf16.gmra.mxu0 %v1645
        %v1689 = vpop.f32.mrf.mxu0
        %v1690 = vadd.f32 0.0, %v1689
        %v1691 = vpop.f32.mrf.mxu0
        %v1692 = vpop.f32.mrf.mxu0
        %v1693 = vadd.f32 0.0, %v1692
        %v1694 = vpop.f32.mrf.mxu0
        %1695 = vdwg.mxu0
        %v1696 = vld [vmem:[%s5] sm:$0x1]
        %v1698 = vlaneseq
        %v1699 = vshrl.u32 %v1698, 7
        %v1700 = vsub.s32 0, %v1699
        %v1701 = vrot.slane %v1696, %v1700
        %v1703 = vadd.f32 %v1227, %v1701
        %v1704 = vadd.f32 %v1230, %v1701
        %v1705 = vadd.f32 %v1235, %v1701
        %v1706 = vadd.f32 %v1238, %v1701
        %v1707 = vadd.f32 %v1292, %v1701
        %v1708 = vadd.f32 %v1295, %v1701
        %v1709 = vadd.f32 %v1300, %v1701
        %v1710 = vadd.f32 %v1303, %v1701
        %v1711 = vadd.f32 %v1357, %v1701
        %v1712 = vadd.f32 %v1360, %v1701
        %v1713 = vadd.f32 %v1365, %v1701
        %v1714 = vadd.f32 %v1368, %v1701
        %v1715 = vadd.f32 %v1422, %v1701
        %v1716 = vadd.f32 %v1425, %v1701
        %v1717 = vadd.f32 %v1430, %v1701
        %v1718 = vadd.f32 %v1433, %v1701
        %v1719 = vadd.f32 %v1487, %v1701
        %v1720 = vadd.f32 %v1490, %v1701
        %v1721 = vadd.f32 %v1495, %v1701
        %v1722 = vadd.f32 %v1498, %v1701
        %v1723 = vadd.f32 %v1552, %v1701
        %v1724 = vadd.f32 %v1555, %v1701
        %v1725 = vadd.f32 %v1560, %v1701
        %v1726 = vadd.f32 %v1563, %v1701
        %v1727 = vadd.f32 %v1617, %v1701
        %v1728 = vadd.f32 %v1620, %v1701
        %v1729 = vadd.f32 %v1625, %v1701
        %v1730 = vadd.f32 %v1628, %v1701
        %v1731 = vadd.f32 %v1682, %v1701
        %v1732 = vadd.f32 %v1685, %v1701
        %v1733 = vadd.f32 %v1690, %v1701
        %v1734 = vadd.f32 %v1693, %v1701
        %v1735 = vmax.f32 %v1703, 0.0
        %v1736 = vmax.f32 %v1704, 0.0
        %v1737 = vmax.f32 %v1705, 0.0
        %v1738 = vmax.f32 %v1706, 0.0
        %v1739 = vmax.f32 %v1707, 0.0
        %v1740 = vmax.f32 %v1708, 0.0
        %v1741 = vmax.f32 %v1709, 0.0
        %v1742 = vmax.f32 %v1710, 0.0
        %v1743 = vmax.f32 %v1711, 0.0
        %v1744 = vmax.f32 %v1712, 0.0
        %v1745 = vmax.f32 %v1713, 0.0
        %v1746 = vmax.f32 %v1714, 0.0
        %v1747 = vmax.f32 %v1715, 0.0
        %v1748 = vmax.f32 %v1716, 0.0
        %v1749 = vmax.f32 %v1717, 0.0
        %v1750 = vmax.f32 %v1718, 0.0
        %v1751 = vmax.f32 %v1719, 0.0
        %v1752 = vmax.f32 %v1720, 0.0
        %v1753 = vmax.f32 %v1721, 0.0
        %v1754 = vmax.f32 %v1722, 0.0
        %v1755 = vmax.f32 %v1723, 0.0
        %v1756 = vmax.f32 %v1724, 0.0
        %v1757 = vmax.f32 %v1725, 0.0
        %v1758 = vmax.f32 %v1726, 0.0
        %v1759 = vmax.f32 %v1727, 0.0
        %v1760 = vmax.f32 %v1728, 0.0
        %v1761 = vmax.f32 %v1729, 0.0
        %v1762 = vmax.f32 %v1730, 0.0
        %v1763 = vmax.f32 %v1731, 0.0
        %v1764 = vmax.f32 %v1732, 0.0
        %v1765 = vmax.f32 %v1733, 0.0
        %v1766 = vmax.f32 %v1734, 0.0
        %v1767 = vpack.c.bf16 %v1736, %v1735
        %v1768 = vpack.c.bf16 %v1738, %v1737
        %v1769 = vpack.c.bf16 %v1740, %v1739
        %v1770 = vpack.c.bf16 %v1742, %v1741
        %v1771 = vpack.c.bf16 %v1744, %v1743
        %v1772 = vpack.c.bf16 %v1746, %v1745
        %v1773 = vpack.c.bf16 %v1748, %v1747
        %v1774 = vpack.c.bf16 %v1750, %v1749
        %v1775 = vpack.c.bf16 %v1752, %v1751
        %v1776 = vpack.c.bf16 %v1754, %v1753
        %v1777 = vpack.c.bf16 %v1756, %v1755
        %v1778 = vpack.c.bf16 %v1758, %v1757
        %v1779 = vpack.c.bf16 %v1760, %v1759
        %v1780 = vpack.c.bf16 %v1762, %v1761
        %v1781 = vpack.c.bf16 %v1764, %v1763
        %v1782 = vpack.c.bf16 %v1766, %v1765
        %v1783 = vld [vmem:[%s6] sm:$0xf]
        %v1784 = vld [vmem:[%s6 + $0x4] sm:$0xf]
        %v1785 = vld [vmem:[%s6 + $0x8] sm:$0xf]
        %v1786 = vld [vmem:[%s6 + $0xc] sm:$0xf]
        %v1787 = vld [vmem:[%s6 + $0x10] sm:$0xf]
        %v1788 = vld [vmem:[%s6 + $0x14] sm:$0xf]
        %v1789 = vld [vmem:[%s6 + $0x18] sm:$0xf]
        %v1790 = vld [vmem:[%s6 + $0x1c] sm:$0xf]
        %v1791 = vld [vmem:[%s6 + $0x20] sm:$0xf]
        %v1792 = vld [vmem:[%s6 + $0x24] sm:$0xf]
        %v1793 = vld [vmem:[%s6 + $0x28] sm:$0xf]
        %v1794 = vld [vmem:[%s6 + $0x2c] sm:$0xf]
        %v1795 = vld [vmem:[%s6 + $0x30] sm:$0xf]
        %v1796 = vld [vmem:[%s6 + $0x34] sm:$0xf]
        %v1797 = vld [vmem:[%s6 + $0x38] sm:$0xf]
        %v1798 = vld [vmem:[%s6 + $0x3c] sm:$0xf]
        %v1815 = vunpack.c.l.b16 %v1783
        %v1816 = vunpack.c.l.b16 %v1784
        %v1817 = vunpack.c.l.b16 %v1785
        %v1818 = vunpack.c.l.b16 %v1786
        %v1819 = vunpack.c.l.b16 %v1787
        %v1820 = vunpack.c.l.b16 %v1788
        %v1821 = vunpack.c.l.b16 %v1789
        %v1822 = vunpack.c.l.b16 %v1790
        %v1823 = vunpack.c.l.b16 %v1791
        %v1824 = vunpack.c.l.b16 %v1792
        %v1825 = vunpack.c.l.b16 %v1793
        %v1826 = vunpack.c.l.b16 %v1794
        %v1827 = vunpack.c.l.b16 %v1795
        %v1828 = vunpack.c.l.b16 %v1796
        %v1829 = vunpack.c.l.b16 %v1797
        %v1830 = vunpack.c.l.b16 %v1798
        %v1831 = vpack.c.b16 %v1816, %v1815
        %v1832 = vpack.c.b16 %v1818, %v1817
        %v1833 = vpack.c.b16 %v1820, %v1819
        %v1834 = vpack.c.b16 %v1822, %v1821
        %v1835 = vpack.c.b16 %v1824, %v1823
        %v1836 = vpack.c.b16 %v1826, %v1825
        %v1837 = vpack.c.b16 %v1828, %v1827
        %v1838 = vpack.c.b16 %v1830, %v1829
        %1847 = vmatprep.subr.bf16.mxu0 0
        %1848 = vmatpush1.bf16.msra.mxu0 %v1838
        %1849 = vmatprep.subr.bf16.mxu0 0
        %1850 = vmatpush1.bf16.msra.mxu0 %v1837
        %1851 = vmatprep.subr.bf16.mxu0 0
        %1852 = vmatpush1.bf16.msra.mxu0 %v1836
        %1853 = vmatprep.subr.bf16.mxu0 0
        %1854 = vmatpush1.bf16.msra.mxu0 %v1835
        %1855 = vmatprep.subr.bf16.mxu0 0
        %1856 = vmatpush1.bf16.msra.mxu0 %v1834
        %1857 = vmatprep.subr.bf16.mxu0 0
        %1858 = vmatpush1.bf16.msra.mxu0 %v1833
        %1859 = vmatprep.subr.bf16.mxu0 0
        %1860 = vmatpush1.bf16.msra.mxu0 %v1832
        %1861 = vmatprep.subr.bf16.mxu0 0
        %1862 = vmatpush1.bf16.msra.mxu0 %v1831
        %1863 = vmatprep.subr.bf16.mxu0 0
        %1864 = vmatpush2.bf16.msra.mxu0 0
        %1865 = vmatprep.subr.bf16.mxu0 0
        %1866 = vmatpush2.bf16.msra.mxu0 0
        %1867 = vmatprep.subr.bf16.mxu0 0
        %1868 = vmatpush2.bf16.msra.mxu0 0
        %1869 = vmatprep.subr.bf16.mxu0 0
        %1870 = vmatpush2.bf16.msra.mxu0 0
        %1871 = vmatprep.subr.bf16.mxu0 0
        %1872 = vmatpush2.bf16.msra.mxu0 0
        %1873 = vmatprep.subr.bf16.mxu0 0
        %1874 = vmatpush2.bf16.msra.mxu0 0
        %1875 = vmatprep.subr.bf16.mxu0 0
        %1876 = vmatpush2.bf16.msra.mxu0 0
        %1877 = vmatprep.subr.bf16.mxu0 0
        %1878 = vmatpush2.bf16.msra.mxu0 0
        %1879 = vmatprep.mubr.bf16.mxu0 0
        %1880 = vmatmul.mubr.bf16.gmra.mxu0 %v1767
        %v1881 = vpop.f32.mrf.mxu0
        %v1882 = vadd.f32 0.0, %v1881
        %v1883 = vpop.f32.mrf.mxu0
        %v1884 = vpop.f32.mrf.mxu0
        %v1885 = vadd.f32 0.0, %v1884
        %v1886 = vpop.f32.mrf.mxu0
        %1887 = vmatprep.mubr.bf16.mxu0 0
        %1888 = vmatmul.mubr.bf16.gmra.mxu0 %v1768
        %v1889 = vpop.f32.mrf.mxu0
        %v1890 = vadd.f32 0.0, %v1889
        %v1891 = vpop.f32.mrf.mxu0
        %v1892 = vpop.f32.mrf.mxu0
        %v1893 = vadd.f32 0.0, %v1892
        %v1894 = vpop.f32.mrf.mxu0
        %1895 = vmatprep.mubr.bf16.mxu0 0
        %1896 = vmatmul.mubr.bf16.gmra.mxu0 %v1769
        %v1897 = vpop.f32.mrf.mxu0
        %v1898 = vadd.f32 0.0, %v1897
        %v1899 = vpop.f32.mrf.mxu0
        %v1900 = vpop.f32.mrf.mxu0
        %v1901 = vadd.f32 0.0, %v1900
        %v1902 = vpop.f32.mrf.mxu0
        %1903 = vmatprep.mubr.bf16.mxu0 0
        %1904 = vmatmul.mubr.bf16.gmra.mxu0 %v1770
        %v1905 = vpop.f32.mrf.mxu0
        %v1906 = vadd.f32 0.0, %v1905
        %v1907 = vpop.f32.mrf.mxu0
        %v1908 = vpop.f32.mrf.mxu0
        %v1909 = vadd.f32 0.0, %v1908
        %v1910 = vpop.f32.mrf.mxu0
        %1911 = vmatprep.mubr.bf16.mxu0 0
        %1912 = vmatmul.mubr.bf16.gmra.mxu0 %v1771
        %v1913 = vpop.f32.mrf.mxu0
        %v1914 = vadd.f32 0.0, %v1913
        %v1915 = vpop.f32.mrf.mxu0
        %v1916 = vpop.f32.mrf.mxu0
        %v1917 = vadd.f32 0.0, %v1916
        %v1918 = vpop.f32.mrf.mxu0
        %1919 = vmatprep.mubr.bf16.mxu0 0
        %1920 = vmatmul.mubr.bf16.gmra.mxu0 %v1772
        %v1921 = vpop.f32.mrf.mxu0
        %v1922 = vadd.f32 0.0, %v1921
        %v1923 = vpop.f32.mrf.mxu0
        %v1924 = vpop.f32.mrf.mxu0
        %v1925 = vadd.f32 0.0, %v1924
        %v1926 = vpop.f32.mrf.mxu0
        %1927 = vmatprep.mubr.bf16.mxu0 0
        %1928 = vmatmul.mubr.bf16.gmra.mxu0 %v1773
        %v1929 = vpop.f32.mrf.mxu0
        %v1930 = vadd.f32 0.0, %v1929
        %v1931 = vpop.f32.mrf.mxu0
        %v1932 = vpop.f32.mrf.mxu0
        %v1933 = vadd.f32 0.0, %v1932
        %v1934 = vpop.f32.mrf.mxu0
        %1935 = vmatprep.mubr.bf16.mxu0 0
        %1936 = vmatmul.mubr.bf16.gmra.mxu0 %v1774
        %v1937 = vpop.f32.mrf.mxu0
        %v1938 = vadd.f32 0.0, %v1937
        %v1939 = vpop.f32.mrf.mxu0
        %v1940 = vpop.f32.mrf.mxu0
        %v1941 = vadd.f32 0.0, %v1940
        %v1942 = vpop.f32.mrf.mxu0
        %1943 = vmatprep.mubr.bf16.mxu0 0
        %1944 = vmatmul.mubr.bf16.gmra.mxu0 %v1775
        %v1945 = vpop.f32.mrf.mxu0
        %v1946 = vadd.f32 0.0, %v1945
        %v1947 = vpop.f32.mrf.mxu0
        %v1948 = vpop.f32.mrf.mxu0
        %v1949 = vadd.f32 0.0, %v1948
        %v1950 = vpop.f32.mrf.mxu0
        %1951 = vmatprep.mubr.bf16.mxu0 0
        %1952 = vmatmul.mubr.bf16.gmra.mxu0 %v1776
        %v1953 = vpop.f32.mrf.mxu0
        %v1954 = vadd.f32 0.0, %v1953
        %v1955 = vpop.f32.mrf.mxu0
        %v1956 = vpop.f32.mrf.mxu0
        %v1957 = vadd.f32 0.0, %v1956
        %v1958 = vpop.f32.mrf.mxu0
        %1959 = vmatprep.mubr.bf16.mxu0 0
        %1960 = vmatmul.mubr.bf16.gmra.mxu0 %v1777
        %v1961 = vpop.f32.mrf.mxu0
        %v1962 = vadd.f32 0.0, %v1961
        %v1963 = vpop.f32.mrf.mxu0
        %v1964 = vpop.f32.mrf.mxu0
        %v1965 = vadd.f32 0.0, %v1964
        %v1966 = vpop.f32.mrf.mxu0
        %1967 = vmatprep.mubr.bf16.mxu0 0
        %1968 = vmatmul.mubr.bf16.gmra.mxu0 %v1778
        %v1969 = vpop.f32.mrf.mxu0
        %v1970 = vadd.f32 0.0, %v1969
        %v1971 = vpop.f32.mrf.mxu0
        %v1972 = vpop.f32.mrf.mxu0
        %v1973 = vadd.f32 0.0, %v1972
        %v1974 = vpop.f32.mrf.mxu0
        %1975 = vmatprep.mubr.bf16.mxu0 0
        %1976 = vmatmul.mubr.bf16.gmra.mxu0 %v1779
        %v1977 = vpop.f32.mrf.mxu0
        %v1978 = vadd.f32 0.0, %v1977
        %v1979 = vpop.f32.mrf.mxu0
        %v1980 = vpop.f32.mrf.mxu0
        %v1981 = vadd.f32 0.0, %v1980
        %v1982 = vpop.f32.mrf.mxu0
        %1983 = vmatprep.mubr.bf16.mxu0 0
        %1984 = vmatmul.mubr.bf16.gmra.mxu0 %v1780
        %v1985 = vpop.f32.mrf.mxu0
        %v1986 = vadd.f32 0.0, %v1985
        %v1987 = vpop.f32.mrf.mxu0
        %v1988 = vpop.f32.mrf.mxu0
        %v1989 = vadd.f32 0.0, %v1988
        %v1990 = vpop.f32.mrf.mxu0
        %1991 = vmatprep.mubr.bf16.mxu0 0
        %1992 = vmatmul.mubr.bf16.gmra.mxu0 %v1781
        %v1993 = vpop.f32.mrf.mxu0
        %v1994 = vadd.f32 0.0, %v1993
        %v1995 = vpop.f32.mrf.mxu0
        %v1996 = vpop.f32.mrf.mxu0
        %v1997 = vadd.f32 0.0, %v1996
        %v1998 = vpop.f32.mrf.mxu0
        %1999 = vmatprep.mubr.bf16.mxu0 0
        %2000 = vmatmul.mubr.bf16.gmra.mxu0 %v1782
        %v2001 = vpop.f32.mrf.mxu0
        %v2002 = vadd.f32 0.0, %v2001
        %v2003 = vpop.f32.mrf.mxu0
        %v2004 = vpop.f32.mrf.mxu0
        %v2005 = vadd.f32 0.0, %v2004
        %v2006 = vpop.f32.mrf.mxu0
        %2007 = vdwg.mxu0
        %v2008 = vpack.c.bf16 %v1885, %v1882
        %v2009 = vpack.c.bf16 %v1893, %v1890
        %v2010 = vpack.c.bf16 %v1901, %v1898
        %v2011 = vpack.c.bf16 %v1909, %v1906
        %v2012 = vpack.c.bf16 %v1917, %v1914
        %v2013 = vpack.c.bf16 %v1925, %v1922
        %v2014 = vpack.c.bf16 %v1933, %v1930
        %v2015 = vpack.c.bf16 %v1941, %v1938
        %v2016 = vpack.c.bf16 %v1949, %v1946
        %v2017 = vpack.c.bf16 %v1957, %v1954
        %v2018 = vpack.c.bf16 %v1965, %v1962
        %v2019 = vpack.c.bf16 %v1973, %v1970
        %v2020 = vpack.c.bf16 %v1981, %v1978
        %v2021 = vpack.c.bf16 %v1989, %v1986
        %v2022 = vpack.c.bf16 %v1997, %v1994
        %v2023 = vpack.c.bf16 %v2005, %v2002
        %2024 = vmatprep.subr.bf16.mxu0 0
        %2025 = vmatpush1.bf16.msra.mxu0 0
        %2026 = vmatprep.subr.bf16.mxu0 0
        %2027 = vmatpush1.bf16.msra.mxu0 0
        %2028 = vmatprep.subr.bf16.mxu0 0
        %2029 = vmatpush1.bf16.msra.mxu0 0
        %2030 = vmatprep.subr.bf16.mxu0 0
        %2031 = vmatpush1.bf16.msra.mxu0 0
        %2032 = vmatprep.subr.bf16.mxu0 0
        %2033 = vmatpush1.bf16.msra.mxu0 0
        %2034 = vmatprep.subr.bf16.mxu0 0
        %2035 = vmatpush1.bf16.msra.mxu0 0
        %2036 = vmatprep.subr.bf16.mxu0 0
        %2037 = vmatpush1.bf16.msra.mxu0 %v2009
        %2038 = vmatprep.subr.bf16.mxu0 0
        %2039 = vmatpush1.bf16.msra.mxu0 %v2008
        %2040 = vmatprep.subr.bf16.mxu0 0
        %2041 = vmatpush2.bf16.msra.mxu0 0
        %2042 = vmatprep.subr.bf16.mxu0 0
        %2043 = vmatpush2.bf16.msra.mxu0 0
        %2044 = vmatprep.subr.bf16.mxu0 0
        %2045 = vmatpush2.bf16.msra.mxu0 0
        %2046 = vmatprep.subr.bf16.mxu0 0
        %2047 = vmatpush2.bf16.msra.mxu0 0
        %2048 = vmatprep.subr.bf16.mxu0 0
        %2049 = vmatpush2.bf16.msra.mxu0 0
        %2050 = vmatprep.subr.bf16.mxu0 0
        %2051 = vmatpush2.bf16.msra.mxu0 0
        %2052 = vmatprep.subr.bf16.mxu0 0
        %2053 = vmatpush2.bf16.msra.mxu0 0
        %2054 = vmatprep.subr.bf16.mxu0 0
        %2055 = vmatpush2.bf16.msra.mxu0 0
        %2056 = vmatprep.mubr.bf16.mxu0 0
        %2057 = vmatmul.mubr.bf16.gmra.mxu0 %v1187
        %v2058 = vpop.f32.mrf.mxu0
        %v2059 = vadd.f32 0.0, %v2058
        %v2060 = vpop.f32.mrf.mxu0
        %v2061 = vpop.f32.mrf.mxu0
        %v2062 = vadd.f32 0.0, %v2061
        %v2063 = vpop.f32.mrf.mxu0
        %2064 = vmatprep.mubr.bf16.mxu0 0
        %2065 = vmatmul.mubr.bf16.gmra.mxu0 %v1190
        %v2066 = vpop.f32.mrf.mxu0
        %v2067 = vadd.f32 0.0, %v2066
        %v2068 = vpop.f32.mrf.mxu0
        %v2069 = vpop.f32.mrf.mxu0
        %v2070 = vadd.f32 0.0, %v2069
        %v2071 = vpop.f32.mrf.mxu0
        %2072 = vdwg.mxu0
        %2073 = vmatprep.subr.bf16.mxu0 0
        %2074 = vmatpush1.bf16.msra.mxu0 0
        %2075 = vmatprep.subr.bf16.mxu0 0
        %2076 = vmatpush1.bf16.msra.mxu0 0
        %2077 = vmatprep.subr.bf16.mxu0 0
        %2078 = vmatpush1.bf16.msra.mxu0 0
        %2079 = vmatprep.subr.bf16.mxu0 0
        %2080 = vmatpush1.bf16.msra.mxu0 0
        %2081 = vmatprep.subr.bf16.mxu0 0
        %2082 = vmatpush1.bf16.msra.mxu0 0
        %2083 = vmatprep.subr.bf16.mxu0 0
        %2084 = vmatpush1.bf16.msra.mxu0 0
        %2085 = vmatprep.subr.bf16.mxu0 0
        %2086 = vmatpush1.bf16.msra.mxu0 %v2011
        %2087 = vmatprep.subr.bf16.mxu0 0
        %2088 = vmatpush1.bf16.msra.mxu0 %v2010
        %2089 = vmatprep.subr.bf16.mxu0 0
        %2090 = vmatpush2.bf16.msra.mxu0 0
        %2091 = vmatprep.subr.bf16.mxu0 0
        %2092 = vmatpush2.bf16.msra.mxu0 0
        %2093 = vmatprep.subr.bf16.mxu0 0
        %2094 = vmatpush2.bf16.msra.mxu0 0
        %2095 = vmatprep.subr.bf16.mxu0 0
        %2096 = vmatpush2.bf16.msra.mxu0 0
        %2097 = vmatprep.subr.bf16.mxu0 0
        %2098 = vmatpush2.bf16.msra.mxu0 0
        %2099 = vmatprep.subr.bf16.mxu0 0
        %2100 = vmatpush2.bf16.msra.mxu0 0
        %2101 = vmatprep.subr.bf16.mxu0 0
        %2102 = vmatpush2.bf16.msra.mxu0 0
        %2103 = vmatprep.subr.bf16.mxu0 0
        %2104 = vmatpush2.bf16.msra.mxu0 0
        %2105 = vmatprep.mubr.bf16.mxu0 0
        %2106 = vmatmul.mubr.bf16.gmra.mxu0 %v1252
        %v2107 = vpop.f32.mrf.mxu0
        %v2108 = vadd.f32 0.0, %v2107
        %v2109 = vpop.f32.mrf.mxu0
        %v2110 = vpop.f32.mrf.mxu0
        %v2111 = vadd.f32 0.0, %v2110
        %v2112 = vpop.f32.mrf.mxu0
        %2113 = vmatprep.mubr.bf16.mxu0 0
        %2114 = vmatmul.mubr.bf16.gmra.mxu0 %v1255
        %v2115 = vpop.f32.mrf.mxu0
        %v2116 = vadd.f32 0.0, %v2115
        %v2117 = vpop.f32.mrf.mxu0
        %v2118 = vpop.f32.mrf.mxu0
        %v2119 = vadd.f32 0.0, %v2118
        %v2120 = vpop.f32.mrf.mxu0
        %2121 = vdwg.mxu0
        %2122 = vmatprep.subr.bf16.mxu0 0
        %2123 = vmatpush1.bf16.msra.mxu0 0
        %2124 = vmatprep.subr.bf16.mxu0 0
        %2125 = vmatpush1.bf16.msra.mxu0 0
        %2126 = vmatprep.subr.bf16.mxu0 0
        %2127 = vmatpush1.bf16.msra.mxu0 0
        %2128 = vmatprep.subr.bf16.mxu0 0
        %2129 = vmatpush1.bf16.msra.mxu0 0
        %2130 = vmatprep.subr.bf16.mxu0 0
        %2131 = vmatpush1.bf16.msra.mxu0 0
        %2132 = vmatprep.subr.bf16.mxu0 0
        %2133 = vmatpush1.bf16.msra.mxu0 0
        %2134 = vmatprep.subr.bf16.mxu0 0
        %2135 = vmatpush1.bf16.msra.mxu0 %v2013
        %2136 = vmatprep.subr.bf16.mxu0 0
        %2137 = vmatpush1.bf16.msra.mxu0 %v2012
        %2138 = vmatprep.subr.bf16.mxu0 0
        %2139 = vmatpush2.bf16.msra.mxu0 0
        %2140 = vmatprep.subr.bf16.mxu0 0
        %2141 = vmatpush2.bf16.msra.mxu0 0
        %2142 = vmatprep.subr.bf16.mxu0 0
        %2143 = vmatpush2.bf16.msra.mxu0 0
        %2144 = vmatprep.subr.bf16.mxu0 0
        %2145 = vmatpush2.bf16.msra.mxu0 0
        %2146 = vmatprep.subr.bf16.mxu0 0
        %2147 = vmatpush2.bf16.msra.mxu0 0
        %2148 = vmatprep.subr.bf16.mxu0 0
        %2149 = vmatpush2.bf16.msra.mxu0 0
        %2150 = vmatprep.subr.bf16.mxu0 0
        %2151 = vmatpush2.bf16.msra.mxu0 0
        %2152 = vmatprep.subr.bf16.mxu0 0
        %2153 = vmatpush2.bf16.msra.mxu0 0
        %2154 = vmatprep.mubr.bf16.mxu0 0
        %2155 = vmatmul.mubr.bf16.gmra.mxu0 %v1317
        %v2156 = vpop.f32.mrf.mxu0
        %v2157 = vadd.f32 0.0, %v2156
        %v2158 = vpop.f32.mrf.mxu0
        %v2159 = vpop.f32.mrf.mxu0
        %v2160 = vadd.f32 0.0, %v2159
        %v2161 = vpop.f32.mrf.mxu0
        %2162 = vmatprep.mubr.bf16.mxu0 0
        %2163 = vmatmul.mubr.bf16.gmra.mxu0 %v1320
        %v2164 = vpop.f32.mrf.mxu0
        %v2165 = vadd.f32 0.0, %v2164
        %v2166 = vpop.f32.mrf.mxu0
        %v2167 = vpop.f32.mrf.mxu0
        %v2168 = vadd.f32 0.0, %v2167
        %v2169 = vpop.f32.mrf.mxu0
        %2170 = vdwg.mxu0
        %2171 = vmatprep.subr.bf16.mxu0 0
        %2172 = vmatpush1.bf16.msra.mxu0 0
        %2173 = vmatprep.subr.bf16.mxu0 0
        %2174 = vmatpush1.bf16.msra.mxu0 0
        %2175 = vmatprep.subr.bf16.mxu0 0
        %2176 = vmatpush1.bf16.msra.mxu0 0
        %2177 = vmatprep.subr.bf16.mxu0 0
        %2178 = vmatpush1.bf16.msra.mxu0 0
        %2179 = vmatprep.subr.bf16.mxu0 0
        %2180 = vmatpush1.bf16.msra.mxu0 0
        %2181 = vmatprep.subr.bf16.mxu0 0
        %2182 = vmatpush1.bf16.msra.mxu0 0
        %2183 = vmatprep.subr.bf16.mxu0 0
        %2184 = vmatpush1.bf16.msra.mxu0 %v2015
        %2185 = vmatprep.subr.bf16.mxu0 0
        %2186 = vmatpush1.bf16.msra.mxu0 %v2014
        %2187 = vmatprep.subr.bf16.mxu0 0
        %2188 = vmatpush2.bf16.msra.mxu0 0
        %2189 = vmatprep.subr.bf16.mxu0 0
        %2190 = vmatpush2.bf16.msra.mxu0 0
        %2191 = vmatprep.subr.bf16.mxu0 0
        %2192 = vmatpush2.bf16.msra.mxu0 0
        %2193 = vmatprep.subr.bf16.mxu0 0
        %2194 = vmatpush2.bf16.msra.mxu0 0
        %2195 = vmatprep.subr.bf16.mxu0 0
        %2196 = vmatpush2.bf16.msra.mxu0 0
        %2197 = vmatprep.subr.bf16.mxu0 0
        %2198 = vmatpush2.bf16.msra.mxu0 0
        %2199 = vmatprep.subr.bf16.mxu0 0
        %2200 = vmatpush2.bf16.msra.mxu0 0
        %2201 = vmatprep.subr.bf16.mxu0 0
        %2202 = vmatpush2.bf16.msra.mxu0 0
        %2203 = vmatprep.mubr.bf16.mxu0 0
        %2204 = vmatmul.mubr.bf16.gmra.mxu0 %v1382
        %v2205 = vpop.f32.mrf.mxu0
        %v2206 = vadd.f32 0.0, %v2205
        %v2207 = vpop.f32.mrf.mxu0
        %v2208 = vpop.f32.mrf.mxu0
        %v2209 = vadd.f32 0.0, %v2208
        %v2210 = vpop.f32.mrf.mxu0
        %2211 = vmatprep.mubr.bf16.mxu0 0
        %2212 = vmatmul.mubr.bf16.gmra.mxu0 %v1385
        %v2213 = vpop.f32.mrf.mxu0
        %v2214 = vadd.f32 0.0, %v2213
        %v2215 = vpop.f32.mrf.mxu0
        %v2216 = vpop.f32.mrf.mxu0
        %v2217 = vadd.f32 0.0, %v2216
        %v2218 = vpop.f32.mrf.mxu0
        %2219 = vdwg.mxu0
        %2220 = vmatprep.subr.bf16.mxu0 0
        %2221 = vmatpush1.bf16.msra.mxu0 0
        %2222 = vmatprep.subr.bf16.mxu0 0
        %2223 = vmatpush1.bf16.msra.mxu0 0
        %2224 = vmatprep.subr.bf16.mxu0 0
        %2225 = vmatpush1.bf16.msra.mxu0 0
        %2226 = vmatprep.subr.bf16.mxu0 0
        %2227 = vmatpush1.bf16.msra.mxu0 0
        %2228 = vmatprep.subr.bf16.mxu0 0
        %2229 = vmatpush1.bf16.msra.mxu0 0
        %2230 = vmatprep.subr.bf16.mxu0 0
        %2231 = vmatpush1.bf16.msra.mxu0 0
        %2232 = vmatprep.subr.bf16.mxu0 0
        %2233 = vmatpush1.bf16.msra.mxu0 %v2017
        %2234 = vmatprep.subr.bf16.mxu0 0
        %2235 = vmatpush1.bf16.msra.mxu0 %v2016
        %2236 = vmatprep.subr.bf16.mxu0 0
        %2237 = vmatpush2.bf16.msra.mxu0 0
        %2238 = vmatprep.subr.bf16.mxu0 0
        %2239 = vmatpush2.bf16.msra.mxu0 0
        %2240 = vmatprep.subr.bf16.mxu0 0
        %2241 = vmatpush2.bf16.msra.mxu0 0
        %2242 = vmatprep.subr.bf16.mxu0 0
        %2243 = vmatpush2.bf16.msra.mxu0 0
        %2244 = vmatprep.subr.bf16.mxu0 0
        %2245 = vmatpush2.bf16.msra.mxu0 0
        %2246 = vmatprep.subr.bf16.mxu0 0
        %2247 = vmatpush2.bf16.msra.mxu0 0
        %2248 = vmatprep.subr.bf16.mxu0 0
        %2249 = vmatpush2.bf16.msra.mxu0 0
        %2250 = vmatprep.subr.bf16.mxu0 0
        %2251 = vmatpush2.bf16.msra.mxu0 0
        %2252 = vmatprep.mubr.bf16.mxu0 0
        %2253 = vmatmul.mubr.bf16.gmra.mxu0 %v1447
        %v2254 = vpop.f32.mrf.mxu0
        %v2255 = vadd.f32 0.0, %v2254
        %v2256 = vpop.f32.mrf.mxu0
        %v2257 = vpop.f32.mrf.mxu0
        %v2258 = vadd.f32 0.0, %v2257
        %v2259 = vpop.f32.mrf.mxu0
        %2260 = vmatprep.mubr.bf16.mxu0 0
        %2261 = vmatmul.mubr.bf16.gmra.mxu0 %v1450
        %v2262 = vpop.f32.mrf.mxu0
        %v2263 = vadd.f32 0.0, %v2262
        %v2264 = vpop.f32.mrf.mxu0
        %v2265 = vpop.f32.mrf.mxu0
        %v2266 = vadd.f32 0.0, %v2265
        %v2267 = vpop.f32.mrf.mxu0
        %2268 = vdwg.mxu0
        %2269 = vmatprep.subr.bf16.mxu0 0
        %2270 = vmatpush1.bf16.msra.mxu0 0
        %2271 = vmatprep.subr.bf16.mxu0 0
        %2272 = vmatpush1.bf16.msra.mxu0 0
        %2273 = vmatprep.subr.bf16.mxu0 0
        %2274 = vmatpush1.bf16.msra.mxu0 0
        %2275 = vmatprep.subr.bf16.mxu0 0
        %2276 = vmatpush1.bf16.msra.mxu0 0
        %2277 = vmatprep.subr.bf16.mxu0 0
        %2278 = vmatpush1.bf16.msra.mxu0 0
        %2279 = vmatprep.subr.bf16.mxu0 0
        %2280 = vmatpush1.bf16.msra.mxu0 0
        %2281 = vmatprep.subr.bf16.mxu0 0
        %2282 = vmatpush1.bf16.msra.mxu0 %v2019
        %2283 = vmatprep.subr.bf16.mxu0 0
        %2284 = vmatpush1.bf16.msra.mxu0 %v2018
        %2285 = vmatprep.subr.bf16.mxu0 0
        %2286 = vmatpush2.bf16.msra.mxu0 0
        %2287 = vmatprep.subr.bf16.mxu0 0
        %2288 = vmatpush2.bf16.msra.mxu0 0
        %2289 = vmatprep.subr.bf16.mxu0 0
        %2290 = vmatpush2.bf16.msra.mxu0 0
        %2291 = vmatprep.subr.bf16.mxu0 0
        %2292 = vmatpush2.bf16.msra.mxu0 0
        %2293 = vmatprep.subr.bf16.mxu0 0
        %2294 = vmatpush2.bf16.msra.mxu0 0
        %2295 = vmatprep.subr.bf16.mxu0 0
        %2296 = vmatpush2.bf16.msra.mxu0 0
        %2297 = vmatprep.subr.bf16.mxu0 0
        %2298 = vmatpush2.bf16.msra.mxu0 0
        %2299 = vmatprep.subr.bf16.mxu0 0
        %2300 = vmatpush2.bf16.msra.mxu0 0
        %2301 = vmatprep.mubr.bf16.mxu0 0
        %2302 = vmatmul.mubr.bf16.gmra.mxu0 %v1512
        %v2303 = vpop.f32.mrf.mxu0
        %v2304 = vadd.f32 0.0, %v2303
        %v2305 = vpop.f32.mrf.mxu0
        %v2306 = vpop.f32.mrf.mxu0
        %v2307 = vadd.f32 0.0, %v2306
        %v2308 = vpop.f32.mrf.mxu0
        %2309 = vmatprep.mubr.bf16.mxu0 0
        %2310 = vmatmul.mubr.bf16.gmra.mxu0 %v1515
        %v2311 = vpop.f32.mrf.mxu0
        %v2312 = vadd.f32 0.0, %v2311
        %v2313 = vpop.f32.mrf.mxu0
        %v2314 = vpop.f32.mrf.mxu0
        %v2315 = vadd.f32 0.0, %v2314
        %v2316 = vpop.f32.mrf.mxu0
        %2317 = vdwg.mxu0
        %2318 = vmatprep.subr.bf16.mxu0 0
        %2319 = vmatpush1.bf16.msra.mxu0 0
        %2320 = vmatprep.subr.bf16.mxu0 0
        %2321 = vmatpush1.bf16.msra.mxu0 0
        %2322 = vmatprep.subr.bf16.mxu0 0
        %2323 = vmatpush1.bf16.msra.mxu0 0
        %2324 = vmatprep.subr.bf16.mxu0 0
        %2325 = vmatpush1.bf16.msra.mxu0 0
        %2326 = vmatprep.subr.bf16.mxu0 0
        %2327 = vmatpush1.bf16.msra.mxu0 0
        %2328 = vmatprep.subr.bf16.mxu0 0
        %2329 = vmatpush1.bf16.msra.mxu0 0
        %2330 = vmatprep.subr.bf16.mxu0 0
        %2331 = vmatpush1.bf16.msra.mxu0 %v2021
        %2332 = vmatprep.subr.bf16.mxu0 0
        %2333 = vmatpush1.bf16.msra.mxu0 %v2020
        %2334 = vmatprep.subr.bf16.mxu0 0
        %2335 = vmatpush2.bf16.msra.mxu0 0
        %2336 = vmatprep.subr.bf16.mxu0 0
        %2337 = vmatpush2.bf16.msra.mxu0 0
        %2338 = vmatprep.subr.bf16.mxu0 0
        %2339 = vmatpush2.bf16.msra.mxu0 0
        %2340 = vmatprep.subr.bf16.mxu0 0
        %2341 = vmatpush2.bf16.msra.mxu0 0
        %2342 = vmatprep.subr.bf16.mxu0 0
        %2343 = vmatpush2.bf16.msra.mxu0 0
        %2344 = vmatprep.subr.bf16.mxu0 0
        %2345 = vmatpush2.bf16.msra.mxu0 0
        %2346 = vmatprep.subr.bf16.mxu0 0
        %2347 = vmatpush2.bf16.msra.mxu0 0
        %2348 = vmatprep.subr.bf16.mxu0 0
        %2349 = vmatpush2.bf16.msra.mxu0 0
        %2350 = vmatprep.mubr.bf16.mxu0 0
        %2351 = vmatmul.mubr.bf16.gmra.mxu0 %v1577
        %v2352 = vpop.f32.mrf.mxu0
        %v2353 = vadd.f32 0.0, %v2352
        %v2354 = vpop.f32.mrf.mxu0
        %v2355 = vpop.f32.mrf.mxu0
        %v2356 = vadd.f32 0.0, %v2355
        %v2357 = vpop.f32.mrf.mxu0
        %2358 = vmatprep.mubr.bf16.mxu0 0
        %2359 = vmatmul.mubr.bf16.gmra.mxu0 %v1580
        %v2360 = vpop.f32.mrf.mxu0
        %v2361 = vadd.f32 0.0, %v2360
        %v2362 = vpop.f32.mrf.mxu0
        %v2363 = vpop.f32.mrf.mxu0
        %v2364 = vadd.f32 0.0, %v2363
        %v2365 = vpop.f32.mrf.mxu0
        %2366 = vdwg.mxu0
        %2367 = vmatprep.subr.bf16.mxu0 0
        %2368 = vmatpush1.bf16.msra.mxu0 0
        %2369 = vmatprep.subr.bf16.mxu0 0
        %2370 = vmatpush1.bf16.msra.mxu0 0
        %2371 = vmatprep.subr.bf16.mxu0 0
        %2372 = vmatpush1.bf16.msra.mxu0 0
        %2373 = vmatprep.subr.bf16.mxu0 0
        %2374 = vmatpush1.bf16.msra.mxu0 0
        %2375 = vmatprep.subr.bf16.mxu0 0
        %2376 = vmatpush1.bf16.msra.mxu0 0
        %2377 = vmatprep.subr.bf16.mxu0 0
        %2378 = vmatpush1.bf16.msra.mxu0 0
        %2379 = vmatprep.subr.bf16.mxu0 0
        %2380 = vmatpush1.bf16.msra.mxu0 %v2023
        %2381 = vmatprep.subr.bf16.mxu0 0
        %2382 = vmatpush1.bf16.msra.mxu0 %v2022
        %2383 = vmatprep.subr.bf16.mxu0 0
        %2384 = vmatpush2.bf16.msra.mxu0 0
        %2385 = vmatprep.subr.bf16.mxu0 0
        %2386 = vmatpush2.bf16.msra.mxu0 0
        %2387 = vmatprep.subr.bf16.mxu0 0
        %2388 = vmatpush2.bf16.msra.mxu0 0
        %2389 = vmatprep.subr.bf16.mxu0 0
        %2390 = vmatpush2.bf16.msra.mxu0 0
        %2391 = vmatprep.subr.bf16.mxu0 0
        %2392 = vmatpush2.bf16.msra.mxu0 0
        %2393 = vmatprep.subr.bf16.mxu0 0
        %2394 = vmatpush2.bf16.msra.mxu0 0
        %2395 = vmatprep.subr.bf16.mxu0 0
        %2396 = vmatpush2.bf16.msra.mxu0 0
        %2397 = vmatprep.subr.bf16.mxu0 0
        %2398 = vmatpush2.bf16.msra.mxu0 0
        %2399 = vmatprep.mubr.bf16.mxu0 0
        %2400 = vmatmul.mubr.bf16.gmra.mxu0 %v1642
        %v2401 = vpop.f32.mrf.mxu0
        %v2402 = vadd.f32 0.0, %v2401
        %v2403 = vpop.f32.mrf.mxu0
        %v2404 = vpop.f32.mrf.mxu0
        %v2405 = vadd.f32 0.0, %v2404
        %v2406 = vpop.f32.mrf.mxu0
        %2407 = vmatprep.mubr.bf16.mxu0 0
        %2408 = vmatmul.mubr.bf16.gmra.mxu0 %v1645
        %v2409 = vpop.f32.mrf.mxu0
        %v2410 = vadd.f32 0.0, %v2409
        %v2411 = vpop.f32.mrf.mxu0
        %v2412 = vpop.f32.mrf.mxu0
        %v2413 = vadd.f32 0.0, %v2412
        %v2414 = vpop.f32.mrf.mxu0
        %2415 = vdwg.mxu0
        %v2416 = vld [vmem:[%s7] sm:$0x1]
        %v2418 = vlaneseq
        %v2419 = vshrl.u32 %v2418, 7
        %v2420 = vsub.s32 0, %v2419
        %v2421 = vrot.slane %v2416, %v2420
        %v2423 = vadd.f32 %v2059, %v2421
        %v2424 = vadd.f32 %v2062, %v2421
        %v2425 = vadd.f32 %v2067, %v2421
        %v2426 = vadd.f32 %v2070, %v2421
        %v2427 = vadd.f32 %v2108, %v2421
        %v2428 = vadd.f32 %v2111, %v2421
        %v2429 = vadd.f32 %v2116, %v2421
        %v2430 = vadd.f32 %v2119, %v2421
        %v2431 = vadd.f32 %v2157, %v2421
        %v2432 = vadd.f32 %v2160, %v2421
        %v2433 = vadd.f32 %v2165, %v2421
        %v2434 = vadd.f32 %v2168, %v2421
        %v2435 = vadd.f32 %v2206, %v2421
        %v2436 = vadd.f32 %v2209, %v2421
        %v2437 = vadd.f32 %v2214, %v2421
        %v2438 = vadd.f32 %v2217, %v2421
        %v2439 = vadd.f32 %v2255, %v2421
        %v2440 = vadd.f32 %v2258, %v2421
        %v2441 = vadd.f32 %v2263, %v2421
        %v2442 = vadd.f32 %v2266, %v2421
        %v2443 = vadd.f32 %v2304, %v2421
        %v2444 = vadd.f32 %v2307, %v2421
        %v2445 = vadd.f32 %v2312, %v2421
        %v2446 = vadd.f32 %v2315, %v2421
        %v2447 = vadd.f32 %v2353, %v2421
        %v2448 = vadd.f32 %v2356, %v2421
        %v2449 = vadd.f32 %v2361, %v2421
        %v2450 = vadd.f32 %v2364, %v2421
        %v2451 = vadd.f32 %v2402, %v2421
        %v2452 = vadd.f32 %v2405, %v2421
        %v2453 = vadd.f32 %v2410, %v2421
        %v2454 = vadd.f32 %v2413, %v2421
        %v2455 = vmax.f32 %v2423, 0.0
        %v2456 = vmax.f32 %v2424, 0.0
        %v2457 = vmax.f32 %v2425, 0.0
        %v2458 = vmax.f32 %v2426, 0.0
        %v2459 = vmax.f32 %v2427, 0.0
        %v2460 = vmax.f32 %v2428, 0.0
        %v2461 = vmax.f32 %v2429, 0.0
        %v2462 = vmax.f32 %v2430, 0.0
        %v2463 = vmax.f32 %v2431, 0.0
        %v2464 = vmax.f32 %v2432, 0.0
        %v2465 = vmax.f32 %v2433, 0.0
        %v2466 = vmax.f32 %v2434, 0.0
        %v2467 = vmax.f32 %v2435, 0.0
        %v2468 = vmax.f32 %v2436, 0.0
        %v2469 = vmax.f32 %v2437, 0.0
        %v2470 = vmax.f32 %v2438, 0.0
        %v2471 = vmax.f32 %v2439, 0.0
        %v2472 = vmax.f32 %v2440, 0.0
        %v2473 = vmax.f32 %v2441, 0.0
        %v2474 = vmax.f32 %v2442, 0.0
        %v2475 = vmax.f32 %v2443, 0.0
        %v2476 = vmax.f32 %v2444, 0.0
        %v2477 = vmax.f32 %v2445, 0.0
        %v2478 = vmax.f32 %v2446, 0.0
        %v2479 = vmax.f32 %v2447, 0.0
        %v2480 = vmax.f32 %v2448, 0.0
        %v2481 = vmax.f32 %v2449, 0.0
        %v2482 = vmax.f32 %v2450, 0.0
        %v2483 = vmax.f32 %v2451, 0.0
        %v2484 = vmax.f32 %v2452, 0.0
        %v2485 = vmax.f32 %v2453, 0.0
        %v2486 = vmax.f32 %v2454, 0.0
        %v2487 = vpack.c.bf16 %v2456, %v2455
        %v2488 = vpack.c.bf16 %v2458, %v2457
        %v2489 = vpack.c.bf16 %v2460, %v2459
        %v2490 = vpack.c.bf16 %v2462, %v2461
        %v2491 = vpack.c.bf16 %v2464, %v2463
        %v2492 = vpack.c.bf16 %v2466, %v2465
        %v2493 = vpack.c.bf16 %v2468, %v2467
        %v2494 = vpack.c.bf16 %v2470, %v2469
        %v2495 = vpack.c.bf16 %v2472, %v2471
        %v2496 = vpack.c.bf16 %v2474, %v2473
        %v2497 = vpack.c.bf16 %v2476, %v2475
        %v2498 = vpack.c.bf16 %v2478, %v2477
        %v2499 = vpack.c.bf16 %v2480, %v2479
        %v2500 = vpack.c.bf16 %v2482, %v2481
        %v2501 = vpack.c.bf16 %v2484, %v2483
        %v2502 = vpack.c.bf16 %v2486, %v2485
        %v2503 = vld [vmem:[%s8] sm:$0xf]
        %v2504 = vld [vmem:[%s8 + $0x4] sm:$0xf]
        %v2505 = vld [vmem:[%s8 + $0x8] sm:$0xf]
        %v2506 = vld [vmem:[%s8 + $0xc] sm:$0xf]
        %v2507 = vld [vmem:[%s8 + $0x10] sm:$0xf]
        %v2508 = vld [vmem:[%s8 + $0x14] sm:$0xf]
        %v2509 = vld [vmem:[%s8 + $0x18] sm:$0xf]
        %v2510 = vld [vmem:[%s8 + $0x1c] sm:$0xf]
        %v2511 = vld [vmem:[%s8 + $0x20] sm:$0xf]
        %v2512 = vld [vmem:[%s8 + $0x24] sm:$0xf]
        %v2513 = vld [vmem:[%s8 + $0x28] sm:$0xf]
        %v2514 = vld [vmem:[%s8 + $0x2c] sm:$0xf]
        %v2515 = vld [vmem:[%s8 + $0x30] sm:$0xf]
        %v2516 = vld [vmem:[%s8 + $0x34] sm:$0xf]
        %v2517 = vld [vmem:[%s8 + $0x38] sm:$0xf]
        %v2518 = vld [vmem:[%s8 + $0x3c] sm:$0xf]
        %v2535 = vunpack.c.l.b16 %v2503
        %v2536 = vunpack.c.l.b16 %v2504
        %v2537 = vunpack.c.l.b16 %v2505
        %v2538 = vunpack.c.l.b16 %v2506
        %v2539 = vunpack.c.l.b16 %v2507
        %v2540 = vunpack.c.l.b16 %v2508
        %v2541 = vunpack.c.l.b16 %v2509
        %v2542 = vunpack.c.l.b16 %v2510
        %v2543 = vunpack.c.l.b16 %v2511
        %v2544 = vunpack.c.l.b16 %v2512
        %v2545 = vunpack.c.l.b16 %v2513
        %v2546 = vunpack.c.l.b16 %v2514
        %v2547 = vunpack.c.l.b16 %v2515
        %v2548 = vunpack.c.l.b16 %v2516
        %v2549 = vunpack.c.l.b16 %v2517
        %v2550 = vunpack.c.l.b16 %v2518
        %v2551 = vpack.c.b16 %v2536, %v2535
        %v2552 = vpack.c.b16 %v2538, %v2537
        %v2553 = vpack.c.b16 %v2540, %v2539
        %v2554 = vpack.c.b16 %v2542, %v2541
        %v2555 = vpack.c.b16 %v2544, %v2543
        %v2556 = vpack.c.b16 %v2546, %v2545
        %v2557 = vpack.c.b16 %v2548, %v2547
        %v2558 = vpack.c.b16 %v2550, %v2549
        %2567 = vmatprep.subr.bf16.mxu0 0
        %2568 = vmatpush1.bf16.msra.mxu0 %v2558
        %2569 = vmatprep.subr.bf16.mxu0 0
        %2570 = vmatpush1.bf16.msra.mxu0 %v2557
        %2571 = vmatprep.subr.bf16.mxu0 0
        %2572 = vmatpush1.bf16.msra.mxu0 %v2556
        %2573 = vmatprep.subr.bf16.mxu0 0
        %2574 = vmatpush1.bf16.msra.mxu0 %v2555
        %2575 = vmatprep.subr.bf16.mxu0 0
        %2576 = vmatpush1.bf16.msra.mxu0 %v2554
        %2577 = vmatprep.subr.bf16.mxu0 0
        %2578 = vmatpush1.bf16.msra.mxu0 %v2553
        %2579 = vmatprep.subr.bf16.mxu0 0
        %2580 = vmatpush1.bf16.msra.mxu0 %v2552
        %2581 = vmatprep.subr.bf16.mxu0 0
        %2582 = vmatpush1.bf16.msra.mxu0 %v2551
        %2583 = vmatprep.subr.bf16.mxu0 0
        %2584 = vmatpush2.bf16.msra.mxu0 0
        %2585 = vmatprep.subr.bf16.mxu0 0
        %2586 = vmatpush2.bf16.msra.mxu0 0
        %2587 = vmatprep.subr.bf16.mxu0 0
        %2588 = vmatpush2.bf16.msra.mxu0 0
        %2589 = vmatprep.subr.bf16.mxu0 0
        %2590 = vmatpush2.bf16.msra.mxu0 0
        %2591 = vmatprep.subr.bf16.mxu0 0
        %2592 = vmatpush2.bf16.msra.mxu0 0
        %2593 = vmatprep.subr.bf16.mxu0 0
        %2594 = vmatpush2.bf16.msra.mxu0 0
        %2595 = vmatprep.subr.bf16.mxu0 0
        %2596 = vmatpush2.bf16.msra.mxu0 0
        %2597 = vmatprep.subr.bf16.mxu0 0
        %2598 = vmatpush2.bf16.msra.mxu0 0
        %2599 = vmatprep.mubr.bf16.mxu0 0
        %2600 = vmatmul.mubr.bf16.gmra.mxu0 %v2487
        %v2601 = vpop.f32.mrf.mxu0
        %v2602 = vadd.f32 0.0, %v2601
        %v2603 = vpop.f32.mrf.mxu0
        %v2604 = vpop.f32.mrf.mxu0
        %v2605 = vadd.f32 0.0, %v2604
        %v2606 = vpop.f32.mrf.mxu0
        %2607 = vmatprep.mubr.bf16.mxu0 0
        %2608 = vmatmul.mubr.bf16.gmra.mxu0 %v2488
        %v2609 = vpop.f32.mrf.mxu0
        %v2610 = vadd.f32 0.0, %v2609
        %v2611 = vpop.f32.mrf.mxu0
        %v2612 = vpop.f32.mrf.mxu0
        %v2613 = vadd.f32 0.0, %v2612
        %v2614 = vpop.f32.mrf.mxu0
        %2615 = vmatprep.mubr.bf16.mxu0 0
        %2616 = vmatmul.mubr.bf16.gmra.mxu0 %v2489
        %v2617 = vpop.f32.mrf.mxu0
        %v2618 = vadd.f32 0.0, %v2617
        %v2619 = vpop.f32.mrf.mxu0
        %v2620 = vpop.f32.mrf.mxu0
        %v2621 = vadd.f32 0.0, %v2620
        %v2622 = vpop.f32.mrf.mxu0
        %2623 = vmatprep.mubr.bf16.mxu0 0
        %2624 = vmatmul.mubr.bf16.gmra.mxu0 %v2490
        %v2625 = vpop.f32.mrf.mxu0
        %v2626 = vadd.f32 0.0, %v2625
        %v2627 = vpop.f32.mrf.mxu0
        %v2628 = vpop.f32.mrf.mxu0
        %v2629 = vadd.f32 0.0, %v2628
        %v2630 = vpop.f32.mrf.mxu0
        %2631 = vmatprep.mubr.bf16.mxu0 0
        %2632 = vmatmul.mubr.bf16.gmra.mxu0 %v2491
        %v2633 = vpop.f32.mrf.mxu0
        %v2634 = vadd.f32 0.0, %v2633
        %v2635 = vpop.f32.mrf.mxu0
        %v2636 = vpop.f32.mrf.mxu0
        %v2637 = vadd.f32 0.0, %v2636
        %v2638 = vpop.f32.mrf.mxu0
        %2639 = vmatprep.mubr.bf16.mxu0 0
        %2640 = vmatmul.mubr.bf16.gmra.mxu0 %v2492
        %v2641 = vpop.f32.mrf.mxu0
        %v2642 = vadd.f32 0.0, %v2641
        %v2643 = vpop.f32.mrf.mxu0
        %v2644 = vpop.f32.mrf.mxu0
        %v2645 = vadd.f32 0.0, %v2644
        %v2646 = vpop.f32.mrf.mxu0
        %2647 = vmatprep.mubr.bf16.mxu0 0
        %2648 = vmatmul.mubr.bf16.gmra.mxu0 %v2493
        %v2649 = vpop.f32.mrf.mxu0
        %v2650 = vadd.f32 0.0, %v2649
        %v2651 = vpop.f32.mrf.mxu0
        %v2652 = vpop.f32.mrf.mxu0
        %v2653 = vadd.f32 0.0, %v2652
        %v2654 = vpop.f32.mrf.mxu0
        %2655 = vmatprep.mubr.bf16.mxu0 0
        %2656 = vmatmul.mubr.bf16.gmra.mxu0 %v2494
        %v2657 = vpop.f32.mrf.mxu0
        %v2658 = vadd.f32 0.0, %v2657
        %v2659 = vpop.f32.mrf.mxu0
        %v2660 = vpop.f32.mrf.mxu0
        %v2661 = vadd.f32 0.0, %v2660
        %v2662 = vpop.f32.mrf.mxu0
        %2663 = vmatprep.mubr.bf16.mxu0 0
        %2664 = vmatmul.mubr.bf16.gmra.mxu0 %v2495
        %v2665 = vpop.f32.mrf.mxu0
        %v2666 = vadd.f32 0.0, %v2665
        %v2667 = vpop.f32.mrf.mxu0
        %v2668 = vpop.f32.mrf.mxu0
        %v2669 = vadd.f32 0.0, %v2668
        %v2670 = vpop.f32.mrf.mxu0
        %2671 = vmatprep.mubr.bf16.mxu0 0
        %2672 = vmatmul.mubr.bf16.gmra.mxu0 %v2496
        %v2673 = vpop.f32.mrf.mxu0
        %v2674 = vadd.f32 0.0, %v2673
        %v2675 = vpop.f32.mrf.mxu0
        %v2676 = vpop.f32.mrf.mxu0
        %v2677 = vadd.f32 0.0, %v2676
        %v2678 = vpop.f32.mrf.mxu0
        %2679 = vmatprep.mubr.bf16.mxu0 0
        %2680 = vmatmul.mubr.bf16.gmra.mxu0 %v2497
        %v2681 = vpop.f32.mrf.mxu0
        %v2682 = vadd.f32 0.0, %v2681
        %v2683 = vpop.f32.mrf.mxu0
        %v2684 = vpop.f32.mrf.mxu0
        %v2685 = vadd.f32 0.0, %v2684
        %v2686 = vpop.f32.mrf.mxu0
        %2687 = vmatprep.mubr.bf16.mxu0 0
        %2688 = vmatmul.mubr.bf16.gmra.mxu0 %v2498
        %v2689 = vpop.f32.mrf.mxu0
        %v2690 = vadd.f32 0.0, %v2689
        %v2691 = vpop.f32.mrf.mxu0
        %v2692 = vpop.f32.mrf.mxu0
        %v2693 = vadd.f32 0.0, %v2692
        %v2694 = vpop.f32.mrf.mxu0
        %2695 = vmatprep.mubr.bf16.mxu0 0
        %2696 = vmatmul.mubr.bf16.gmra.mxu0 %v2499
        %v2697 = vpop.f32.mrf.mxu0
        %v2698 = vadd.f32 0.0, %v2697
        %v2699 = vpop.f32.mrf.mxu0
        %v2700 = vpop.f32.mrf.mxu0
        %v2701 = vadd.f32 0.0, %v2700
        %v2702 = vpop.f32.mrf.mxu0
        %2703 = vmatprep.mubr.bf16.mxu0 0
        %2704 = vmatmul.mubr.bf16.gmra.mxu0 %v2500
        %v2705 = vpop.f32.mrf.mxu0
        %v2706 = vadd.f32 0.0, %v2705
        %v2707 = vpop.f32.mrf.mxu0
        %v2708 = vpop.f32.mrf.mxu0
        %v2709 = vadd.f32 0.0, %v2708
        %v2710 = vpop.f32.mrf.mxu0
        %2711 = vmatprep.mubr.bf16.mxu0 0
        %2712 = vmatmul.mubr.bf16.gmra.mxu0 %v2501
        %v2713 = vpop.f32.mrf.mxu0
        %v2714 = vadd.f32 0.0, %v2713
        %v2715 = vpop.f32.mrf.mxu0
        %v2716 = vpop.f32.mrf.mxu0
        %v2717 = vadd.f32 0.0, %v2716
        %v2718 = vpop.f32.mrf.mxu0
        %2719 = vmatprep.mubr.bf16.mxu0 0
        %2720 = vmatmul.mubr.bf16.gmra.mxu0 %v2502
        %v2721 = vpop.f32.mrf.mxu0
        %v2722 = vadd.f32 0.0, %v2721
        %v2723 = vpop.f32.mrf.mxu0
        %v2724 = vpop.f32.mrf.mxu0
        %v2725 = vadd.f32 0.0, %v2724
        %v2726 = vpop.f32.mrf.mxu0
        %2727 = vdwg.mxu0
        %v2728 = vpack.c.bf16 %v2605, %v2602
        %v2729 = vpack.c.bf16 %v2613, %v2610
        %v2730 = vpack.c.bf16 %v2621, %v2618
        %v2731 = vpack.c.bf16 %v2629, %v2626
        %v2732 = vpack.c.bf16 %v2637, %v2634
        %v2733 = vpack.c.bf16 %v2645, %v2642
        %v2734 = vpack.c.bf16 %v2653, %v2650
        %v2735 = vpack.c.bf16 %v2661, %v2658
        %v2736 = vpack.c.bf16 %v2669, %v2666
        %v2737 = vpack.c.bf16 %v2677, %v2674
        %v2738 = vpack.c.bf16 %v2685, %v2682
        %v2739 = vpack.c.bf16 %v2693, %v2690
        %v2740 = vpack.c.bf16 %v2701, %v2698
        %v2741 = vpack.c.bf16 %v2709, %v2706
        %v2742 = vpack.c.bf16 %v2717, %v2714
        %v2743 = vpack.c.bf16 %v2725, %v2722
        %2744 = vmatprep.subr.bf16.mxu0 0
        %2745 = vmatpush1.bf16.msra.mxu0 0
        %2746 = vmatprep.subr.bf16.mxu0 0
        %2747 = vmatpush1.bf16.msra.mxu0 0
        %2748 = vmatprep.subr.bf16.mxu0 0
        %2749 = vmatpush1.bf16.msra.mxu0 0
        %2750 = vmatprep.subr.bf16.mxu0 0
        %2751 = vmatpush1.bf16.msra.mxu0 0
        %2752 = vmatprep.subr.bf16.mxu0 0
        %2753 = vmatpush1.bf16.msra.mxu0 0
        %2754 = vmatprep.subr.bf16.mxu0 0
        %2755 = vmatpush1.bf16.msra.mxu0 0
        %2756 = vmatprep.subr.bf16.mxu0 0
        %2757 = vmatpush1.bf16.msra.mxu0 %v2729
        %2758 = vmatprep.subr.bf16.mxu0 0
        %2759 = vmatpush1.bf16.msra.mxu0 %v2728
        %2760 = vmatprep.subr.bf16.mxu0 0
        %2761 = vmatpush2.bf16.msra.mxu0 0
        %2762 = vmatprep.subr.bf16.mxu0 0
        %2763 = vmatpush2.bf16.msra.mxu0 0
        %2764 = vmatprep.subr.bf16.mxu0 0
        %2765 = vmatpush2.bf16.msra.mxu0 0
        %2766 = vmatprep.subr.bf16.mxu0 0
        %2767 = vmatpush2.bf16.msra.mxu0 0
        %2768 = vmatprep.subr.bf16.mxu0 0
        %2769 = vmatpush2.bf16.msra.mxu0 0
        %2770 = vmatprep.subr.bf16.mxu0 0
        %2771 = vmatpush2.bf16.msra.mxu0 0
        %2772 = vmatprep.subr.bf16.mxu0 0
        %2773 = vmatpush2.bf16.msra.mxu0 0
        %2774 = vmatprep.subr.bf16.mxu0 0
        %2775 = vmatpush2.bf16.msra.mxu0 0
        %2776 = vmatprep.mubr.bf16.mxu0 0
        %2777 = vmatmul.mubr.bf16.gmra.mxu0 %v1187
        %v2778 = vpop.f32.mrf.mxu0
        %v2779 = vadd.f32 0.0, %v2778
        %v2780 = vpop.f32.mrf.mxu0
        %v2781 = vpop.f32.mrf.mxu0
        %v2782 = vadd.f32 0.0, %v2781
        %v2783 = vpop.f32.mrf.mxu0
        %2784 = vmatprep.mubr.bf16.mxu0 0
        %2785 = vmatmul.mubr.bf16.gmra.mxu0 %v1190
        %v2786 = vpop.f32.mrf.mxu0
        %v2787 = vadd.f32 0.0, %v2786
        %v2788 = vpop.f32.mrf.mxu0
        %v2789 = vpop.f32.mrf.mxu0
        %v2790 = vadd.f32 0.0, %v2789
        %v2791 = vpop.f32.mrf.mxu0
        %2792 = vdwg.mxu0
        %2793 = vmatprep.subr.bf16.mxu0 0
        %2794 = vmatpush1.bf16.msra.mxu0 0
        %2795 = vmatprep.subr.bf16.mxu0 0
        %2796 = vmatpush1.bf16.msra.mxu0 0
        %2797 = vmatprep.subr.bf16.mxu0 0
        %2798 = vmatpush1.bf16.msra.mxu0 0
        %2799 = vmatprep.subr.bf16.mxu0 0
        %2800 = vmatpush1.bf16.msra.mxu0 0
        %2801 = vmatprep.subr.bf16.mxu0 0
        %2802 = vmatpush1.bf16.msra.mxu0 0
        %2803 = vmatprep.subr.bf16.mxu0 0
        %2804 = vmatpush1.bf16.msra.mxu0 0
        %2805 = vmatprep.subr.bf16.mxu0 0
        %2806 = vmatpush1.bf16.msra.mxu0 %v2731
        %2807 = vmatprep.subr.bf16.mxu0 0
        %2808 = vmatpush1.bf16.msra.mxu0 %v2730
        %2809 = vmatprep.subr.bf16.mxu0 0
        %2810 = vmatpush2.bf16.msra.mxu0 0
        %2811 = vmatprep.subr.bf16.mxu0 0
        %2812 = vmatpush2.bf16.msra.mxu0 0
        %2813 = vmatprep.subr.bf16.mxu0 0
        %2814 = vmatpush2.bf16.msra.mxu0 0
        %2815 = vmatprep.subr.bf16.mxu0 0
        %2816 = vmatpush2.bf16.msra.mxu0 0
        %2817 = vmatprep.subr.bf16.mxu0 0
        %2818 = vmatpush2.bf16.msra.mxu0 0
        %2819 = vmatprep.subr.bf16.mxu0 0
        %2820 = vmatpush2.bf16.msra.mxu0 0
        %2821 = vmatprep.subr.bf16.mxu0 0
        %2822 = vmatpush2.bf16.msra.mxu0 0
        %2823 = vmatprep.subr.bf16.mxu0 0
        %2824 = vmatpush2.bf16.msra.mxu0 0
        %2825 = vmatprep.mubr.bf16.mxu0 0
        %2826 = vmatmul.mubr.bf16.gmra.mxu0 %v1252
        %v2827 = vpop.f32.mrf.mxu0
        %v2828 = vadd.f32 0.0, %v2827
        %v2829 = vpop.f32.mrf.mxu0
        %v2830 = vpop.f32.mrf.mxu0
        %v2831 = vadd.f32 0.0, %v2830
        %v2832 = vpop.f32.mrf.mxu0
        %2833 = vmatprep.mubr.bf16.mxu0 0
        %2834 = vmatmul.mubr.bf16.gmra.mxu0 %v1255
        %v2835 = vpop.f32.mrf.mxu0
        %v2836 = vadd.f32 0.0, %v2835
        %v2837 = vpop.f32.mrf.mxu0
        %v2838 = vpop.f32.mrf.mxu0
        %v2839 = vadd.f32 0.0, %v2838
        %v2840 = vpop.f32.mrf.mxu0
        %2841 = vdwg.mxu0
        %2842 = vmatprep.subr.bf16.mxu0 0
        %2843 = vmatpush1.bf16.msra.mxu0 0
        %2844 = vmatprep.subr.bf16.mxu0 0
        %2845 = vmatpush1.bf16.msra.mxu0 0
        %2846 = vmatprep.subr.bf16.mxu0 0
        %2847 = vmatpush1.bf16.msra.mxu0 0
        %2848 = vmatprep.subr.bf16.mxu0 0
        %2849 = vmatpush1.bf16.msra.mxu0 0
        %2850 = vmatprep.subr.bf16.mxu0 0
        %2851 = vmatpush1.bf16.msra.mxu0 0
        %2852 = vmatprep.subr.bf16.mxu0 0
        %2853 = vmatpush1.bf16.msra.mxu0 0
        %2854 = vmatprep.subr.bf16.mxu0 0
        %2855 = vmatpush1.bf16.msra.mxu0 %v2733
        %2856 = vmatprep.subr.bf16.mxu0 0
        %2857 = vmatpush1.bf16.msra.mxu0 %v2732
        %2858 = vmatprep.subr.bf16.mxu0 0
        %2859 = vmatpush2.bf16.msra.mxu0 0
        %2860 = vmatprep.subr.bf16.mxu0 0
        %2861 = vmatpush2.bf16.msra.mxu0 0
        %2862 = vmatprep.subr.bf16.mxu0 0
        %2863 = vmatpush2.bf16.msra.mxu0 0
        %2864 = vmatprep.subr.bf16.mxu0 0
        %2865 = vmatpush2.bf16.msra.mxu0 0
        %2866 = vmatprep.subr.bf16.mxu0 0
        %2867 = vmatpush2.bf16.msra.mxu0 0
        %2868 = vmatprep.subr.bf16.mxu0 0
        %2869 = vmatpush2.bf16.msra.mxu0 0
        %2870 = vmatprep.subr.bf16.mxu0 0
        %2871 = vmatpush2.bf16.msra.mxu0 0
        %2872 = vmatprep.subr.bf16.mxu0 0
        %2873 = vmatpush2.bf16.msra.mxu0 0
        %2874 = vmatprep.mubr.bf16.mxu0 0
        %2875 = vmatmul.mubr.bf16.gmra.mxu0 %v1317
        %v2876 = vpop.f32.mrf.mxu0
        %v2877 = vadd.f32 0.0, %v2876
        %v2878 = vpop.f32.mrf.mxu0
        %v2879 = vpop.f32.mrf.mxu0
        %v2880 = vadd.f32 0.0, %v2879
        %v2881 = vpop.f32.mrf.mxu0
        %2882 = vmatprep.mubr.bf16.mxu0 0
        %2883 = vmatmul.mubr.bf16.gmra.mxu0 %v1320
        %v2884 = vpop.f32.mrf.mxu0
        %v2885 = vadd.f32 0.0, %v2884
        %v2886 = vpop.f32.mrf.mxu0
        %v2887 = vpop.f32.mrf.mxu0
        %v2888 = vadd.f32 0.0, %v2887
        %v2889 = vpop.f32.mrf.mxu0
        %2890 = vdwg.mxu0
        %2891 = vmatprep.subr.bf16.mxu0 0
        %2892 = vmatpush1.bf16.msra.mxu0 0
        %2893 = vmatprep.subr.bf16.mxu0 0
        %2894 = vmatpush1.bf16.msra.mxu0 0
        %2895 = vmatprep.subr.bf16.mxu0 0
        %2896 = vmatpush1.bf16.msra.mxu0 0
        %2897 = vmatprep.subr.bf16.mxu0 0
        %2898 = vmatpush1.bf16.msra.mxu0 0
        %2899 = vmatprep.subr.bf16.mxu0 0
        %2900 = vmatpush1.bf16.msra.mxu0 0
        %2901 = vmatprep.subr.bf16.mxu0 0
        %2902 = vmatpush1.bf16.msra.mxu0 0
        %2903 = vmatprep.subr.bf16.mxu0 0
        %2904 = vmatpush1.bf16.msra.mxu0 %v2735
        %2905 = vmatprep.subr.bf16.mxu0 0
        %2906 = vmatpush1.bf16.msra.mxu0 %v2734
        %2907 = vmatprep.subr.bf16.mxu0 0
        %2908 = vmatpush2.bf16.msra.mxu0 0
        %2909 = vmatprep.subr.bf16.mxu0 0
        %2910 = vmatpush2.bf16.msra.mxu0 0
        %2911 = vmatprep.subr.bf16.mxu0 0
        %2912 = vmatpush2.bf16.msra.mxu0 0
        %2913 = vmatprep.subr.bf16.mxu0 0
        %2914 = vmatpush2.bf16.msra.mxu0 0
        %2915 = vmatprep.subr.bf16.mxu0 0
        %2916 = vmatpush2.bf16.msra.mxu0 0
        %2917 = vmatprep.subr.bf16.mxu0 0
        %2918 = vmatpush2.bf16.msra.mxu0 0
        %2919 = vmatprep.subr.bf16.mxu0 0
        %2920 = vmatpush2.bf16.msra.mxu0 0
        %2921 = vmatprep.subr.bf16.mxu0 0
        %2922 = vmatpush2.bf16.msra.mxu0 0
        %2923 = vmatprep.mubr.bf16.mxu0 0
        %2924 = vmatmul.mubr.bf16.gmra.mxu0 %v1382
        %v2925 = vpop.f32.mrf.mxu0
        %v2926 = vadd.f32 0.0, %v2925
        %v2927 = vpop.f32.mrf.mxu0
        %v2928 = vpop.f32.mrf.mxu0
        %v2929 = vadd.f32 0.0, %v2928
        %v2930 = vpop.f32.mrf.mxu0
        %2931 = vmatprep.mubr.bf16.mxu0 0
        %2932 = vmatmul.mubr.bf16.gmra.mxu0 %v1385
        %v2933 = vpop.f32.mrf.mxu0
        %v2934 = vadd.f32 0.0, %v2933
        %v2935 = vpop.f32.mrf.mxu0
        %v2936 = vpop.f32.mrf.mxu0
        %v2937 = vadd.f32 0.0, %v2936
        %v2938 = vpop.f32.mrf.mxu0
        %2939 = vdwg.mxu0
        %2940 = vmatprep.subr.bf16.mxu0 0
        %2941 = vmatpush1.bf16.msra.mxu0 0
        %2942 = vmatprep.subr.bf16.mxu0 0
        %2943 = vmatpush1.bf16.msra.mxu0 0
        %2944 = vmatprep.subr.bf16.mxu0 0
        %2945 = vmatpush1.bf16.msra.mxu0 0
        %2946 = vmatprep.subr.bf16.mxu0 0
        %2947 = vmatpush1.bf16.msra.mxu0 0
        %2948 = vmatprep.subr.bf16.mxu0 0
        %2949 = vmatpush1.bf16.msra.mxu0 0
        %2950 = vmatprep.subr.bf16.mxu0 0
        %2951 = vmatpush1.bf16.msra.mxu0 0
        %2952 = vmatprep.subr.bf16.mxu0 0
        %2953 = vmatpush1.bf16.msra.mxu0 %v2737
        %2954 = vmatprep.subr.bf16.mxu0 0
        %2955 = vmatpush1.bf16.msra.mxu0 %v2736
        %2956 = vmatprep.subr.bf16.mxu0 0
        %2957 = vmatpush2.bf16.msra.mxu0 0
        %2958 = vmatprep.subr.bf16.mxu0 0
        %2959 = vmatpush2.bf16.msra.mxu0 0
        %2960 = vmatprep.subr.bf16.mxu0 0
        %2961 = vmatpush2.bf16.msra.mxu0 0
        %2962 = vmatprep.subr.bf16.mxu0 0
        %2963 = vmatpush2.bf16.msra.mxu0 0
        %2964 = vmatprep.subr.bf16.mxu0 0
        %2965 = vmatpush2.bf16.msra.mxu0 0
        %2966 = vmatprep.subr.bf16.mxu0 0
        %2967 = vmatpush2.bf16.msra.mxu0 0
        %2968 = vmatprep.subr.bf16.mxu0 0
        %2969 = vmatpush2.bf16.msra.mxu0 0
        %2970 = vmatprep.subr.bf16.mxu0 0
        %2971 = vmatpush2.bf16.msra.mxu0 0
        %2972 = vmatprep.mubr.bf16.mxu0 0
        %2973 = vmatmul.mubr.bf16.gmra.mxu0 %v1447
        %v2974 = vpop.f32.mrf.mxu0
        %v2975 = vadd.f32 0.0, %v2974
        %v2976 = vpop.f32.mrf.mxu0
        %v2977 = vpop.f32.mrf.mxu0
        %v2978 = vadd.f32 0.0, %v2977
        %v2979 = vpop.f32.mrf.mxu0
        %2980 = vmatprep.mubr.bf16.mxu0 0
        %2981 = vmatmul.mubr.bf16.gmra.mxu0 %v1450
        %v2982 = vpop.f32.mrf.mxu0
        %v2983 = vadd.f32 0.0, %v2982
        %v2984 = vpop.f32.mrf.mxu0
        %v2985 = vpop.f32.mrf.mxu0
        %v2986 = vadd.f32 0.0, %v2985
        %v2987 = vpop.f32.mrf.mxu0
        %2988 = vdwg.mxu0
        %2989 = vmatprep.subr.bf16.mxu0 0
        %2990 = vmatpush1.bf16.msra.mxu0 0
        %2991 = vmatprep.subr.bf16.mxu0 0
        %2992 = vmatpush1.bf16.msra.mxu0 0
        %2993 = vmatprep.subr.bf16.mxu0 0
        %2994 = vmatpush1.bf16.msra.mxu0 0
        %2995 = vmatprep.subr.bf16.mxu0 0
        %2996 = vmatpush1.bf16.msra.mxu0 0
        %2997 = vmatprep.subr.bf16.mxu0 0
        %2998 = vmatpush1.bf16.msra.mxu0 0
        %2999 = vmatprep.subr.bf16.mxu0 0
        %3000 = vmatpush1.bf16.msra.mxu0 0
        %3001 = vmatprep.subr.bf16.mxu0 0
        %3002 = vmatpush1.bf16.msra.mxu0 %v2739
        %3003 = vmatprep.subr.bf16.mxu0 0
        %3004 = vmatpush1.bf16.msra.mxu0 %v2738
        %3005 = vmatprep.subr.bf16.mxu0 0
        %3006 = vmatpush2.bf16.msra.mxu0 0
        %3007 = vmatprep.subr.bf16.mxu0 0
        %3008 = vmatpush2.bf16.msra.mxu0 0
        %3009 = vmatprep.subr.bf16.mxu0 0
        %3010 = vmatpush2.bf16.msra.mxu0 0
        %3011 = vmatprep.subr.bf16.mxu0 0
        %3012 = vmatpush2.bf16.msra.mxu0 0
        %3013 = vmatprep.subr.bf16.mxu0 0
        %3014 = vmatpush2.bf16.msra.mxu0 0
        %3015 = vmatprep.subr.bf16.mxu0 0
        %3016 = vmatpush2.bf16.msra.mxu0 0
        %3017 = vmatprep.subr.bf16.mxu0 0
        %3018 = vmatpush2.bf16.msra.mxu0 0
        %3019 = vmatprep.subr.bf16.mxu0 0
        %3020 = vmatpush2.bf16.msra.mxu0 0
        %3021 = vmatprep.mubr.bf16.mxu0 0
        %3022 = vmatmul.mubr.bf16.gmra.mxu0 %v1512
        %v3023 = vpop.f32.mrf.mxu0
        %v3024 = vadd.f32 0.0, %v3023
        %v3025 = vpop.f32.mrf.mxu0
        %v3026 = vpop.f32.mrf.mxu0
        %v3027 = vadd.f32 0.0, %v3026
        %v3028 = vpop.f32.mrf.mxu0
        %3029 = vmatprep.mubr.bf16.mxu0 0
        %3030 = vmatmul.mubr.bf16.gmra.mxu0 %v1515
        %v3031 = vpop.f32.mrf.mxu0
        %v3032 = vadd.f32 0.0, %v3031
        %v3033 = vpop.f32.mrf.mxu0
        %v3034 = vpop.f32.mrf.mxu0
        %v3035 = vadd.f32 0.0, %v3034
        %v3036 = vpop.f32.mrf.mxu0
        %3037 = vdwg.mxu0
        %3038 = vmatprep.subr.bf16.mxu0 0
        %3039 = vmatpush1.bf16.msra.mxu0 0
        %3040 = vmatprep.subr.bf16.mxu0 0
        %3041 = vmatpush1.bf16.msra.mxu0 0
        %3042 = vmatprep.subr.bf16.mxu0 0
        %3043 = vmatpush1.bf16.msra.mxu0 0
        %3044 = vmatprep.subr.bf16.mxu0 0
        %3045 = vmatpush1.bf16.msra.mxu0 0
        %3046 = vmatprep.subr.bf16.mxu0 0
        %3047 = vmatpush1.bf16.msra.mxu0 0
        %3048 = vmatprep.subr.bf16.mxu0 0
        %3049 = vmatpush1.bf16.msra.mxu0 0
        %3050 = vmatprep.subr.bf16.mxu0 0
        %3051 = vmatpush1.bf16.msra.mxu0 %v2741
        %3052 = vmatprep.subr.bf16.mxu0 0
        %3053 = vmatpush1.bf16.msra.mxu0 %v2740
        %3054 = vmatprep.subr.bf16.mxu0 0
        %3055 = vmatpush2.bf16.msra.mxu0 0
        %3056 = vmatprep.subr.bf16.mxu0 0
        %3057 = vmatpush2.bf16.msra.mxu0 0
        %3058 = vmatprep.subr.bf16.mxu0 0
        %3059 = vmatpush2.bf16.msra.mxu0 0
        %3060 = vmatprep.subr.bf16.mxu0 0
        %3061 = vmatpush2.bf16.msra.mxu0 0
        %3062 = vmatprep.subr.bf16.mxu0 0
        %3063 = vmatpush2.bf16.msra.mxu0 0
        %3064 = vmatprep.subr.bf16.mxu0 0
        %3065 = vmatpush2.bf16.msra.mxu0 0
        %3066 = vmatprep.subr.bf16.mxu0 0
        %3067 = vmatpush2.bf16.msra.mxu0 0
        %3068 = vmatprep.subr.bf16.mxu0 0
        %3069 = vmatpush2.bf16.msra.mxu0 0
        %3070 = vmatprep.mubr.bf16.mxu0 0
        %3071 = vmatmul.mubr.bf16.gmra.mxu0 %v1577
        %v3072 = vpop.f32.mrf.mxu0
        %v3073 = vadd.f32 0.0, %v3072
        %v3074 = vpop.f32.mrf.mxu0
        %v3075 = vpop.f32.mrf.mxu0
        %v3076 = vadd.f32 0.0, %v3075
        %v3077 = vpop.f32.mrf.mxu0
        %3078 = vmatprep.mubr.bf16.mxu0 0
        %3079 = vmatmul.mubr.bf16.gmra.mxu0 %v1580
        %v3080 = vpop.f32.mrf.mxu0
        %v3081 = vadd.f32 0.0, %v3080
        %v3082 = vpop.f32.mrf.mxu0
        %v3083 = vpop.f32.mrf.mxu0
        %v3084 = vadd.f32 0.0, %v3083
        %v3085 = vpop.f32.mrf.mxu0
        %3086 = vdwg.mxu0
        %3087 = vmatprep.subr.bf16.mxu0 0
        %3088 = vmatpush1.bf16.msra.mxu0 0
        %3089 = vmatprep.subr.bf16.mxu0 0
        %3090 = vmatpush1.bf16.msra.mxu0 0
        %3091 = vmatprep.subr.bf16.mxu0 0
        %3092 = vmatpush1.bf16.msra.mxu0 0
        %3093 = vmatprep.subr.bf16.mxu0 0
        %3094 = vmatpush1.bf16.msra.mxu0 0
        %3095 = vmatprep.subr.bf16.mxu0 0
        %3096 = vmatpush1.bf16.msra.mxu0 0
        %3097 = vmatprep.subr.bf16.mxu0 0
        %3098 = vmatpush1.bf16.msra.mxu0 0
        %3099 = vmatprep.subr.bf16.mxu0 0
        %3100 = vmatpush1.bf16.msra.mxu0 %v2743
        %3101 = vmatprep.subr.bf16.mxu0 0
        %3102 = vmatpush1.bf16.msra.mxu0 %v2742
        %3103 = vmatprep.subr.bf16.mxu0 0
        %3104 = vmatpush2.bf16.msra.mxu0 0
        %3105 = vmatprep.subr.bf16.mxu0 0
        %3106 = vmatpush2.bf16.msra.mxu0 0
        %3107 = vmatprep.subr.bf16.mxu0 0
        %3108 = vmatpush2.bf16.msra.mxu0 0
        %3109 = vmatprep.subr.bf16.mxu0 0
        %3110 = vmatpush2.bf16.msra.mxu0 0
        %3111 = vmatprep.subr.bf16.mxu0 0
        %3112 = vmatpush2.bf16.msra.mxu0 0
        %3113 = vmatprep.subr.bf16.mxu0 0
        %3114 = vmatpush2.bf16.msra.mxu0 0
        %3115 = vmatprep.subr.bf16.mxu0 0
        %3116 = vmatpush2.bf16.msra.mxu0 0
        %3117 = vmatprep.subr.bf16.mxu0 0
        %3118 = vmatpush2.bf16.msra.mxu0 0
        %3119 = vmatprep.mubr.bf16.mxu0 0
        %3120 = vmatmul.mubr.bf16.gmra.mxu0 %v1642
        %v3121 = vpop.f32.mrf.mxu0
        %v3122 = vadd.f32 0.0, %v3121
        %v3123 = vpop.f32.mrf.mxu0
        %v3124 = vpop.f32.mrf.mxu0
        %v3125 = vadd.f32 0.0, %v3124
        %v3126 = vpop.f32.mrf.mxu0
        %3127 = vmatprep.mubr.bf16.mxu0 0
        %3128 = vmatmul.mubr.bf16.gmra.mxu0 %v1645
        %v3129 = vpop.f32.mrf.mxu0
        %v3130 = vadd.f32 0.0, %v3129
        %v3131 = vpop.f32.mrf.mxu0
        %v3132 = vpop.f32.mrf.mxu0
        %v3133 = vadd.f32 0.0, %v3132
        %v3134 = vpop.f32.mrf.mxu0
        %3135 = vdwg.mxu0
        %v3136 = vld [vmem:[%s9] sm:$0x1]
        %v3138 = vlaneseq
        %v3139 = vshrl.u32 %v3138, 7
        %v3140 = vsub.s32 0, %v3139
        %v3141 = vrot.slane %v3136, %v3140
        %v3143 = vadd.f32 %v2779, %v3141
        %v3144 = vadd.f32 %v2782, %v3141
        %v3145 = vadd.f32 %v2787, %v3141
        %v3146 = vadd.f32 %v2790, %v3141
        %v3147 = vadd.f32 %v2828, %v3141
        %v3148 = vadd.f32 %v2831, %v3141
        %v3149 = vadd.f32 %v2836, %v3141
        %v3150 = vadd.f32 %v2839, %v3141
        %v3151 = vadd.f32 %v2877, %v3141
        %v3152 = vadd.f32 %v2880, %v3141
        %v3153 = vadd.f32 %v2885, %v3141
        %v3154 = vadd.f32 %v2888, %v3141
        %v3155 = vadd.f32 %v2926, %v3141
        %v3156 = vadd.f32 %v2929, %v3141
        %v3157 = vadd.f32 %v2934, %v3141
        %v3158 = vadd.f32 %v2937, %v3141
        %v3159 = vadd.f32 %v2975, %v3141
        %v3160 = vadd.f32 %v2978, %v3141
        %v3161 = vadd.f32 %v2983, %v3141
        %v3162 = vadd.f32 %v2986, %v3141
        %v3163 = vadd.f32 %v3024, %v3141
        %v3164 = vadd.f32 %v3027, %v3141
        %v3165 = vadd.f32 %v3032, %v3141
        %v3166 = vadd.f32 %v3035, %v3141
        %v3167 = vadd.f32 %v3073, %v3141
        %v3168 = vadd.f32 %v3076, %v3141
        %v3169 = vadd.f32 %v3081, %v3141
        %v3170 = vadd.f32 %v3084, %v3141
        %v3171 = vadd.f32 %v3122, %v3141
        %v3172 = vadd.f32 %v3125, %v3141
        %v3173 = vadd.f32 %v3130, %v3141
        %v3174 = vadd.f32 %v3133, %v3141
        %v3175 = vadd.f32 %v3143, %v3144
        %v3176 = vadd.f32 %v3175, %v3145
        %v3177 = vadd.f32 %v3176, %v3146
        %v3178 = vrot.slane %v3177, 4
        %v3179 = vadd.f32 %v3177, %v3178
        %v3180 = vrot.slane %v3179, 2
        %v3181 = vadd.f32 %v3179, %v3180
        %v3182 = vrot.slane %v3181, 1
        %v3183 = vadd.f32 %v3181, %v3182
        %v3184 = vadd.f32 %v3147, %v3148
        %v3185 = vadd.f32 %v3184, %v3149
        %v3186 = vadd.f32 %v3185, %v3150
        %v3187 = vrot.slane %v3186, 4
        %v3188 = vadd.f32 %v3186, %v3187
        %v3189 = vrot.slane %v3188, 2
        %v3190 = vadd.f32 %v3188, %v3189
        %v3191 = vrot.slane %v3190, 1
        %v3192 = vadd.f32 %v3190, %v3191
        %v3193 = vadd.f32 %v3151, %v3152
        %v3194 = vadd.f32 %v3193, %v3153
        %v3195 = vadd.f32 %v3194, %v3154
        %v3196 = vrot.slane %v3195, 4
        %v3197 = vadd.f32 %v3195, %v3196
        %v3198 = vrot.slane %v3197, 2
        %v3199 = vadd.f32 %v3197, %v3198
        %v3200 = vrot.slane %v3199, 1
        %v3201 = vadd.f32 %v3199, %v3200
        %v3202 = vadd.f32 %v3155, %v3156
        %v3203 = vadd.f32 %v3202, %v3157
        %v3204 = vadd.f32 %v3203, %v3158
        %v3205 = vrot.slane %v3204, 4
        %v3206 = vadd.f32 %v3204, %v3205
        %v3207 = vrot.slane %v3206, 2
        %v3208 = vadd.f32 %v3206, %v3207
        %v3209 = vrot.slane %v3208, 1
        %v3210 = vadd.f32 %v3208, %v3209
        %v3211 = vadd.f32 %v3159, %v3160
        %v3212 = vadd.f32 %v3211, %v3161
        %v3213 = vadd.f32 %v3212, %v3162
        %v3214 = vrot.slane %v3213, 4
        %v3215 = vadd.f32 %v3213, %v3214
        %v3216 = vrot.slane %v3215, 2
        %v3217 = vadd.f32 %v3215, %v3216
        %v3218 = vrot.slane %v3217, 1
        %v3219 = vadd.f32 %v3217, %v3218
        %v3220 = vadd.f32 %v3163, %v3164
        %v3221 = vadd.f32 %v3220, %v3165
        %v3222 = vadd.f32 %v3221, %v3166
        %v3223 = vrot.slane %v3222, 4
        %v3224 = vadd.f32 %v3222, %v3223
        %v3225 = vrot.slane %v3224, 2
        %v3226 = vadd.f32 %v3224, %v3225
        %v3227 = vrot.slane %v3226, 1
        %v3228 = vadd.f32 %v3226, %v3227
        %v3229 = vadd.f32 %v3167, %v3168
        %v3230 = vadd.f32 %v3229, %v3169
        %v3231 = vadd.f32 %v3230, %v3170
        %v3232 = vrot.slane %v3231, 4
        %v3233 = vadd.f32 %v3231, %v3232
        %v3234 = vrot.slane %v3233, 2
        %v3235 = vadd.f32 %v3233, %v3234
        %v3236 = vrot.slane %v3235, 1
        %v3237 = vadd.f32 %v3235, %v3236
        %v3238 = vadd.f32 %v3171, %v3172
        %v3239 = vadd.f32 %v3238, %v3173
        %v3240 = vadd.f32 %v3239, %v3174
        %v3241 = vrot.slane %v3240, 4
        %v3242 = vadd.f32 %v3240, %v3241
        %v3243 = vrot.slane %v3242, 2
        %v3244 = vadd.f32 %v3242, %v3243
        %v3245 = vrot.slane %v3244, 1
        %v3246 = vadd.f32 %v3244, %v3245
        %v3247 = vrcp.pop 32.0
        %v3248 = vmul.f32 %v3183, %v3247
        %v3249 = vmul.f32 %v3192, %v3247
        %v3250 = vmul.f32 %v3201, %v3247
        %v3251 = vmul.f32 %v3210, %v3247
        %v3252 = vmul.f32 %v3219, %v3247
        %v3253 = vmul.f32 %v3228, %v3247
        %v3254 = vmul.f32 %v3237, %v3247
        %v3255 = vmul.f32 %v3246, %v3247
        %v3256 = vpack.c.bf16 %v3248, %v3248
        %v3257 = vpack.c.bf16 %v3249, %v3249
        %v3258 = vpack.c.bf16 %v3250, %v3250
        %v3259 = vpack.c.bf16 %v3251, %v3251
        %v3260 = vpack.c.bf16 %v3252, %v3252
        %v3261 = vpack.c.bf16 %v3253, %v3253
        %v3262 = vpack.c.bf16 %v3254, %v3254
        %v3263 = vpack.c.bf16 %v3255, %v3255
        %v3264 = vld [vmem:[%s10] sm:$0xf]
        %v3265 = vld [vmem:[%s10 + $0x4] sm:$0xf]
        %v3266 = vld [vmem:[%s10 + $0x8] sm:$0xf]
        %v3267 = vld [vmem:[%s10 + $0xc] sm:$0xf]
        %v3268 = vld [vmem:[%s10 + $0x10] sm:$0xf]
        %v3269 = vld [vmem:[%s10 + $0x14] sm:$0xf]
        %v3270 = vld [vmem:[%s10 + $0x18] sm:$0xf]
        %v3271 = vld [vmem:[%s10 + $0x1c] sm:$0xf]
        %v3272 = vld [vmem:[%s10 + $0x20] sm:$0xf]
        %v3273 = vld [vmem:[%s10 + $0x24] sm:$0xf]
        %v3274 = vld [vmem:[%s10 + $0x28] sm:$0xf]
        %v3275 = vld [vmem:[%s10 + $0x2c] sm:$0xf]
        %v3276 = vld [vmem:[%s10 + $0x30] sm:$0xf]
        %v3277 = vld [vmem:[%s10 + $0x34] sm:$0xf]
        %v3278 = vld [vmem:[%s10 + $0x38] sm:$0xf]
        %v3279 = vld [vmem:[%s10 + $0x3c] sm:$0xf]
        %v3280 = vld [vmem:[%s11] sm:$0x1]
        %v3282 = vlaneseq
        %v3283 = vshrl.u32 %v3282, 7
        %v3284 = vsub.s32 0, %v3283
        %v3285 = vrot.slane %v3280, %v3284
        %v3295 = vunpack.c.l.b16 %v3256
        %v3296 = vunpack.c.l.b16 %v3257
        %v3297 = vunpack.c.l.b16 %v3258
        %v3298 = vunpack.c.l.b16 %v3259
        %v3299 = vunpack.c.l.b16 %v3260
        %v3300 = vunpack.c.l.b16 %v3261
        %v3301 = vunpack.c.l.b16 %v3262
        %v3302 = vunpack.c.l.b16 %v3263
        %vm3303 = vcmask 1041409
        %v3304 = vsel %vm3303, %v3296, %v3295
        %vm3305 = vcmask 1042434
        %v3306 = vsel %vm3305, %v3297, %v3304
        %vm3307 = vcmask 1043459
        %v3308 = vsel %vm3307, %v3298, %v3306
        %vm3309 = vcmask 1044484
        %v3310 = vsel %vm3309, %v3299, %v3308
        %vm3311 = vcmask 1045509
        %v3312 = vsel %vm3311, %v3300, %v3310
        %vm3313 = vcmask 1046534
        %v3314 = vsel %vm3313, %v3301, %v3312
        %vm3315 = vcmask 1047559
        %v3316 = vsel %vm3315, %v3302, %v3314
        %v3317 = vpack.c.b16 %v3316, %v3316
        %v3335 = vunpack.c.l.b16 %v3264
        %v3336 = vunpack.c.l.b16 %v3265
        %v3337 = vunpack.c.l.b16 %v3266
        %v3338 = vunpack.c.l.b16 %v3267
        %v3339 = vunpack.c.l.b16 %v3268
        %v3340 = vunpack.c.l.b16 %v3269
        %v3341 = vunpack.c.l.b16 %v3270
        %v3342 = vunpack.c.l.b16 %v3271
        %v3343 = vunpack.c.l.b16 %v3272
        %v3344 = vunpack.c.l.b16 %v3273
        %v3345 = vunpack.c.l.b16 %v3274
        %v3346 = vunpack.c.l.b16 %v3275
        %v3347 = vunpack.c.l.b16 %v3276
        %v3348 = vunpack.c.l.b16 %v3277
        %v3349 = vunpack.c.l.b16 %v3278
        %v3350 = vunpack.c.l.b16 %v3279
        %v3351 = vpack.c.b16 %v3336, %v3335
        %v3352 = vpack.c.b16 %v3338, %v3337
        %v3353 = vpack.c.b16 %v3340, %v3339
        %v3354 = vpack.c.b16 %v3342, %v3341
        %v3355 = vpack.c.b16 %v3344, %v3343
        %v3356 = vpack.c.b16 %v3346, %v3345
        %v3357 = vpack.c.b16 %v3348, %v3347
        %v3358 = vpack.c.b16 %v3350, %v3349
        %3367 = vmatprep.subr.bf16.mxu0 0
        %3368 = vmatpush1.bf16.msra.mxu0 %v3358
        %3369 = vmatprep.subr.bf16.mxu0 0
        %3370 = vmatpush1.bf16.msra.mxu0 %v3357
        %3371 = vmatprep.subr.bf16.mxu0 0
        %3372 = vmatpush1.bf16.msra.mxu0 %v3356
        %3373 = vmatprep.subr.bf16.mxu0 0
        %3374 = vmatpush1.bf16.msra.mxu0 %v3355
        %3375 = vmatprep.subr.bf16.mxu0 0
        %3376 = vmatpush1.bf16.msra.mxu0 %v3354
        %3377 = vmatprep.subr.bf16.mxu0 0
        %3378 = vmatpush1.bf16.msra.mxu0 %v3353
        %3379 = vmatprep.subr.bf16.mxu0 0
        %3380 = vmatpush1.bf16.msra.mxu0 %v3352
        %3381 = vmatprep.subr.bf16.mxu0 0
        %3382 = vmatpush1.bf16.msra.mxu0 %v3351
        %3383 = vmatprep.subr.bf16.mxu0 0
        %3384 = vmatpush2.bf16.msra.mxu0 0
        %3385 = vmatprep.subr.bf16.mxu0 0
        %3386 = vmatpush2.bf16.msra.mxu0 0
        %3387 = vmatprep.subr.bf16.mxu0 0
        %3388 = vmatpush2.bf16.msra.mxu0 0
        %3389 = vmatprep.subr.bf16.mxu0 0
        %3390 = vmatpush2.bf16.msra.mxu0 0
        %3391 = vmatprep.subr.bf16.mxu0 0
        %3392 = vmatpush2.bf16.msra.mxu0 0
        %3393 = vmatprep.subr.bf16.mxu0 0
        %3394 = vmatpush2.bf16.msra.mxu0 0
        %3395 = vmatprep.subr.bf16.mxu0 0
        %3396 = vmatpush2.bf16.msra.mxu0 0
        %3397 = vmatprep.subr.bf16.mxu0 0
        %3398 = vmatpush2.bf16.msra.mxu0 0
        %3399 = vmatprep.mubr.bf16.mxu0 0
        %3400 = vmatmul.mubr.bf16.gmra.mxu0 %v3317
        %v3401 = vpop.f32.mrf.mxu0
        %v3402 = vadd.f32 %v3285, %v3401
        %v3403 = vpop.f32.mrf.mxu0
        %v3404 = vpop.f32.mrf.mxu0
        %v3405 = vpop.f32.mrf.mxu0
        %3406 = vdwg.mxu0
        %v3407 = vmax.f32 %v3402, 0.0
        %v3408 = vpack.c.bf16 %v3407, %v3407
        %v3409 = vld [vmem:[%s12] sm:$0xf]
        %v3410 = vld [vmem:[%s12 + $0x4] sm:$0xf]
        %v3411 = vld [vmem:[%s12 + $0x8] sm:$0xf]
        %v3412 = vld [vmem:[%s12 + $0xc] sm:$0xf]
        %v3413 = vld [vmem:[%s12 + $0x10] sm:$0xf]
        %v3414 = vld [vmem:[%s12 + $0x14] sm:$0xf]
        %v3415 = vld [vmem:[%s12 + $0x18] sm:$0xf]
        %v3416 = vld [vmem:[%s12 + $0x1c] sm:$0xf]
        %v3417 = vld [vmem:[%s12 + $0x20] sm:$0xf]
        %v3418 = vld [vmem:[%s12 + $0x24] sm:$0xf]
        %v3419 = vld [vmem:[%s12 + $0x28] sm:$0xf]
        %v3420 = vld [vmem:[%s12 + $0x2c] sm:$0xf]
        %v3421 = vld [vmem:[%s12 + $0x30] sm:$0xf]
        %v3422 = vld [vmem:[%s12 + $0x34] sm:$0xf]
        %v3423 = vld [vmem:[%s12 + $0x38] sm:$0xf]
        %v3424 = vld [vmem:[%s12 + $0x3c] sm:$0xf]
        %v3425 = vld [vmem:[%s13] sm:$0x1]
        %v3427 = vlaneseq
        %v3428 = vshrl.u32 %v3427, 7
        %v3429 = vsub.s32 0, %v3428
        %v3430 = vrot.slane %v3425, %v3429
        %v3448 = vunpack.c.l.b16 %v3409
        %v3449 = vunpack.c.l.b16 %v3410
        %v3450 = vunpack.c.l.b16 %v3411
        %v3451 = vunpack.c.l.b16 %v3412
        %v3452 = vunpack.c.l.b16 %v3413
        %v3453 = vunpack.c.l.b16 %v3414
        %v3454 = vunpack.c.l.b16 %v3415
        %v3455 = vunpack.c.l.b16 %v3416
        %v3456 = vunpack.c.l.b16 %v3417
        %v3457 = vunpack.c.l.b16 %v3418
        %v3458 = vunpack.c.l.b16 %v3419
        %v3459 = vunpack.c.l.b16 %v3420
        %v3460 = vunpack.c.l.b16 %v3421
        %v3461 = vunpack.c.l.b16 %v3422
        %v3462 = vunpack.c.l.b16 %v3423
        %v3463 = vunpack.c.l.b16 %v3424
        %v3464 = vpack.c.b16 %v3449, %v3448
        %v3465 = vpack.c.b16 %v3451, %v3450
        %v3466 = vpack.c.b16 %v3453, %v3452
        %v3467 = vpack.c.b16 %v3455, %v3454
        %v3468 = vpack.c.b16 %v3457, %v3456
        %v3469 = vpack.c.b16 %v3459, %v3458
        %v3470 = vpack.c.b16 %v3461, %v3460
        %v3471 = vpack.c.b16 %v3463, %v3462
        %3480 = vmatprep.subr.bf16.mxu0 0
        %3481 = vmatpush1.bf16.msra.mxu0 %v3471
        %3482 = vmatprep.subr.bf16.mxu0 0
        %3483 = vmatpush1.bf16.msra.mxu0 %v3470
        %3484 = vmatprep.subr.bf16.mxu0 0
        %3485 = vmatpush1.bf16.msra.mxu0 %v3469
        %3486 = vmatprep.subr.bf16.mxu0 0
        %3487 = vmatpush1.bf16.msra.mxu0 %v3468
        %3488 = vmatprep.subr.bf16.mxu0 0
        %3489 = vmatpush1.bf16.msra.mxu0 %v3467
        %3490 = vmatprep.subr.bf16.mxu0 0
        %3491 = vmatpush1.bf16.msra.mxu0 %v3466
        %3492 = vmatprep.subr.bf16.mxu0 0
        %3493 = vmatpush1.bf16.msra.mxu0 %v3465
        %3494 = vmatprep.subr.bf16.mxu0 0
        %3495 = vmatpush1.bf16.msra.mxu0 %v3464
        %3496 = vmatprep.subr.bf16.mxu0 0
        %3497 = vmatpush2.bf16.msra.mxu0 0
        %3498 = vmatprep.subr.bf16.mxu0 0
        %3499 = vmatpush2.bf16.msra.mxu0 0
        %3500 = vmatprep.subr.bf16.mxu0 0
        %3501 = vmatpush2.bf16.msra.mxu0 0
        %3502 = vmatprep.subr.bf16.mxu0 0
        %3503 = vmatpush2.bf16.msra.mxu0 0
        %3504 = vmatprep.subr.bf16.mxu0 0
        %3505 = vmatpush2.bf16.msra.mxu0 0
        %3506 = vmatprep.subr.bf16.mxu0 0
        %3507 = vmatpush2.bf16.msra.mxu0 0
        %3508 = vmatprep.subr.bf16.mxu0 0
        %3509 = vmatpush2.bf16.msra.mxu0 0
        %3510 = vmatprep.subr.bf16.mxu0 0
        %3511 = vmatpush2.bf16.msra.mxu0 0
        %3512 = vmatprep.mubr.bf16.mxu0 0
        %3513 = vmatmul.mubr.bf16.gmra.mxu0 %v3408
        %v3514 = vpop.f32.mrf.mxu0
        %v3515 = vadd.f32 %v3430, %v3514
        %v3516 = vpop.f32.mrf.mxu0
        %v3517 = vpop.f32.mrf.mxu0
        %v3518 = vpop.f32.mrf.mxu0
        %3519 = vdwg.mxu0
        %v3520 = vmax.f32 %v3515, 0.0
        %v3521 = vpack.c.bf16 %v3520, %v3520
        %v3522 = vld [vmem:[%s14] sm:$0xf]
        %v3523 = vld [vmem:[%s14 + $0x4] sm:$0xf]
        %v3524 = vld [vmem:[%s14 + $0x8] sm:$0xf]
        %v3525 = vld [vmem:[%s14 + $0xc] sm:$0xf]
        %v3526 = vld [vmem:[%s14 + $0x10] sm:$0xf]
        %v3527 = vld [vmem:[%s14 + $0x14] sm:$0xf]
        %v3528 = vld [vmem:[%s14 + $0x18] sm:$0xf]
        %v3529 = vld [vmem:[%s14 + $0x1c] sm:$0xf]
        %v3530 = vld [vmem:[%s14 + $0x20] sm:$0xf]
        %v3531 = vld [vmem:[%s14 + $0x24] sm:$0xf]
        %v3532 = vld [vmem:[%s14 + $0x28] sm:$0xf]
        %v3533 = vld [vmem:[%s14 + $0x2c] sm:$0xf]
        %v3534 = vld [vmem:[%s14 + $0x30] sm:$0xf]
        %v3535 = vld [vmem:[%s14 + $0x34] sm:$0xf]
        %v3536 = vld [vmem:[%s14 + $0x38] sm:$0xf]
        %v3537 = vld [vmem:[%s14 + $0x3c] sm:$0xf]
        %v3538 = vld [vmem:[%s15] sm:$0x1]
        %v3540 = vlaneseq
        %v3541 = vshrl.u32 %v3540, 7
        %v3542 = vsub.s32 0, %v3541
        %v3543 = vrot.slane %v3538, %v3542
        %v3561 = vunpack.c.l.b16 %v3522
        %v3562 = vunpack.c.l.b16 %v3523
        %v3563 = vunpack.c.l.b16 %v3524
        %v3564 = vunpack.c.l.b16 %v3525
        %v3565 = vunpack.c.l.b16 %v3526
        %v3566 = vunpack.c.l.b16 %v3527
        %v3567 = vunpack.c.l.b16 %v3528
        %v3568 = vunpack.c.l.b16 %v3529
        %v3569 = vunpack.c.l.b16 %v3530
        %v3570 = vunpack.c.l.b16 %v3531
        %v3571 = vunpack.c.l.b16 %v3532
        %v3572 = vunpack.c.l.b16 %v3533
        %v3573 = vunpack.c.l.b16 %v3534
        %v3574 = vunpack.c.l.b16 %v3535
        %v3575 = vunpack.c.l.b16 %v3536
        %v3576 = vunpack.c.l.b16 %v3537
        %v3577 = vpack.c.b16 %v3562, %v3561
        %v3578 = vpack.c.b16 %v3564, %v3563
        %v3579 = vpack.c.b16 %v3566, %v3565
        %v3580 = vpack.c.b16 %v3568, %v3567
        %v3581 = vpack.c.b16 %v3570, %v3569
        %v3582 = vpack.c.b16 %v3572, %v3571
        %v3583 = vpack.c.b16 %v3574, %v3573
        %v3584 = vpack.c.b16 %v3576, %v3575
        %3593 = vmatprep.subr.bf16.mxu0 0
        %3594 = vmatpush1.bf16.msra.mxu0 %v3584
        %3595 = vmatprep.subr.bf16.mxu0 0
        %3596 = vmatpush1.bf16.msra.mxu0 %v3583
        %3597 = vmatprep.subr.bf16.mxu0 0
        %3598 = vmatpush1.bf16.msra.mxu0 %v3582
        %3599 = vmatprep.subr.bf16.mxu0 0
        %3600 = vmatpush1.bf16.msra.mxu0 %v3581
        %3601 = vmatprep.subr.bf16.mxu0 0
        %3602 = vmatpush1.bf16.msra.mxu0 %v3580
        %3603 = vmatprep.subr.bf16.mxu0 0
        %3604 = vmatpush1.bf16.msra.mxu0 %v3579
        %3605 = vmatprep.subr.bf16.mxu0 0
        %3606 = vmatpush1.bf16.msra.mxu0 %v3578
        %3607 = vmatprep.subr.bf16.mxu0 0
        %3608 = vmatpush1.bf16.msra.mxu0 %v3577
        %3609 = vmatprep.subr.bf16.mxu0 0
        %3610 = vmatpush2.bf16.msra.mxu0 0
        %3611 = vmatprep.subr.bf16.mxu0 0
        %3612 = vmatpush2.bf16.msra.mxu0 0
        %3613 = vmatprep.subr.bf16.mxu0 0
        %3614 = vmatpush2.bf16.msra.mxu0 0
        %3615 = vmatprep.subr.bf16.mxu0 0
        %3616 = vmatpush2.bf16.msra.mxu0 0
        %3617 = vmatprep.subr.bf16.mxu0 0
        %3618 = vmatpush2.bf16.msra.mxu0 0
        %3619 = vmatprep.subr.bf16.mxu0 0
        %3620 = vmatpush2.bf16.msra.mxu0 0
        %3621 = vmatprep.subr.bf16.mxu0 0
        %3622 = vmatpush2.bf16.msra.mxu0 0
        %3623 = vmatprep.subr.bf16.mxu0 0
        %3624 = vmatpush2.bf16.msra.mxu0 0
        %3625 = vmatprep.mubr.bf16.mxu0 0
        %3626 = vmatmul.mubr.bf16.gmra.mxu0 %v3521
        %v3627 = vpop.f32.mrf.mxu0
        %v3628 = vadd.f32 %v3543, %v3627
        %v3629 = vpop.f32.mrf.mxu0
        %v3630 = vpop.f32.mrf.mxu0
        %v3631 = vpop.f32.mrf.mxu0
        %3632 = vdwg.mxu0
        %v3633 = vld [vmem:[%s18] sm:$0x1]
        %v3634 = vld [vmem:[%s19] sm:$0x1]
        %3635 = vadd.xlane.f32.xlu0 %v3628
        %v3636 = vpop.xlane.xlu0 %3635
        %v3637 = vrcp.pop 128.0
        %v3638 = vmul.f32 %v3636, %v3637
        %v3639 = vsub.f32 %v3628, %v3638
        %v3640 = vmul.f32 %v3639, %v3639
        %3641 = vadd.xlane.f32.xlu0 %v3640
        %v3642 = vpop.xlane.xlu0 %3641
        %v3643 = vmul.f32 %v3642, %v3637
        %v3644 = vadd.f32 %v3643, 1e-05
        %v3645 = vrsqrt.pop %v3644
        %v3646 = vmul.f32 %v3639, %v3645
        %v3648 = vlaneseq
        %v3649 = vshrl.u32 %v3648, 7
        %v3650 = vsub.s32 0, %v3649
        %v3651 = vrot.slane %v3633, %v3650
        %v3653 = vmul.f32 %v3646, %v3651
        %v3655 = vlaneseq
        %v3656 = vshrl.u32 %v3655, 7
        %v3657 = vsub.s32 0, %v3656
        %v3658 = vrot.slane %v3634, %v3657
        %v3660 = vadd.f32 %v3653, %v3658
        %v3661 = vstv %s773
        %v3662 = vmul.f32 %v3660, %v3661
        %3663 = vst [vmem:[%s749] sm:$0xff] %v3662
        %v3664 = vld [vmem:[%s767] sm:$0xff]
        %v3665 = vpack.c.bf16 %v3664, %v3664
        %v3666 = vld [vmem:[%s16] sm:$0xf]
        %v3667 = vld [vmem:[%s16 + $0x4] sm:$0xf]
        %v3668 = vld [vmem:[%s16 + $0x8] sm:$0xf]
        %v3669 = vld [vmem:[%s16 + $0xc] sm:$0xf]
        %v3670 = vld [vmem:[%s16 + $0x10] sm:$0xf]
        %v3671 = vld [vmem:[%s16 + $0x14] sm:$0xf]
        %v3672 = vld [vmem:[%s16 + $0x18] sm:$0xf]
        %v3673 = vld [vmem:[%s16 + $0x1c] sm:$0xf]
        %v3674 = vld [vmem:[%s16 + $0x20] sm:$0xf]
        %v3675 = vld [vmem:[%s16 + $0x24] sm:$0xf]
        %v3676 = vld [vmem:[%s16 + $0x28] sm:$0xf]
        %v3677 = vld [vmem:[%s16 + $0x2c] sm:$0xf]
        %v3678 = vld [vmem:[%s16 + $0x30] sm:$0xf]
        %v3679 = vld [vmem:[%s16 + $0x34] sm:$0xf]
        %v3680 = vld [vmem:[%s16 + $0x38] sm:$0xf]
        %v3681 = vld [vmem:[%s16 + $0x3c] sm:$0xf]
        %v3682 = vld [vmem:[%s17] sm:$0x1]
        %v3684 = vlaneseq
        %v3685 = vshrl.u32 %v3684, 7
        %v3686 = vsub.s32 0, %v3685
        %v3687 = vrot.slane %v3682, %v3686
        %v3705 = vunpack.c.l.b16 %v3666
        %v3706 = vunpack.c.l.b16 %v3667
        %v3707 = vunpack.c.l.b16 %v3668
        %v3708 = vunpack.c.l.b16 %v3669
        %v3709 = vunpack.c.l.b16 %v3670
        %v3710 = vunpack.c.l.b16 %v3671
        %v3711 = vunpack.c.l.b16 %v3672
        %v3712 = vunpack.c.l.b16 %v3673
        %v3713 = vunpack.c.l.b16 %v3674
        %v3714 = vunpack.c.l.b16 %v3675
        %v3715 = vunpack.c.l.b16 %v3676
        %v3716 = vunpack.c.l.b16 %v3677
        %v3717 = vunpack.c.l.b16 %v3678
        %v3718 = vunpack.c.l.b16 %v3679
        %v3719 = vunpack.c.l.b16 %v3680
        %v3720 = vunpack.c.l.b16 %v3681
        %v3721 = vpack.c.b16 %v3706, %v3705
        %v3722 = vpack.c.b16 %v3708, %v3707
        %v3723 = vpack.c.b16 %v3710, %v3709
        %v3724 = vpack.c.b16 %v3712, %v3711
        %v3725 = vpack.c.b16 %v3714, %v3713
        %v3726 = vpack.c.b16 %v3716, %v3715
        %v3727 = vpack.c.b16 %v3718, %v3717
        %v3728 = vpack.c.b16 %v3720, %v3719
        %3737 = vmatprep.subr.bf16.mxu0 0
        %3738 = vmatpush1.bf16.msra.mxu0 %v3728
        %3739 = vmatprep.subr.bf16.mxu0 0
        %3740 = vmatpush1.bf16.msra.mxu0 %v3727
        %3741 = vmatprep.subr.bf16.mxu0 0
        %3742 = vmatpush1.bf16.msra.mxu0 %v3726
        %3743 = vmatprep.subr.bf16.mxu0 0
        %3744 = vmatpush1.bf16.msra.mxu0 %v3725
        %3745 = vmatprep.subr.bf16.mxu0 0
        %3746 = vmatpush1.bf16.msra.mxu0 %v3724
        %3747 = vmatprep.subr.bf16.mxu0 0
        %3748 = vmatpush1.bf16.msra.mxu0 %v3723
        %3749 = vmatprep.subr.bf16.mxu0 0
        %3750 = vmatpush1.bf16.msra.mxu0 %v3722
        %3751 = vmatprep.subr.bf16.mxu0 0
        %3752 = vmatpush1.bf16.msra.mxu0 %v3721
        %3753 = vmatprep.subr.bf16.mxu0 0
        %3754 = vmatpush2.bf16.msra.mxu0 0
        %3755 = vmatprep.subr.bf16.mxu0 0
        %3756 = vmatpush2.bf16.msra.mxu0 0
        %3757 = vmatprep.subr.bf16.mxu0 0
        %3758 = vmatpush2.bf16.msra.mxu0 0
        %3759 = vmatprep.subr.bf16.mxu0 0
        %3760 = vmatpush2.bf16.msra.mxu0 0
        %3761 = vmatprep.subr.bf16.mxu0 0
        %3762 = vmatpush2.bf16.msra.mxu0 0
        %3763 = vmatprep.subr.bf16.mxu0 0
        %3764 = vmatpush2.bf16.msra.mxu0 0
        %3765 = vmatprep.subr.bf16.mxu0 0
        %3766 = vmatpush2.bf16.msra.mxu0 0
        %3767 = vmatprep.subr.bf16.mxu0 0
        %3768 = vmatpush2.bf16.msra.mxu0 0
        %3769 = vmatprep.mubr.bf16.mxu0 0
        %3770 = vmatmul.mubr.bf16.gmra.mxu0 %v3665
        %v3771 = vpop.f32.mrf.mxu0
        %v3772 = vadd.f32 %v3687, %v3771
        %v3773 = vpop.f32.mrf.mxu0
        %v3774 = vpop.f32.mrf.mxu0
        %v3775 = vpop.f32.mrf.mxu0
        %3776 = vdwg.mxu0
        %v3777 = vld [vmem:[%s20] sm:$0x1]
        %v3778 = vld [vmem:[%s21] sm:$0x1]
        %3779 = vadd.xlane.f32.xlu0 %v3772
        %v3780 = vpop.xlane.xlu0 %3779
        %v3781 = vmul.f32 %v3780, %v3637
        %v3782 = vsub.f32 %v3772, %v3781
        %v3783 = vmul.f32 %v3782, %v3782
        %3784 = vadd.xlane.f32.xlu0 %v3783
        %v3785 = vpop.xlane.xlu0 %3784
        %v3786 = vmul.f32 %v3785, %v3637
        %v3787 = vadd.f32 %v3786, 1e-05
        %v3788 = vrsqrt.pop %v3787
        %v3789 = vmul.f32 %v3782, %v3788
        %v3791 = vlaneseq
        %v3792 = vshrl.u32 %v3791, 7
        %v3793 = vsub.s32 0, %v3792
        %v3794 = vrot.slane %v3777, %v3793
        %v3796 = vmul.f32 %v3789, %v3794
        %v3798 = vlaneseq
        %v3799 = vshrl.u32 %v3798, 7
        %v3800 = vsub.s32 0, %v3799
        %v3801 = vrot.slane %v3778, %v3800
        %v3803 = vadd.f32 %v3796, %v3801
        %v3804 = vmul.f32 %v3803, %v3661
        %3805 = vst [vmem:[%s742] sm:$0xff] %v3804
        %s3806 = sand.u32 %s527, 1
        %s3807 = scalar_lea.sflag [#allocation4], %s3806
        %s3808 = sand.u32 %s527, 1
        %s3809 = smul.addr %s3808, 8
        %s3810 = scalar_lea.vmem [#allocation3], %s3809
        %s3811 = sand.u32 %s553, 1
        %s3812 = scalar_lea.sflag [#allocation6], %s3811
        %s3813 = sand.u32 %s553, 1
        %s3814 = smul.addr %s3813, 8
        %s3815 = scalar_lea.vmem [#allocation5], %s3814
        // Predicated region
        $region109: #{gcn_forward.1} parent=107 // pred_check
          %p3816 = pneg %p537
        $region110: #{gcn_forward.1} parent=107 // pred_check_branch
          %3818 = sbr.rel (%p3816) target = $region112
        $region111: #{gcn_forward.1} parent=107 // pred_region
          %s3820 = ssub.s32 128, 128
          %3821 = vsyncadd %s3807, %s3820
          %s3822 = smul.addr %s42, 128
          %s3823 = scalar_lea.hbm %s22, %s3822
          %s3825 = sshll.u32 %s3810, 4
          %s3826 = int_to_ptr.vmem [resolvable:$true] %s3825
          %3828 = dma.vmem_to_hbm [thread:$0]  %s3826, 128, %s3823, %s3807
        $region112: #{gcn_forward.1} parent=107 // pred_fallthru
          _
        // Predicated region
        $region113: #{gcn_forward.1} parent=107 // pred_check
          %p3829 = pneg %p563
        $region114: #{gcn_forward.1} parent=107 // pred_check_branch
          %3831 = sbr.rel (%p3829) target = $region116
        $region115: #{gcn_forward.1} parent=107 // pred_region
          %s3833 = ssub.s32 128, 128
          %3834 = vsyncadd %s3812, %s3833
          %s3835 = smul.addr %s42, 128
          %s3836 = scalar_lea.hbm %s23, %s3835
          %s3838 = sshll.u32 %s3815, 4
          %s3839 = int_to_ptr.vmem [resolvable:$true] %s3838
          %3841 = dma.vmem_to_hbm [thread:$0]  %s3839, 128, %s3836, %s3812
        $region116: #{gcn_forward.1} parent=107 // pred_fallthru
          _
      $region108: #{gcn_forward.1} parent=5 // pred_fallthru
        _
      %p3842 = scmp.le.s32.totalorder 2, %s37
      // Predicated region
      $region117: #{gcn_forward.1} parent=5 // pred_check
        %p3843 = pneg %p3842
      $region118: #{gcn_forward.1} parent=5 // pred_check_branch
        %3845 = sbr.rel (%p3843) target = $region120
      $region119: #{gcn_forward.1} parent=5 // pred_region
        %s3846 = ssub.s32 %s37, 2
        // Predicated region
        $region121: #{gcn_forward.1} parent=119 // pred_check
          %p3847 = pneg %p543
        $region122: #{gcn_forward.1} parent=119 // pred_check_branch
          %3849 = sbr.rel (%p3847) target = $region124
        $region123: #{gcn_forward.1} parent=119 // pred_region
          %s3850 = sand.u32 %s528, 1
          %s3851 = scalar_lea.sflag [#allocation4], %s3850
          %s3852 = sand.u32 %s528, 1
          %s3853 = smul.addr %s3852, 8
          %s3854 = scalar_lea.vmem [#allocation3], %s3853
          %3855 = dma.done %s3851, 128
        $region124: #{gcn_forward.1} parent=119 // pred_fallthru
          _
        // Predicated region
        $region125: #{gcn_forward.1} parent=119 // pred_check
          %p3856 = pneg %p569
        $region126: #{gcn_forward.1} parent=119 // pred_check_branch
          %3858 = sbr.rel (%p3856) target = $region128
        $region127: #{gcn_forward.1} parent=119 // pred_region
          %s3859 = sand.u32 %s554, 1
          %s3860 = scalar_lea.sflag [#allocation6], %s3859
          %s3861 = sand.u32 %s554, 1
          %s3862 = smul.addr %s3861, 8
          %s3863 = scalar_lea.vmem [#allocation5], %s3862
          %3864 = dma.done %s3860, 128
        $region128: #{gcn_forward.1} parent=119 // pred_fallthru
          _
      $region120: #{gcn_forward.1} parent=5 // pred_fallthru
        _
    $region6: #{gcn_forward.1} parent=1 // loop_footer
      %s41 = sadd.s32 1, %s37
    $region7: #{gcn_forward.1} parent=1 // loop_footer_branch
      %36 = sbr.rel target = $region3
    $region8: #{gcn_forward.1} parent=1 // loop_exit
      _
    %3865 = vsyncpa [#allocation4], 1
    %s3866 = scalar_lea.sflag [#allocation4], 1
    %3867 = vsyncpa %s3866, 1
    %3868 = vsyncpa [#allocation6], 1
    %s3869 = scalar_lea.sflag [#allocation6], 1
    %3870 = vsyncpa %s3869, 1

</llo_original>
